<compile_context>
chip_gen: v5e
topology: v5e:2x2
jax: 0.10.0
libtpu: 0.0.40
codegen_flags: <defaults>
</compile_context>

<pallas_src>
import functools

import jax
import jax.numpy as jnp
from jax.experimental import pallas as pl
from jax.experimental.pallas import tpu as pltpu


def _round_up(x, m):
    return (x + m - 1) // m * m


def _fold_bn(layer, eps):
    """Fold conv bias + inference-mode BatchNorm into a per-channel scale/bias."""
    scale = layer["gamma"] / jnp.sqrt(layer["var"] + eps)
    bias = (layer["b"] - layer["mean"]) * scale + layer["beta"]
    return scale, bias


# ----------------------------------------------------------------------------
# Fused kernel: [conv3x3/s2 + BN + ReLU] -> [conv3x3/s1 + BN + ReLU] x 2.
# One grid step == one image; inter-layer activations stay in VMEM scratch.
#
#   p_ref  : (1, Lext, 128)  layer-0 patches (27 real features, zero-padded to 128 lanes),
#                            laid out in the "extended" row order y*Wp + x.
#   w0_ref : (128, Cout)     layer-0 weights (27 real rows, zero-padded).
#   w1_ref : (9, Cout, Cout) layer-1 per-tap weight slabs (tap = ky*3 + kx).
#   w2_ref : (9, Cout, Cout) layer-2 per-tap weight slabs.
#   sb_ref : (6, Cout)       folded BN scale/bias rows [s0, b0, s1, b1, s2, b2] (f32).
#   m_ref  : (Lext, 1)       1.0 on valid output columns, 0.0 on pad/garbage columns.
#   o_ref  : (1, Ho, Wo, Cout) final activation (f32).
#   a1/a2  : (Hp*Wp + 8, Cout) VMEM scratch holding the flattened zero-padded image.
# ----------------------------------------------------------------------------
def _first_conv_kernel(p_ref, w0_ref, w1_ref, w2_ref, sb_ref, m_ref,
                       o_ref, a1_ref, a2_ref, *, ho, wo, wp, lext):
    cout = o_ref.shape[-1]
    cdtype = a1_ref.dtype
    mask = m_ref[...]                      # (Lext, 1) f32
    head = wp + 8                          # covers the top padding row + left pad of row 1
    tail = (ho + 1) * wp                   # start of the bottom padding row (+ slack)
    interior = wp + 1                      # flat offset of padded-image pixel (1, 1)

    def conv3x3(a_ref, w_ref):
        """Stride-1 3x3 conv on the flattened zero-padded image held in `a_ref`."""
        acc = jnp.zeros((lext, cout), jnp.float32)
        for ky in range(3):                # 9 MXU matmuls, f32 accumulator
            for kx in range(3):
                off = ky * wp + kx
                acc = acc + jnp.dot(a_ref[off:off + lext, :],
                                    w_ref[ky * 3 + kx],
                                    preferred_element_type=jnp.float32)
        return acc

    def bn_relu(acc, idx):
        scale = sb_ref[2 * idx:2 * idx + 1, :]        # (1, Cout) f32
        bias = sb_ref[2 * idx + 1:2 * idx + 2, :]
        return jnp.maximum(acc * scale + bias, 0.0)

    def store_padded(buf_ref, y):
        # Zero the padding border (top row, left/right pads, bottom row, slack) ...
        buf_ref[0:head, :] = jnp.zeros((head, cout), cdtype)
        buf_ref[tail:, :] = jnp.zeros((buf_ref.shape[0] - tail, cout), cdtype)
        # ... then one slab store of the masked extended output into the interior.
        buf_ref[interior:interior + lext, :] = (y * mask).astype(cdtype)

    # Layer 0: stride-2 conv as a single matmul over pre-extracted patches.
    y0 = bn_relu(jnp.dot(p_ref[0], w0_ref[...], preferred_element_type=jnp.float32), 0)
    store_padded(a1_ref, y0)

    # Layers 1 & 2: stride-1 3x3 convs entirely in VMEM.
    y1 = bn_relu(conv3x3(a1_ref, w1_ref), 1)
    store_padded(a2_ref, y1)

    y2 = bn_relu(conv3x3(a2_ref, w2_ref), 2)
    # Final store: drop the (Wp - Wo) garbage columns of each output row.
    for row in range(ho):
        o_ref[0, row, :, :] = y2[row * wp:row * wp + wo, :].astype(o_ref.dtype)


# ----------------------------------------------------------------------------
# Wrapper (layout-only work outside the kernel).
# ----------------------------------------------------------------------------
def first_conv_forward(x_nchw, layers, eps=1e-5, compute_dtype=jnp.bfloat16):
    """Pallas forward pass matching first_conv.forward (inference-mode BN)."""
    x = jnp.transpose(x_nchw, (0, 2, 3, 1)).astype(jnp.float32)     # NCHW -> NHWC
    n, h, w, cin = x.shape
    cout = layers[0]["w"].shape[-1]

    ho = (h - 1) // 2 + 1                 # stride-2, pad-1, k=3 output size
    wo = (w - 1) // 2 + 1
    hp = ho + 2
    wp = _round_up(wo + 2, 8)             # padded row width, 8-aligned
    lext = ho * wp                        # extended (valid + garbage columns) row count
    buf_rows = hp * wp + 8                # +8 slack: taps read up to Hp*Wp + 1

    # --- layer-0 patch extraction (Cin=3, tiny; pure layout) ---
    xp = jnp.pad(x, ((0, 0), (1, 1), (1, 1), (0, 0)))
    taps = [xp[:, ky:ky + 2 * (ho - 1) + 1:2, kx:kx + 2 * (wo - 1) + 1:2, :]
            for ky in range(3) for kx in range(3)]
    pat = jnp.concatenate(taps, axis=-1)                            # (n, ho, wo, 9*cin)
    kfeat = 9 * cin
    kpad = _round_up(kfeat, 128)
    pat = jnp.pad(pat, ((0, 0), (0, 0), (0, wp - wo), (0, kpad - kfeat)))
    pat = pat.reshape(n, lext, kpad).astype(compute_dtype)

    # --- weights / folded BN params ---
    w0 = layers[0]["w"].reshape(kfeat, cout)
    w0 = jnp.pad(w0, ((0, kpad - kfeat), (0, 0))).astype(compute_dtype)
    w1 = layers[1]["w"].reshape(9, cout, cout).astype(compute_dtype)
    w2 = layers[2]["w"].reshape(9, cout, cout).astype(compute_dtype)
    sb_rows = []
    for layer in layers:
        s, b = _fold_bn(layer, eps)
        sb_rows += [s, b]
    sb = jnp.stack(sb_rows).astype(jnp.float32)                      # (6, cout)
    mask = (jnp.arange(lext) % wp < wo).astype(jnp.float32).reshape(lext, 1)

    # --- VMEM budget: real footprint (x2 margin), floor 32 MiB, cap 48 MiB ---
    cbytes = jnp.dtype(compute_dtype).itemsize
    est = (2 * lext * kpad * cbytes                       # patches (double-buffered)
           + 2 * (kpad * cout + 18 * cout * cout) * cbytes  # weights
           + 2 * (6 * cout + lext) * 4                    # scale/bias + mask
           + 2 * buf_rows * cout * cbytes                 # two activation scratch buffers
           + 2 * ho * wo * cout * 4                       # output block (double-buffered)
           + 8 * lext * cout * 4)                         # in-kernel f32 temporaries
    vmem_limit = int(min(max(2 * est, 32 * 1024 * 1024), 48 * 1024 * 1024))

    kernel = functools.partial(_first_conv_kernel, ho=ho, wo=wo, wp=wp, lext=lext)

    out = pl.pallas_call(
        kernel,
        out_shape=jax.ShapeDtypeStruct((n, ho, wo, cout), jnp.float32),
        grid_spec=pltpu.PrefetchScalarGridSpec(
            num_scalar_prefetch=0,
            grid=(n,),
            in_specs=[
                pl.BlockSpec((1, lext, kpad), lambda i: (i, 0, 0)),
                pl.BlockSpec((kpad, cout), lambda i: (0, 0)),
                pl.BlockSpec((9, cout, cout), lambda i: (0, 0, 0)),
                pl.BlockSpec((9, cout, cout), lambda i: (0, 0, 0)),
                pl.BlockSpec((6, cout), lambda i: (0, 0)),
                pl.BlockSpec((lext, 1), lambda i: (0, 0)),
            ],
            out_specs=pl.BlockSpec((1, ho, wo, cout), lambda i: (i, 0, 0, 0)),
            scratch_shapes=[
                pltpu.VMEM((buf_rows, cout), compute_dtype),
                pltpu.VMEM((buf_rows, cout), compute_dtype),
            ],
        ),
        compiler_params=pltpu.CompilerParams(
            dimension_semantics=("parallel",),
            vmem_limit_bytes=vmem_limit,
        ),
    )(pat, w0, w1, w2, sb, mask)

    return jnp.transpose(out, (0, 3, 1, 2))                          # NHWC -> NCHW


# ----------------------------------------------------------------------------
# Pure-JAX reference (PyTorch module in eval mode).
# With quantize=True, matmul operands and inter-layer activations are rounded through
# bf16 exactly the way the Pallas kernel rounds them, so the comparison isolates the
# kernel's indexing/fusion logic from bf16 numerics.
# ----------------------------------------------------------------------------
def first_conv_ref(x_nchw, layers, eps=1e-5, quantize=False):
    def q(a):
        return a.astype(jnp.bfloat16).astype(jnp.float32) if quantize else a

    x = q(jnp.transpose(x_nchw, (0, 2, 3, 1)).astype(jnp.float32))
    strides = (2, 1, 1)
    for li, (layer, s) in enumerate(zip(layers, strides)):
        y = jax.lax.conv_general_dilated(
            x, q(layer["w"].astype(jnp.float32)), window_strides=(s, s),
            padding=((1, 1), (1, 1)),
            dimension_numbers=("NHWC", "HWIO", "NHWC"),
            precision=jax.lax.Precision.HIGHEST)
        y = y + layer["b"]
        y = (y - layer["mean"]) / jnp.sqrt(layer["var"] + eps) * layer["gamma"] + layer["beta"]
        x = jnp.maximum(y, 0.0)
        if quantize and li + 1 < len(layers):
            x = q(x)
    return jnp.transpose(x, (0, 3, 1, 2))


# ----------------------------------------------------------------------------
if __name__ == "__main__":
    key = jax.random.PRNGKey(0)
    ks = jax.random.split(key, 19)

    N, C, H, W = 2, 3, 16, 16
    x = jax.random.normal(ks[0], (N, C, H, W), dtype=jnp.float32)

    def make_layer(base, cin, cout):
        fan_in = 3 * 3 * cin
        return dict(
            w=jax.random.normal(ks[base + 0], (3, 3, cin, cout), jnp.float32)
              / jnp.sqrt(float(fan_in)),
            b=0.1 * jax.random.normal(ks[base + 1], (cout,), jnp.float32),
            gamma=1.0 + 0.1 * jax.random.normal(ks[base + 2], (cout,), jnp.float32),
            beta=0.1 * jax.random.normal(ks[base + 3], (cout,), jnp.float32),
            mean=0.1 * jax.random.normal(ks[base + 4], (cout,), jnp.float32),
            var=jnp.abs(1.0 + 0.1 * jax.random.normal(ks[base + 5], (cout,), jnp.float32)),
        )

    layers = [make_layer(1, 3, 64), make_layer(7, 64, 64), make_layer(13, 64, 64)]

    fwd = jax.jit(first_conv_forward)
    out = fwd(x, layers)
    jax.block_until_ready(out)
    assert out.shape == (N, 64, H // 2, W // 2), out.shape

    # Tight logic check: reference with bf16 rounding applied exactly where the kernel
    # applies it (matmul operands + inter-layer activations), f32 everywhere else.
    ref_q = first_conv_ref(x, layers, quantize=True)
    err_q = jnp.max(jnp.abs(out - ref_q))
    assert jnp.allclose(out, ref_q, rtol=1e-2, atol=1e-2), f"quantized-ref max abs err = {err_q}"

    # Loose end-to-end check against the full-f32 reference (bounds the bf16 compute error).
    ref_f = first_conv_ref(x, layers, quantize=False)
    err_f = jnp.max(jnp.abs(out - ref_f))
    assert jnp.allclose(out, ref_f, rtol=6e-2, atol=6e-2), f"f32-ref max abs err = {err_f}"

    print("KERNEL_OK")
</pallas_src>

<mosaic_0001>
module attributes {stable_mosaic.version = 11 : i64} {
  func.func @_first_conv_kernel(%arg0: i32, %arg1: memref<1x128x128xbf16, #tpu.memory_space<vmem>>, %arg2: memref<128x64xbf16, #tpu.memory_space<vmem>>, %arg3: memref<9x64x64xbf16, #tpu.memory_space<vmem>>, %arg4: memref<9x64x64xbf16, #tpu.memory_space<vmem>>, %arg5: memref<6x64xf32, #tpu.memory_space<vmem>>, %arg6: memref<128x1xf32, #tpu.memory_space<vmem>>, %arg7: memref<1x8x8x64xf32, #tpu.memory_space<vmem>>, %arg8: memref<168x64xbf16, #tpu.memory_space<vmem>>, %arg9: memref<168x64xbf16, #tpu.memory_space<vmem>>) attributes {dimension_semantics = [#tpu.dimension_semantics<parallel>], iteration_bounds = array<i64: 2>, scalar_prefetch = 0 : i64, scratch_operands = 2 : i64, tpu.core_type = #tpu.core_type<tc>, window_params = [{transform_indices = @transform_0, window_bounds = array<i64: 1, 128, 128>}, {pipeline_mode = #tpu.pipeline_mode<synchronous>, transform_indices = @transform_1, window_bounds = array<i64: 128, 64>}, {pipeline_mode = #tpu.pipeline_mode<synchronous>, transform_indices = @transform_2, window_bounds = array<i64: 9, 64, 64>}, {pipeline_mode = #tpu.pipeline_mode<synchronous>, transform_indices = @transform_3, window_bounds = array<i64: 9, 64, 64>}, {pipeline_mode = #tpu.pipeline_mode<synchronous>, transform_indices = @transform_4, window_bounds = array<i64: 6, 64>}, {pipeline_mode = #tpu.pipeline_mode<synchronous>, transform_indices = @transform_5, window_bounds = array<i64: 128, 1>}, {transform_indices = @transform_6, window_bounds = array<i64: 1, 8, 8, 64>}]} {
    %c0 = arith.constant 0 : index
    %c0_0 = arith.constant 0 : index
    %0 = vector.load %arg6[%c0, %c0_0] : memref<128x1xf32, #tpu.memory_space<vmem>>, vector<128x1xf32>
    %c0_1 = arith.constant 0 : index
    %c0_2 = arith.constant 0 : index
    %c0_3 = arith.constant 0 : index
    %1 = vector.load %arg1[%c0_1, %c0_2, %c0_3] : memref<1x128x128xbf16, #tpu.memory_space<vmem>>, vector<1x128x128xbf16>
    %2 = vector.shape_cast %1 : vector<1x128x128xbf16> to vector<128x128xbf16>
    %c0_4 = arith.constant 0 : index
    %c0_5 = arith.constant 0 : index
    %3 = vector.load %arg2[%c0_4, %c0_5] : memref<128x64xbf16, #tpu.memory_space<vmem>>, vector<128x64xbf16>
    %cst = arith.constant dense<0.000000e+00> : vector<128x64xf32>
    %4 = tpu.matmul %2, %3, %cst {dimension_numbers = #tpu.dot_dimension_numbers<[1], [0], [0], [1], [0, 0, 1, 1], [], []>} : vector<128x128xbf16>, vector<128x64xbf16>, vector<128x64xf32> -> vector<128x64xf32>
    %c0_6 = arith.constant 0 : index
    %c0_7 = arith.constant 0 : index
    %5 = vector.load %arg5[%c0_6, %c0_7] : memref<6x64xf32, #tpu.memory_space<vmem>>, vector<1x64xf32>
    %c1 = arith.constant 1 : index
    %c0_8 = arith.constant 0 : index
    %6 = vector.load %arg5[%c1, %c0_8] : memref<6x64xf32, #tpu.memory_space<vmem>>, vector<1x64xf32>
    %7 = vector.broadcast %5 : vector<1x64xf32> to vector<128x64xf32>
    %8 = arith.mulf %4, %7 : vector<128x64xf32>
    %9 = vector.broadcast %6 : vector<1x64xf32> to vector<128x64xf32>
    %10 = arith.addf %8, %9 : vector<128x64xf32>
    %cst_9 = arith.constant 0.000000e+00 : f32
    %11 = vector.broadcast %cst_9 : f32 to vector<128x64xf32>
    %12 = arith.maximumf %10, %11 : vector<128x64xf32>
    %cst_10 = arith.constant 0.000000e+00 : bf16
    %13 = vector.broadcast %cst_10 : bf16 to vector<24x64xbf16>
    %c0_11 = arith.constant 0 : index
    %c0_12 = arith.constant 0 : index
    %14 = vector.load %arg8[%c0_11, %c0_12] : memref<168x64xbf16, #tpu.memory_space<vmem>>, vector<24x64xbf16>
    tpu.vector_store %arg8[%c0_11, %c0_12], %13 {strides = array<i32>} : memref<168x64xbf16, #tpu.memory_space<vmem>>, vector<24x64xbf16>,
    %cst_13 = arith.constant 0.000000e+00 : bf16
    %15 = vector.broadcast %cst_13 : bf16 to vector<24x64xbf16>
    %c144 = arith.constant 144 : index
    %c0_14 = arith.constant 0 : index
    %16 = vector.load %arg8[%c144, %c0_14] : memref<168x64xbf16, #tpu.memory_space<vmem>>, vector<24x64xbf16>
    tpu.vector_store %arg8[%c144, %c0_14], %15 {strides = array<i32>} : memref<168x64xbf16, #tpu.memory_space<vmem>>, vector<24x64xbf16>,
    %17 = vector.broadcast %0 : vector<128x1xf32> to vector<128x64xf32>
    %18 = arith.mulf %12, %17 : vector<128x64xf32>
    %19 = arith.truncf %18 : vector<128x64xf32> to vector<128x64xbf16>
    %c17 = arith.constant 17 : index
    %c0_15 = arith.constant 0 : index
    %20 = vector.load %arg8[%c17, %c0_15] : memref<168x64xbf16, #tpu.memory_space<vmem>>, vector<128x64xbf16>
    tpu.vector_store %arg8[%c17, %c0_15], %19 {strides = array<i32>} : memref<168x64xbf16, #tpu.memory_space<vmem>>, vector<128x64xbf16>,
    %cst_16 = arith.constant 0.000000e+00 : f32
    %21 = vector.broadcast %cst_16 : f32 to vector<128x64xf32>
    %c0_17 = arith.constant 0 : index
    %c0_18 = arith.constant 0 : index
    %22 = vector.load %arg8[%c0_17, %c0_18] : memref<168x64xbf16, #tpu.memory_space<vmem>>, vector<128x64xbf16>
    %c0_19 = arith.constant 0 : index
    %c0_20 = arith.constant 0 : index
    %c0_21 = arith.constant 0 : index
    %23 = vector.load %arg3[%c0_19, %c0_20, %c0_21] : memref<9x64x64xbf16, #tpu.memory_space<vmem>>, vector<1x64x64xbf16>
    %24 = vector.shape_cast %23 : vector<1x64x64xbf16> to vector<64x64xbf16>
    %cst_22 = arith.constant dense<0.000000e+00> : vector<128x64xf32>
    %25 = tpu.matmul %22, %24, %cst_22 {dimension_numbers = #tpu.dot_dimension_numbers<[1], [0], [0], [1], [0, 0, 1, 1], [], []>} : vector<128x64xbf16>, vector<64x64xbf16>, vector<128x64xf32> -> vector<128x64xf32>
    %26 = arith.addf %21, %25 : vector<128x64xf32>
    %c1_23 = arith.constant 1 : index
    %c0_24 = arith.constant 0 : index
    %27 = vector.load %arg8[%c1_23, %c0_24] : memref<168x64xbf16, #tpu.memory_space<vmem>>, vector<128x64xbf16>
    %c1_25 = arith.constant 1 : index
    %c0_26 = arith.constant 0 : index
    %c0_27 = arith.constant 0 : index
    %28 = vector.load %arg3[%c1_25, %c0_26, %c0_27] : memref<9x64x64xbf16, #tpu.memory_space<vmem>>, vector<1x64x64xbf16>
    %29 = vector.shape_cast %28 : vector<1x64x64xbf16> to vector<64x64xbf16>
    %cst_28 = arith.constant dense<0.000000e+00> : vector<128x64xf32>
    %30 = tpu.matmul %27, %29, %cst_28 {dimension_numbers = #tpu.dot_dimension_numbers<[1], [0], [0], [1], [0, 0, 1, 1], [], []>} : vector<128x64xbf16>, vector<64x64xbf16>, vector<128x64xf32> -> vector<128x64xf32>
    %31 = arith.addf %26, %30 : vector<128x64xf32>
    %c2 = arith.constant 2 : index
    %c0_29 = arith.constant 0 : index
    %32 = vector.load %arg8[%c2, %c0_29] : memref<168x64xbf16, #tpu.memory_space<vmem>>, vector<128x64xbf16>
    %c2_30 = arith.constant 2 : index
    %c0_31 = arith.constant 0 : index
    %c0_32 = arith.constant 0 : index
    %33 = vector.load %arg3[%c2_30, %c0_31, %c0_32] : memref<9x64x64xbf16, #tpu.memory_space<vmem>>, vector<1x64x64xbf16>
    %34 = vector.shape_cast %33 : vector<1x64x64xbf16> to vector<64x64xbf16>
    %cst_33 = arith.constant dense<0.000000e+00> : vector<128x64xf32>
    %35 = tpu.matmul %32, %34, %cst_33 {dimension_numbers = #tpu.dot_dimension_numbers<[1], [0], [0], [1], [0, 0, 1, 1], [], []>} : vector<128x64xbf16>, vector<64x64xbf16>, vector<128x64xf32> -> vector<128x64xf32>
    %36 = arith.addf %31, %35 : vector<128x64xf32>
    %c16 = arith.constant 16 : index
    %c0_34 = arith.constant 0 : index
    %37 = vector.load %arg8[%c16, %c0_34] : memref<168x64xbf16, #tpu.memory_space<vmem>>, vector<128x64xbf16>
    %c3 = arith.constant 3 : index
    %c0_35 = arith.constant 0 : index
    %c0_36 = arith.constant 0 : index
    %38 = vector.load %arg3[%c3, %c0_35, %c0_36] : memref<9x64x64xbf16, #tpu.memory_space<vmem>>, vector<1x64x64xbf16>
    %39 = vector.shape_cast %38 : vector<1x64x64xbf16> to vector<64x64xbf16>
    %cst_37 = arith.constant dense<0.000000e+00> : vector<128x64xf32>
    %40 = tpu.matmul %37, %39, %cst_37 {dimension_numbers = #tpu.dot_dimension_numbers<[1], [0], [0], [1], [0, 0, 1, 1], [], []>} : vector<128x64xbf16>, vector<64x64xbf16>, vector<128x64xf32> -> vector<128x64xf32>
    %41 = arith.addf %36, %40 : vector<128x64xf32>
    %c17_38 = arith.constant 17 : index
    %c0_39 = arith.constant 0 : index
    %42 = vector.load %arg8[%c17_38, %c0_39] : memref<168x64xbf16, #tpu.memory_space<vmem>>, vector<128x64xbf16>
    %c4 = arith.constant 4 : index
    %c0_40 = arith.constant 0 : index
    %c0_41 = arith.constant 0 : index
    %43 = vector.load %arg3[%c4, %c0_40, %c0_41] : memref<9x64x64xbf16, #tpu.memory_space<vmem>>, vector<1x64x64xbf16>
    %44 = vector.shape_cast %43 : vector<1x64x64xbf16> to vector<64x64xbf16>
    %cst_42 = arith.constant dense<0.000000e+00> : vector<128x64xf32>
    %45 = tpu.matmul %42, %44, %cst_42 {dimension_numbers = #tpu.dot_dimension_numbers<[1], [0], [0], [1], [0, 0, 1, 1], [], []>} : vector<128x64xbf16>, vector<64x64xbf16>, vector<128x64xf32> -> vector<128x64xf32>
    %46 = arith.addf %41, %45 : vector<128x64xf32>
    %c18 = arith.constant 18 : index
    %c0_43 = arith.constant 0 : index
    %47 = vector.load %arg8[%c18, %c0_43] : memref<168x64xbf16, #tpu.memory_space<vmem>>, vector<128x64xbf16>
    %c5 = arith.constant 5 : index
    %c0_44 = arith.constant 0 : index
    %c0_45 = arith.constant 0 : index
    %48 = vector.load %arg3[%c5, %c0_44, %c0_45] : memref<9x64x64xbf16, #tpu.memory_space<vmem>>, vector<1x64x64xbf16>
    %49 = vector.shape_cast %48 : vector<1x64x64xbf16> to vector<64x64xbf16>
    %cst_46 = arith.constant dense<0.000000e+00> : vector<128x64xf32>
    %50 = tpu.matmul %47, %49, %cst_46 {dimension_numbers = #tpu.dot_dimension_numbers<[1], [0], [0], [1], [0, 0, 1, 1], [], []>} : vector<128x64xbf16>, vector<64x64xbf16>, vector<128x64xf32> -> vector<128x64xf32>
    %51 = arith.addf %46, %50 : vector<128x64xf32>
    %c32 = arith.constant 32 : index
    %c0_47 = arith.constant 0 : index
    %52 = vector.load %arg8[%c32, %c0_47] : memref<168x64xbf16, #tpu.memory_space<vmem>>, vector<128x64xbf16>
    %c6 = arith.constant 6 : index
    %c0_48 = arith.constant 0 : index
    %c0_49 = arith.constant 0 : index
    %53 = vector.load %arg3[%c6, %c0_48, %c0_49] : memref<9x64x64xbf16, #tpu.memory_space<vmem>>, vector<1x64x64xbf16>
    %54 = vector.shape_cast %53 : vector<1x64x64xbf16> to vector<64x64xbf16>
    %cst_50 = arith.constant dense<0.000000e+00> : vector<128x64xf32>
    %55 = tpu.matmul %52, %54, %cst_50 {dimension_numbers = #tpu.dot_dimension_numbers<[1], [0], [0], [1], [0, 0, 1, 1], [], []>} : vector<128x64xbf16>, vector<64x64xbf16>, vector<128x64xf32> -> vector<128x64xf32>
    %56 = arith.addf %51, %55 : vector<128x64xf32>
    %c33 = arith.constant 33 : index
    %c0_51 = arith.constant 0 : index
    %57 = vector.load %arg8[%c33, %c0_51] : memref<168x64xbf16, #tpu.memory_space<vmem>>, vector<128x64xbf16>
    %c7 = arith.constant 7 : index
    %c0_52 = arith.constant 0 : index
    %c0_53 = arith.constant 0 : index
    %58 = vector.load %arg3[%c7, %c0_52, %c0_53] : memref<9x64x64xbf16, #tpu.memory_space<vmem>>, vector<1x64x64xbf16>
    %59 = vector.shape_cast %58 : vector<1x64x64xbf16> to vector<64x64xbf16>
    %cst_54 = arith.constant dense<0.000000e+00> : vector<128x64xf32>
    %60 = tpu.matmul %57, %59, %cst_54 {dimension_numbers = #tpu.dot_dimension_numbers<[1], [0], [0], [1], [0, 0, 1, 1], [], []>} : vector<128x64xbf16>, vector<64x64xbf16>, vector<128x64xf32> -> vector<128x64xf32>
    %61 = arith.addf %56, %60 : vector<128x64xf32>
    %c34 = arith.constant 34 : index
    %c0_55 = arith.constant 0 : index
    %62 = vector.load %arg8[%c34, %c0_55] : memref<168x64xbf16, #tpu.memory_space<vmem>>, vector<128x64xbf16>
    %c8 = arith.constant 8 : index
    %c0_56 = arith.constant 0 : index
    %c0_57 = arith.constant 0 : index
    %63 = vector.load %arg3[%c8, %c0_56, %c0_57] : memref<9x64x64xbf16, #tpu.memory_space<vmem>>, vector<1x64x64xbf16>
    %64 = vector.shape_cast %63 : vector<1x64x64xbf16> to vector<64x64xbf16>
    %cst_58 = arith.constant dense<0.000000e+00> : vector<128x64xf32>
    %65 = tpu.matmul %62, %64, %cst_58 {dimension_numbers = #tpu.dot_dimension_numbers<[1], [0], [0], [1], [0, 0, 1, 1], [], []>} : vector<128x64xbf16>, vector<64x64xbf16>, vector<128x64xf32> -> vector<128x64xf32>
    %66 = arith.addf %61, %65 : vector<128x64xf32>
    %c2_59 = arith.constant 2 : index
    %c0_60 = arith.constant 0 : index
    %67 = vector.load %arg5[%c2_59, %c0_60] : memref<6x64xf32, #tpu.memory_space<vmem>>, vector<1x64xf32>
    %c3_61 = arith.constant 3 : index
    %c0_62 = arith.constant 0 : index
    %68 = vector.load %arg5[%c3_61, %c0_62] : memref<6x64xf32, #tpu.memory_space<vmem>>, vector<1x64xf32>
    %69 = vector.broadcast %67 : vector<1x64xf32> to vector<128x64xf32>
    %70 = arith.mulf %66, %69 : vector<128x64xf32>
    %71 = vector.broadcast %68 : vector<1x64xf32> to vector<128x64xf32>
    %72 = arith.addf %70, %71 : vector<128x64xf32>
    %cst_63 = arith.constant 0.000000e+00 : f32
    %73 = vector.broadcast %cst_63 : f32 to vector<128x64xf32>
    %74 = arith.maximumf %72, %73 : vector<128x64xf32>
    %cst_64 = arith.constant 0.000000e+00 : bf16
    %75 = vector.broadcast %cst_64 : bf16 to vector<24x64xbf16>
    %c0_65 = arith.constant 0 : index
    %c0_66 = arith.constant 0 : index
    %76 = vector.load %arg9[%c0_65, %c0_66] : memref<168x64xbf16, #tpu.memory_space<vmem>>, vector<24x64xbf16>
    tpu.vector_store %arg9[%c0_65, %c0_66], %75 {strides = array<i32>} : memref<168x64xbf16, #tpu.memory_space<vmem>>, vector<24x64xbf16>,
    %cst_67 = arith.constant 0.000000e+00 : bf16
    %77 = vector.broadcast %cst_67 : bf16 to vector<24x64xbf16>
    %c144_68 = arith.constant 144 : index
    %c0_69 = arith.constant 0 : index
    %78 = vector.load %arg9[%c144_68, %c0_69] : memref<168x64xbf16, #tpu.memory_space<vmem>>, vector<24x64xbf16>
    tpu.vector_store %arg9[%c144_68, %c0_69], %77 {strides = array<i32>} : memref<168x64xbf16, #tpu.memory_space<vmem>>, vector<24x64xbf16>,
    %79 = vector.broadcast %0 : vector<128x1xf32> to vector<128x64xf32>
    %80 = arith.mulf %74, %79 : vector<128x64xf32>
    %81 = arith.truncf %80 : vector<128x64xf32> to vector<128x64xbf16>
    %c17_70 = arith.constant 17 : index
    %c0_71 = arith.constant 0 : index
    %82 = vector.load %arg9[%c17_70, %c0_71] : memref<168x64xbf16, #tpu.memory_space<vmem>>, vector<128x64xbf16>
    tpu.vector_store %arg9[%c17_70, %c0_71], %81 {strides = array<i32>} : memref<168x64xbf16, #tpu.memory_space<vmem>>, vector<128x64xbf16>,
    %cst_72 = arith.constant 0.000000e+00 : f32
    %83 = vector.broadcast %cst_72 : f32 to vector<128x64xf32>
    %c0_73 = arith.constant 0 : index
    %c0_74 = arith.constant 0 : index
    %84 = vector.load %arg9[%c0_73, %c0_74] : memref<168x64xbf16, #tpu.memory_space<vmem>>, vector<128x64xbf16>
    %c0_75 = arith.constant 0 : index
    %c0_76 = arith.constant 0 : index
    %c0_77 = arith.constant 0 : index
    %85 = vector.load %arg4[%c0_75, %c0_76, %c0_77] : memref<9x64x64xbf16, #tpu.memory_space<vmem>>, vector<1x64x64xbf16>
    %86 = vector.shape_cast %85 : vector<1x64x64xbf16> to vector<64x64xbf16>
    %cst_78 = arith.constant dense<0.000000e+00> : vector<128x64xf32>
    %87 = tpu.matmul %84, %86, %cst_78 {dimension_numbers = #tpu.dot_dimension_numbers<[1], [0], [0], [1], [0, 0, 1, 1], [], []>} : vector<128x64xbf16>, vector<64x64xbf16>, vector<128x64xf32> -> vector<128x64xf32>
    %88 = arith.addf %83, %87 : vector<128x64xf32>
    %c1_79 = arith.constant 1 : index
    %c0_80 = arith.constant 0 : index
    %89 = vector.load %arg9[%c1_79, %c0_80] : memref<168x64xbf16, #tpu.memory_space<vmem>>, vector<128x64xbf16>
    %c1_81 = arith.constant 1 : index
    %c0_82 = arith.constant 0 : index
    %c0_83 = arith.constant 0 : index
    %90 = vector.load %arg4[%c1_81, %c0_82, %c0_83] : memref<9x64x64xbf16, #tpu.memory_space<vmem>>, vector<1x64x64xbf16>
    %91 = vector.shape_cast %90 : vector<1x64x64xbf16> to vector<64x64xbf16>
    %cst_84 = arith.constant dense<0.000000e+00> : vector<128x64xf32>
    %92 = tpu.matmul %89, %91, %cst_84 {dimension_numbers = #tpu.dot_dimension_numbers<[1], [0], [0], [1], [0, 0, 1, 1], [], []>} : vector<128x64xbf16>, vector<64x64xbf16>, vector<128x64xf32> -> vector<128x64xf32>
    %93 = arith.addf %88, %92 : vector<128x64xf32>
    %c2_85 = arith.constant 2 : index
    %c0_86 = arith.constant 0 : index
    %94 = vector.load %arg9[%c2_85, %c0_86] : memref<168x64xbf16, #tpu.memory_space<vmem>>, vector<128x64xbf16>
    %c2_87 = arith.constant 2 : index
    %c0_88 = arith.constant 0 : index
    %c0_89 = arith.constant 0 : index
    %95 = vector.load %arg4[%c2_87, %c0_88, %c0_89] : memref<9x64x64xbf16, #tpu.memory_space<vmem>>, vector<1x64x64xbf16>
    %96 = vector.shape_cast %95 : vector<1x64x64xbf16> to vector<64x64xbf16>
    %cst_90 = arith.constant dense<0.000000e+00> : vector<128x64xf32>
    %97 = tpu.matmul %94, %96, %cst_90 {dimension_numbers = #tpu.dot_dimension_numbers<[1], [0], [0], [1], [0, 0, 1, 1], [], []>} : vector<128x64xbf16>, vector<64x64xbf16>, vector<128x64xf32> -> vector<128x64xf32>
    %98 = arith.addf %93, %97 : vector<128x64xf32>
    %c16_91 = arith.constant 16 : index
    %c0_92 = arith.constant 0 : index
    %99 = vector.load %arg9[%c16_91, %c0_92] : memref<168x64xbf16, #tpu.memory_space<vmem>>, vector<128x64xbf16>
    %c3_93 = arith.constant 3 : index
    %c0_94 = arith.constant 0 : index
    %c0_95 = arith.constant 0 : index
    %100 = vector.load %arg4[%c3_93, %c0_94, %c0_95] : memref<9x64x64xbf16, #tpu.memory_space<vmem>>, vector<1x64x64xbf16>
    %101 = vector.shape_cast %100 : vector<1x64x64xbf16> to vector<64x64xbf16>
    %cst_96 = arith.constant dense<0.000000e+00> : vector<128x64xf32>
    %102 = tpu.matmul %99, %101, %cst_96 {dimension_numbers = #tpu.dot_dimension_numbers<[1], [0], [0], [1], [0, 0, 1, 1], [], []>} : vector<128x64xbf16>, vector<64x64xbf16>, vector<128x64xf32> -> vector<128x64xf32>
    %103 = arith.addf %98, %102 : vector<128x64xf32>
    %c17_97 = arith.constant 17 : index
    %c0_98 = arith.constant 0 : index
    %104 = vector.load %arg9[%c17_97, %c0_98] : memref<168x64xbf16, #tpu.memory_space<vmem>>, vector<128x64xbf16>
    %c4_99 = arith.constant 4 : index
    %c0_100 = arith.constant 0 : index
    %c0_101 = arith.constant 0 : index
    %105 = vector.load %arg4[%c4_99, %c0_100, %c0_101] : memref<9x64x64xbf16, #tpu.memory_space<vmem>>, vector<1x64x64xbf16>
    %106 = vector.shape_cast %105 : vector<1x64x64xbf16> to vector<64x64xbf16>
    %cst_102 = arith.constant dense<0.000000e+00> : vector<128x64xf32>
    %107 = tpu.matmul %104, %106, %cst_102 {dimension_numbers = #tpu.dot_dimension_numbers<[1], [0], [0], [1], [0, 0, 1, 1], [], []>} : vector<128x64xbf16>, vector<64x64xbf16>, vector<128x64xf32> -> vector<128x64xf32>
    %108 = arith.addf %103, %107 : vector<128x64xf32>
    %c18_103 = arith.constant 18 : index
    %c0_104 = arith.constant 0 : index
    %109 = vector.load %arg9[%c18_103, %c0_104] : memref<168x64xbf16, #tpu.memory_space<vmem>>, vector<128x64xbf16>
    %c5_105 = arith.constant 5 : index
    %c0_106 = arith.constant 0 : index
    %c0_107 = arith.constant 0 : index
    %110 = vector.load %arg4[%c5_105, %c0_106, %c0_107] : memref<9x64x64xbf16, #tpu.memory_space<vmem>>, vector<1x64x64xbf16>
    %111 = vector.shape_cast %110 : vector<1x64x64xbf16> to vector<64x64xbf16>
    %cst_108 = arith.constant dense<0.000000e+00> : vector<128x64xf32>
    %112 = tpu.matmul %109, %111, %cst_108 {dimension_numbers = #tpu.dot_dimension_numbers<[1], [0], [0], [1], [0, 0, 1, 1], [], []>} : vector<128x64xbf16>, vector<64x64xbf16>, vector<128x64xf32> -> vector<128x64xf32>
    %113 = arith.addf %108, %112 : vector<128x64xf32>
    %c32_109 = arith.constant 32 : index
    %c0_110 = arith.constant 0 : index
    %114 = vector.load %arg9[%c32_109, %c0_110] : memref<168x64xbf16, #tpu.memory_space<vmem>>, vector<128x64xbf16>
    %c6_111 = arith.constant 6 : index
    %c0_112 = arith.constant 0 : index
    %c0_113 = arith.constant 0 : index
    %115 = vector.load %arg4[%c6_111, %c0_112, %c0_113] : memref<9x64x64xbf16, #tpu.memory_space<vmem>>, vector<1x64x64xbf16>
    %116 = vector.shape_cast %115 : vector<1x64x64xbf16> to vector<64x64xbf16>
    %cst_114 = arith.constant dense<0.000000e+00> : vector<128x64xf32>
    %117 = tpu.matmul %114, %116, %cst_114 {dimension_numbers = #tpu.dot_dimension_numbers<[1], [0], [0], [1], [0, 0, 1, 1], [], []>} : vector<128x64xbf16>, vector<64x64xbf16>, vector<128x64xf32> -> vector<128x64xf32>
    %118 = arith.addf %113, %117 : vector<128x64xf32>
    %c33_115 = arith.constant 33 : index
    %c0_116 = arith.constant 0 : index
    %119 = vector.load %arg9[%c33_115, %c0_116] : memref<168x64xbf16, #tpu.memory_space<vmem>>, vector<128x64xbf16>
    %c7_117 = arith.constant 7 : index
    %c0_118 = arith.constant 0 : index
    %c0_119 = arith.constant 0 : index
    %120 = vector.load %arg4[%c7_117, %c0_118, %c0_119] : memref<9x64x64xbf16, #tpu.memory_space<vmem>>, vector<1x64x64xbf16>
    %121 = vector.shape_cast %120 : vector<1x64x64xbf16> to vector<64x64xbf16>
    %cst_120 = arith.constant dense<0.000000e+00> : vector<128x64xf32>
    %122 = tpu.matmul %119, %121, %cst_120 {dimension_numbers = #tpu.dot_dimension_numbers<[1], [0], [0], [1], [0, 0, 1, 1], [], []>} : vector<128x64xbf16>, vector<64x64xbf16>, vector<128x64xf32> -> vector<128x64xf32>
    %123 = arith.addf %118, %122 : vector<128x64xf32>
    %c34_121 = arith.constant 34 : index
    %c0_122 = arith.constant 0 : index
    %124 = vector.load %arg9[%c34_121, %c0_122] : memref<168x64xbf16, #tpu.memory_space<vmem>>, vector<128x64xbf16>
    %c8_123 = arith.constant 8 : index
    %c0_124 = arith.constant 0 : index
    %c0_125 = arith.constant 0 : index
    %125 = vector.load %arg4[%c8_123, %c0_124, %c0_125] : memref<9x64x64xbf16, #tpu.memory_space<vmem>>, vector<1x64x64xbf16>
    %126 = vector.shape_cast %125 : vector<1x64x64xbf16> to vector<64x64xbf16>
    %cst_126 = arith.constant dense<0.000000e+00> : vector<128x64xf32>
    %127 = tpu.matmul %124, %126, %cst_126 {dimension_numbers = #tpu.dot_dimension_numbers<[1], [0], [0], [1], [0, 0, 1, 1], [], []>} : vector<128x64xbf16>, vector<64x64xbf16>, vector<128x64xf32> -> vector<128x64xf32>
    %128 = arith.addf %123, %127 : vector<128x64xf32>
    %c4_127 = arith.constant 4 : index
    %c0_128 = arith.constant 0 : index
    %129 = vector.load %arg5[%c4_127, %c0_128] : memref<6x64xf32, #tpu.memory_space<vmem>>, vector<1x64xf32>
    %c5_129 = arith.constant 5 : index
    %c0_130 = arith.constant 0 : index
    %130 = vector.load %arg5[%c5_129, %c0_130] : memref<6x64xf32, #tpu.memory_space<vmem>>, vector<1x64xf32>
    %131 = vector.broadcast %129 : vector<1x64xf32> to vector<128x64xf32>
    %132 = arith.mulf %128, %131 : vector<128x64xf32>
    %133 = vector.broadcast %130 : vector<1x64xf32> to vector<128x64xf32>
    %134 = arith.addf %132, %133 : vector<128x64xf32>
    %cst_131 = arith.constant 0.000000e+00 : f32
    %135 = vector.broadcast %cst_131 : f32 to vector<128x64xf32>
    %136 = arith.maximumf %134, %135 : vector<128x64xf32>
    %137 = vector.extract_strided_slice %136 {offsets = [0, 0], sizes = [8, 64], strides = [1, 1]} : vector<128x64xf32> to vector<8x64xf32>
    %c0_132 = arith.constant 0 : index
    %c0_133 = arith.constant 0 : index
    %c0_134 = arith.constant 0 : index
    %c0_135 = arith.constant 0 : index
    %138 = vector.load %arg7[%c0_132, %c0_133, %c0_134, %c0_135] : memref<1x8x8x64xf32, #tpu.memory_space<vmem>>, vector<1x1x8x64xf32>
    %139 = vector.shape_cast %138 : vector<1x1x8x64xf32> to vector<8x64xf32>
    %140 = vector.shape_cast %137 : vector<8x64xf32> to vector<1x1x8x64xf32>
    tpu.vector_store %arg7[%c0_132, %c0_133, %c0_134, %c0_135], %140 {strides = array<i32>} : memref<1x8x8x64xf32, #tpu.memory_space<vmem>>, vector<1x1x8x64xf32>,
    %141 = vector.extract_strided_slice %136 {offsets = [16, 0], sizes = [8, 64], strides = [1, 1]} : vector<128x64xf32> to vector<8x64xf32>
    %c0_136 = arith.constant 0 : index
    %c1_137 = arith.constant 1 : index
    %c0_138 = arith.constant 0 : index
    %c0_139 = arith.constant 0 : index
    %142 = vector.load %arg7[%c0_136, %c1_137, %c0_138, %c0_139] : memref<1x8x8x64xf32, #tpu.memory_space<vmem>>, vector<1x1x8x64xf32>
    %143 = vector.shape_cast %142 : vector<1x1x8x64xf32> to vector<8x64xf32>
    %144 = vector.shape_cast %141 : vector<8x64xf32> to vector<1x1x8x64xf32>
    tpu.vector_store %arg7[%c0_136, %c1_137, %c0_138, %c0_139], %144 {strides = array<i32>} : memref<1x8x8x64xf32, #tpu.memory_space<vmem>>, vector<1x1x8x64xf32>,
    %145 = vector.extract_strided_slice %136 {offsets = [32, 0], sizes = [8, 64], strides = [1, 1]} : vector<128x64xf32> to vector<8x64xf32>
    %c0_140 = arith.constant 0 : index
    %c2_141 = arith.constant 2 : index
    %c0_142 = arith.constant 0 : index
    %c0_143 = arith.constant 0 : index
    %146 = vector.load %arg7[%c0_140, %c2_141, %c0_142, %c0_143] : memref<1x8x8x64xf32, #tpu.memory_space<vmem>>, vector<1x1x8x64xf32>
    %147 = vector.shape_cast %146 : vector<1x1x8x64xf32> to vector<8x64xf32>
    %148 = vector.shape_cast %145 : vector<8x64xf32> to vector<1x1x8x64xf32>
    tpu.vector_store %arg7[%c0_140, %c2_141, %c0_142, %c0_143], %148 {strides = array<i32>} : memref<1x8x8x64xf32, #tpu.memory_space<vmem>>, vector<1x1x8x64xf32>,
    %149 = vector.extract_strided_slice %136 {offsets = [48, 0], sizes = [8, 64], strides = [1, 1]} : vector<128x64xf32> to vector<8x64xf32>
    %c0_144 = arith.constant 0 : index
    %c3_145 = arith.constant 3 : index
    %c0_146 = arith.constant 0 : index
    %c0_147 = arith.constant 0 : index
    %150 = vector.load %arg7[%c0_144, %c3_145, %c0_146, %c0_147] : memref<1x8x8x64xf32, #tpu.memory_space<vmem>>, vector<1x1x8x64xf32>
    %151 = vector.shape_cast %150 : vector<1x1x8x64xf32> to vector<8x64xf32>
    %152 = vector.shape_cast %149 : vector<8x64xf32> to vector<1x1x8x64xf32>
    tpu.vector_store %arg7[%c0_144, %c3_145, %c0_146, %c0_147], %152 {strides = array<i32>} : memref<1x8x8x64xf32, #tpu.memory_space<vmem>>, vector<1x1x8x64xf32>,
    %153 = vector.extract_strided_slice %136 {offsets = [64, 0], sizes = [8, 64], strides = [1, 1]} : vector<128x64xf32> to vector<8x64xf32>
    %c0_148 = arith.constant 0 : index
    %c4_149 = arith.constant 4 : index
    %c0_150 = arith.constant 0 : index
    %c0_151 = arith.constant 0 : index
    %154 = vector.load %arg7[%c0_148, %c4_149, %c0_150, %c0_151] : memref<1x8x8x64xf32, #tpu.memory_space<vmem>>, vector<1x1x8x64xf32>
    %155 = vector.shape_cast %154 : vector<1x1x8x64xf32> to vector<8x64xf32>
    %156 = vector.shape_cast %153 : vector<8x64xf32> to vector<1x1x8x64xf32>
    tpu.vector_store %arg7[%c0_148, %c4_149, %c0_150, %c0_151], %156 {strides = array<i32>} : memref<1x8x8x64xf32, #tpu.memory_space<vmem>>, vector<1x1x8x64xf32>,
    %157 = vector.extract_strided_slice %136 {offsets = [80, 0], sizes = [8, 64], strides = [1, 1]} : vector<128x64xf32> to vector<8x64xf32>
    %c0_152 = arith.constant 0 : index
    %c5_153 = arith.constant 5 : index
    %c0_154 = arith.constant 0 : index
    %c0_155 = arith.constant 0 : index
    %158 = vector.load %arg7[%c0_152, %c5_153, %c0_154, %c0_155] : memref<1x8x8x64xf32, #tpu.memory_space<vmem>>, vector<1x1x8x64xf32>
    %159 = vector.shape_cast %158 : vector<1x1x8x64xf32> to vector<8x64xf32>
    %160 = vector.shape_cast %157 : vector<8x64xf32> to vector<1x1x8x64xf32>
    tpu.vector_store %arg7[%c0_152, %c5_153, %c0_154, %c0_155], %160 {strides = array<i32>} : memref<1x8x8x64xf32, #tpu.memory_space<vmem>>, vector<1x1x8x64xf32>,
    %161 = vector.extract_strided_slice %136 {offsets = [96, 0], sizes = [8, 64], strides = [1, 1]} : vector<128x64xf32> to vector<8x64xf32>
    %c0_156 = arith.constant 0 : index
    %c6_157 = arith.constant 6 : index
    %c0_158 = arith.constant 0 : index
    %c0_159 = arith.constant 0 : index
    %162 = vector.load %arg7[%c0_156, %c6_157, %c0_158, %c0_159] : memref<1x8x8x64xf32, #tpu.memory_space<vmem>>, vector<1x1x8x64xf32>
    %163 = vector.shape_cast %162 : vector<1x1x8x64xf32> to vector<8x64xf32>
    %164 = vector.shape_cast %161 : vector<8x64xf32> to vector<1x1x8x64xf32>
    tpu.vector_store %arg7[%c0_156, %c6_157, %c0_158, %c0_159], %164 {strides = array<i32>} : memref<1x8x8x64xf32, #tpu.memory_space<vmem>>, vector<1x1x8x64xf32>,
    %165 = vector.extract_strided_slice %136 {offsets = [112, 0], sizes = [8, 64], strides = [1, 1]} : vector<128x64xf32> to vector<8x64xf32>
    %c0_160 = arith.constant 0 : index
    %c7_161 = arith.constant 7 : index
    %c0_162 = arith.constant 0 : index
    %c0_163 = arith.constant 0 : index
    %166 = vector.load %arg7[%c0_160, %c7_161, %c0_162, %c0_163] : memref<1x8x8x64xf32, #tpu.memory_space<vmem>>, vector<1x1x8x64xf32>
    %167 = vector.shape_cast %166 : vector<1x1x8x64xf32> to vector<8x64xf32>
    %168 = vector.shape_cast %165 : vector<8x64xf32> to vector<1x1x8x64xf32>
    tpu.vector_store %arg7[%c0_160, %c7_161, %c0_162, %c0_163], %168 {strides = array<i32>} : memref<1x8x8x64xf32, #tpu.memory_space<vmem>>, vector<1x1x8x64xf32>,
    return
  }
  func.func @transform_0(%arg0: i32) -> (i32, i32, i32) {
    %c0_i32 = arith.constant 0 : i32
    %c0_i32_0 = arith.constant 0 : i32
    %c0_i32_1 = arith.constant 0 : i32
    return %arg0, %c0_i32, %c0_i32_0 : i32, i32, i32
  }
  func.func @transform_1(%arg0: i32) -> (i32, i32) {
    %c0_i32 = arith.constant 0 : i32
    %c0_i32_0 = arith.constant 0 : i32
    %c0_i32_1 = arith.constant 0 : i32
    return %c0_i32, %c0_i32_0 : i32, i32
  }
  func.func @transform_2(%arg0: i32) -> (i32, i32, i32) {
    %c0_i32 = arith.constant 0 : i32
    %c0_i32_0 = arith.constant 0 : i32
    %c0_i32_1 = arith.constant 0 : i32
    %c0_i32_2 = arith.constant 0 : i32
    return %c0_i32, %c0_i32_0, %c0_i32_1 : i32, i32, i32
  }
  func.func @transform_3(%arg0: i32) -> (i32, i32, i32) {
    %c0_i32 = arith.constant 0 : i32
    %c0_i32_0 = arith.constant 0 : i32
    %c0_i32_1 = arith.constant 0 : i32
    %c0_i32_2 = arith.constant 0 : i32
    return %c0_i32, %c0_i32_0, %c0_i32_1 : i32, i32, i32
  }
  func.func @transform_4(%arg0: i32) -> (i32, i32) {
    %c0_i32 = arith.constant 0 : i32
    %c0_i32_0 = arith.constant 0 : i32
    %c0_i32_1 = arith.constant 0 : i32
    return %c0_i32, %c0_i32_0 : i32, i32
  }
  func.func @transform_5(%arg0: i32) -> (i32, i32) {
    %c0_i32 = arith.constant 0 : i32
    %c0_i32_0 = arith.constant 0 : i32
    %c0_i32_1 = arith.constant 0 : i32
    return %c0_i32, %c0_i32_0 : i32, i32
  }
  func.func @transform_6(%arg0: i32) -> (i32, i32, i32, i32) {
    %c0_i32 = arith.constant 0 : i32
    %c0_i32_0 = arith.constant 0 : i32
    %c0_i32_1 = arith.constant 0 : i32
    %c0_i32_2 = arith.constant 0 : i32
    return %arg0, %c0_i32, %c0_i32_0, %c0_i32_1 : i32, i32, i32, i32
  }
}

</mosaic_0001>

<llo_original>
// kernel: first_conv_forward.1
$region0: #{first_conv_forward.1}
  #allocation0 [shape = 'u32[]', space=smem, size = 0x4, offset = 0x4, fixed_abs, tag = 'smem constant byte address 0x4 - core index']
  #allocation1 [shape = 'u32[72,128]{1,0:T(1,128)}', space=vmem, size = 0x9000, scoped, tag = 'internal scratch']
  #allocation2 [shape = 'bf16[168,64]{1,0:T(8,128)(2,1)}', space=vmem, size = 0xa800, scoped, tag = 'scratch operand']
  #allocation3 [shape = 'bf16[168,64]{1,0:T(8,128)(2,1)}', space=vmem, size = 0xa800, scoped, tag = 'scratch operand']
  %s0 = inlined_call_operand.vmem [shape: bf16[2,128,128], index: 0, kind: input, shape index: {}]
  %s1 = inlined_call_operand.vmem [shape: bf16[128,64], index: 1, kind: input, shape index: {}]
  %s2 = inlined_call_operand.vmem [shape: bf16[9,64,64], index: 2, kind: input, shape index: {}]
  %s3 = inlined_call_operand.vmem [shape: bf16[9,64,64], index: 3, kind: input, shape index: {}]
  %s4 = inlined_call_operand.vmem [shape: f32[6,64], index: 4, kind: input, shape index: {}]
  %s5 = inlined_call_operand.vmem [shape: f32[128,1], index: 5, kind: input, shape index: {}]
  %s6 = inlined_call_operand.hbm [shape: f32[2,8,8,64], index: 6, kind: output, shape index: {}]
  %s7 = sld [smem:[#allocation0]]
  $region57: #{first_conv_forward.1} parent=0
    _
  %s9 = ssub.s32 1, %s7
  %s10 = scalar_select 0, %s9, %s7
  $region1: #{first_conv_forward.1} parent=0
    #allocation4 [shape = 'u8[65536]{0}', space=vmem, size = 0x10000, scoped, tag = 'output window, operand 0']
    #allocation5 [shape = 's32[2]{0}', space=sflag, size = 0x8, scoped, tag = 'scoped memory for first_conv_forward.1']
    %11 = vsyncpa [#allocation5], 0
    %s12 = scalar_lea.sflag [#allocation5], 1
    %13 = vsyncpa %s12, 0
    loop: start=0, step=1, limit=4
    $region2: #{first_conv_forward.1} parent=1 // loop_pre_header
      _
    $region3: #{first_conv_forward.1} parent=1 // loop_header
      %s15 = sphi 0, %s19
      %p16 = scmp.ge.s32.totalorder %s15, 4
      %s25 = sphi 0, %s27
      %s28 = sphi 0, %s25
      %s29 = sphi 0, %s28
      %s45 = sphi 0, %s29
      %s49 = sphi 0, %s49
      %s51 = sphi 0, %s49
      %s52 = sphi 0, %s51
      %s66 = sphi 0, %s52
      %s70 = sphi 0, %s70
      %s72 = sphi 0, %s70
      %s73 = sphi 0, %s72
      %s87 = sphi 0, %s73
      %s91 = sphi 0, %s91
      %s93 = sphi 0, %s91
      %s94 = sphi 0, %s93
      %s108 = sphi 0, %s94
      %s112 = sphi 0, %s112
      %s114 = sphi 0, %s112
      %s115 = sphi 0, %s114
      %s129 = sphi 0, %s115
      %s133 = sphi 0, %s133
      %s135 = sphi 0, %s133
      %s136 = sphi 0, %s135
      %s150 = sphi 0, %s136
      %s156 = sphi 0, %s158
      %s159 = sphi 0, %s156
      %s160 = sphi 0, %s159
      %s176 = sphi 0, %s160
    $region4: #{first_conv_forward.1} parent=1 // loop_header_branch
      %18 = sbr.rel (%p16) target = $region8
    $region5: #{first_conv_forward.1} parent=1 // loop_body
      %s20 = ssub.s32 %s15, 1
      %s21 = ssub.s32 %s15, 2
      %s22 = sadd.s32 %s15, 1
      %s23 = ssub.s32 %s15, %s22
      %p24 = scmp.eq.s32.totalorder %s23, 0
      %s26 = sadd.s32 %s25, 1
      %s27 = scalar_select %p24, %s25, %s26
      %p30 = pneg %p24
      %p31 = scmp.eq.s32.totalorder %s15, 1
      %p32 = por %p30, %p31
      %p33 = scmp.ne.s32.totalorder %s25, %s28
      %p34 = scmp.eq.s32.totalorder %s15, 0
      %p35 = por %p33, %p34
      %p36 = scmp.ne.s32.totalorder %s25, %s28
      %p37 = scmp.eq.s32.totalorder %s20, 1
      %p38 = por %p36, %p37
      %p39 = scmp.ne.s32.totalorder %s28, %s29
      %p40 = scmp.eq.s32.totalorder %s20, 0
      %p41 = por %p39, %p40
      %p42 = scmp.ne.s32.totalorder %s28, %s29
      %p43 = scmp.eq.s32.totalorder %s21, 1
      %p44 = por %p42, %p43
      %p46 = scmp.ne.s32.totalorder %s29, %s45
      %p47 = scmp.eq.s32.totalorder %s21, 0
      %p48 = por %p46, %p47
      %s50 = sadd.s32 %s49, 1
      %p53 = scmp.eq.s32.totalorder %s15, 1
      %p54 = scmp.ne.s32.totalorder %s49, %s51
      %p55 = scmp.eq.s32.totalorder %s15, 0
      %p56 = por %p54, %p55
      %p57 = scmp.ne.s32.totalorder %s49, %s51
      %p58 = scmp.eq.s32.totalorder %s20, 1
      %p59 = por %p57, %p58
      %p60 = scmp.ne.s32.totalorder %s51, %s52
      %p61 = scmp.eq.s32.totalorder %s20, 0
      %p62 = por %p60, %p61
      %p63 = scmp.ne.s32.totalorder %s51, %s52
      %p64 = scmp.eq.s32.totalorder %s21, 1
      %p65 = por %p63, %p64
      %p67 = scmp.ne.s32.totalorder %s52, %s66
      %p68 = scmp.eq.s32.totalorder %s21, 0
      %p69 = por %p67, %p68
      %s71 = sadd.s32 %s70, 1
      %p74 = scmp.eq.s32.totalorder %s15, 1
      %p75 = scmp.ne.s32.totalorder %s70, %s72
      %p76 = scmp.eq.s32.totalorder %s15, 0
      %p77 = por %p75, %p76
      %p78 = scmp.ne.s32.totalorder %s70, %s72
      %p79 = scmp.eq.s32.totalorder %s20, 1
      %p80 = por %p78, %p79
      %p81 = scmp.ne.s32.totalorder %s72, %s73
      %p82 = scmp.eq.s32.totalorder %s20, 0
      %p83 = por %p81, %p82
      %p84 = scmp.ne.s32.totalorder %s72, %s73
      %p85 = scmp.eq.s32.totalorder %s21, 1
      %p86 = por %p84, %p85
      %p88 = scmp.ne.s32.totalorder %s73, %s87
      %p89 = scmp.eq.s32.totalorder %s21, 0
      %p90 = por %p88, %p89
      %s92 = sadd.s32 %s91, 1
      %p95 = scmp.eq.s32.totalorder %s15, 1
      %p96 = scmp.ne.s32.totalorder %s91, %s93
      %p97 = scmp.eq.s32.totalorder %s15, 0
      %p98 = por %p96, %p97
      %p99 = scmp.ne.s32.totalorder %s91, %s93
      %p100 = scmp.eq.s32.totalorder %s20, 1
      %p101 = por %p99, %p100
      %p102 = scmp.ne.s32.totalorder %s93, %s94
      %p103 = scmp.eq.s32.totalorder %s20, 0
      %p104 = por %p102, %p103
      %p105 = scmp.ne.s32.totalorder %s93, %s94
      %p106 = scmp.eq.s32.totalorder %s21, 1
      %p107 = por %p105, %p106
      %p109 = scmp.ne.s32.totalorder %s94, %s108
      %p110 = scmp.eq.s32.totalorder %s21, 0
      %p111 = por %p109, %p110
      %s113 = sadd.s32 %s112, 1
      %p116 = scmp.eq.s32.totalorder %s15, 1
      %p117 = scmp.ne.s32.totalorder %s112, %s114
      %p118 = scmp.eq.s32.totalorder %s15, 0
      %p119 = por %p117, %p118
      %p120 = scmp.ne.s32.totalorder %s112, %s114
      %p121 = scmp.eq.s32.totalorder %s20, 1
      %p122 = por %p120, %p121
      %p123 = scmp.ne.s32.totalorder %s114, %s115
      %p124 = scmp.eq.s32.totalorder %s20, 0
      %p125 = por %p123, %p124
      %p126 = scmp.ne.s32.totalorder %s114, %s115
      %p127 = scmp.eq.s32.totalorder %s21, 1
      %p128 = por %p126, %p127
      %p130 = scmp.ne.s32.totalorder %s115, %s129
      %p131 = scmp.eq.s32.totalorder %s21, 0
      %p132 = por %p130, %p131
      %s134 = sadd.s32 %s133, 1
      %p137 = scmp.eq.s32.totalorder %s15, 1
      %p138 = scmp.ne.s32.totalorder %s133, %s135
      %p139 = scmp.eq.s32.totalorder %s15, 0
      %p140 = por %p138, %p139
      %p141 = scmp.ne.s32.totalorder %s133, %s135
      %p142 = scmp.eq.s32.totalorder %s20, 1
      %p143 = por %p141, %p142
      %p144 = scmp.ne.s32.totalorder %s135, %s136
      %p145 = scmp.eq.s32.totalorder %s20, 0
      %p146 = por %p144, %p145
      %p147 = scmp.ne.s32.totalorder %s135, %s136
      %p148 = scmp.eq.s32.totalorder %s21, 1
      %p149 = por %p147, %p148
      %p151 = scmp.ne.s32.totalorder %s136, %s150
      %p152 = scmp.eq.s32.totalorder %s21, 0
      %p153 = por %p151, %p152
      %s154 = ssub.s32 %s15, %s22
      %p155 = scmp.eq.s32.totalorder %s154, 0
      %s157 = sadd.s32 %s156, 1
      %s158 = scalar_select %p155, %s156, %s157
      %p161 = pneg %p155
      %p162 = scmp.eq.s32.totalorder %s15, 1
      %p163 = por %p161, %p162
      %p164 = scmp.ne.s32.totalorder %s156, %s159
      %p165 = scmp.eq.s32.totalorder %s15, 0
      %p166 = por %p164, %p165
      %p167 = scmp.ne.s32.totalorder %s156, %s159
      %p168 = scmp.eq.s32.totalorder %s20, 1
      %p169 = por %p167, %p168
      %p170 = scmp.ne.s32.totalorder %s159, %s160
      %p171 = scmp.eq.s32.totalorder %s20, 0
      %p172 = por %p170, %p171
      %p173 = scmp.ne.s32.totalorder %s159, %s160
      %p174 = scmp.eq.s32.totalorder %s21, 1
      %p175 = por %p173, %p174
      %p177 = scmp.ne.s32.totalorder %s160, %s176
      %p178 = scmp.eq.s32.totalorder %s21, 0
      %p179 = por %p177, %p178
      %p180 = scmp.le.s32.totalorder 1, %s15
      %p181 = scmp.lt.s32.totalorder %s15, 3
      %p182 = pnand %p180, %p181
      %p183 = pneg %p182
      // Predicated region
      $region9: #{first_conv_forward.1} parent=5 // pred_check
        _
      $region10: #{first_conv_forward.1} parent=5 // pred_check_branch
        %185 = sbr.rel (%p182) target = $region12
      $region11: #{first_conv_forward.1} parent=5 // pred_region
        %s186 = ssub.s32 %s15, 1
        // Predicated region
        $region13: #{first_conv_forward.1} parent=11 // pred_check
          %p187 = pneg %p62
        $region14: #{first_conv_forward.1} parent=11 // pred_check_branch
          %189 = sbr.rel (%p187) target = $region16
        $region15: #{first_conv_forward.1} parent=11 // pred_region
          _
        $region16: #{first_conv_forward.1} parent=11 // pred_fallthru
          _
        // Predicated region
        $region17: #{first_conv_forward.1} parent=11 // pred_check
          %p190 = pneg %p83
        $region18: #{first_conv_forward.1} parent=11 // pred_check_branch
          %192 = sbr.rel (%p190) target = $region20
        $region19: #{first_conv_forward.1} parent=11 // pred_region
          _
        $region20: #{first_conv_forward.1} parent=11 // pred_fallthru
          _
        // Predicated region
        $region21: #{first_conv_forward.1} parent=11 // pred_check
          %p193 = pneg %p104
        $region22: #{first_conv_forward.1} parent=11 // pred_check_branch
          %195 = sbr.rel (%p193) target = $region24
        $region23: #{first_conv_forward.1} parent=11 // pred_region
          _
        $region24: #{first_conv_forward.1} parent=11 // pred_fallthru
          _
        // Predicated region
        $region25: #{first_conv_forward.1} parent=11 // pred_check
          %p196 = pneg %p125
        $region26: #{first_conv_forward.1} parent=11 // pred_check_branch
          %198 = sbr.rel (%p196) target = $region28
        $region27: #{first_conv_forward.1} parent=11 // pred_region
          _
        $region28: #{first_conv_forward.1} parent=11 // pred_fallthru
          _
        // Predicated region
        $region29: #{first_conv_forward.1} parent=11 // pred_check
          %p199 = pneg %p146
        $region30: #{first_conv_forward.1} parent=11 // pred_check_branch
          %201 = sbr.rel (%p199) target = $region32
        $region31: #{first_conv_forward.1} parent=11 // pred_region
          _
        $region32: #{first_conv_forward.1} parent=11 // pred_fallthru
          _
      $region12: #{first_conv_forward.1} parent=5 // pred_fallthru
        _
      %p202 = scmp.lt.s32.totalorder %s15, 2
      // Predicated region
      $region33: #{first_conv_forward.1} parent=5 // pred_check
        %p203 = pneg %p202
      $region34: #{first_conv_forward.1} parent=5 // pred_check_branch
        %205 = sbr.rel (%p203) target = $region36
      $region35: #{first_conv_forward.1} parent=5 // pred_region
        // Predicated region
        $region37: #{first_conv_forward.1} parent=35 // pred_check
          %p206 = pneg %p35
        $region38: #{first_conv_forward.1} parent=35 // pred_check_branch
          %208 = sbr.rel (%p206) target = $region40
        $region39: #{first_conv_forward.1} parent=35 // pred_region
          %p209 = scmp.lt.s32.totalorder %s15, 1
          %s210 = scalar_select %p209, %s15, 1
          %s211 = smul.addr %s210, 16
          %s212 = smul.addr %s211, 4
          %s213 = scalar_lea.vmem %s0, %s212
        $region40: #{first_conv_forward.1} parent=35 // pred_fallthru
          _
      $region36: #{first_conv_forward.1} parent=5 // pred_fallthru
        _
      %p214 = scmp.le.s32.totalorder 1, %s15
      %p215 = scmp.lt.s32.totalorder %s15, 3
      %p216 = pnand %p214, %p215
      %p217 = pneg %p216
      // Predicated region
      $region41: #{first_conv_forward.1} parent=5 // pred_check
        _
      $region42: #{first_conv_forward.1} parent=5 // pred_check_branch
        %219 = sbr.rel (%p216) target = $region44
      $region43: #{first_conv_forward.1} parent=5 // pred_region
        %s220 = ssub.s32 %s15, 1
        %p221 = scmp.lt.s32.totalorder %s20, 1
        %s222 = scalar_select %p221, %s20, 1
        %s223 = smul.addr %s222, 16
        %s224 = smul.addr %s223, 4
        %s225 = scalar_lea.vmem %s0, %s224
        %p226 = pneg %p41
        %p227 = pneg %p38
        %p228 = pneg %p62
        %p229 = pneg %p59
        %p230 = pneg %p83
        %p231 = pneg %p80
        %p232 = pneg %p104
        %p233 = pneg %p101
        %p234 = pneg %p125
        %p235 = pneg %p122
        %p236 = pneg %p146
        %p237 = pneg %p143
        %p238 = pneg %p172
        %p239 = pneg %p169
        %s240 = sand.u32 %s159, 1
        %s241 = scalar_lea.sflag [#allocation5], %s240
        %s242 = sand.u32 %s159, 1
        %s243 = smul.addr %s242, 64
        %s244 = scalar_lea.vmem [#allocation4], %s243
        %p245 = scmp.lt.s32.totalorder %s20, 1
        %s246 = scalar_select %p245, %s20, 1
        %s247 = smul.addr %s246, 16
        %s248 = smul.addr %s247, 4
        %s249 = scalar_lea.vmem %s0, %s248
        %v251 = vld [vmem:[%s5] sm:$0xff]
        %v252 = vld [vmem:[%s5 + $0x8] sm:$0xff]
        %v253 = vld [vmem:[%s5 + $0x10] sm:$0xff]
        %v254 = vld [vmem:[%s5 + $0x18] sm:$0xff]
        %v255 = vld [vmem:[%s5 + $0x20] sm:$0xff]
        %v256 = vld [vmem:[%s5 + $0x28] sm:$0xff]
        %v257 = vld [vmem:[%s5 + $0x30] sm:$0xff]
        %v258 = vld [vmem:[%s5 + $0x38] sm:$0xff]
        %v259 = vld [vmem:[%s5 + $0x40] sm:$0xff]
        %v260 = vld [vmem:[%s5 + $0x48] sm:$0xff]
        %v261 = vld [vmem:[%s5 + $0x50] sm:$0xff]
        %v262 = vld [vmem:[%s5 + $0x58] sm:$0xff]
        %v263 = vld [vmem:[%s5 + $0x60] sm:$0xff]
        %v264 = vld [vmem:[%s5 + $0x68] sm:$0xff]
        %v265 = vld [vmem:[%s5 + $0x70] sm:$0xff]
        %v266 = vld [vmem:[%s5 + $0x78] sm:$0xff]
        %v267 = vld [vmem:[%s249] sm:$0xf]
        %v268 = vld [vmem:[%s249 + $0x4] sm:$0xf]
        %v269 = vld [vmem:[%s249 + $0x8] sm:$0xf]
        %v270 = vld [vmem:[%s249 + $0xc] sm:$0xf]
        %v271 = vld [vmem:[%s249 + $0x10] sm:$0xf]
        %v272 = vld [vmem:[%s249 + $0x14] sm:$0xf]
        %v273 = vld [vmem:[%s249 + $0x18] sm:$0xf]
        %v274 = vld [vmem:[%s249 + $0x1c] sm:$0xf]
        %v275 = vld [vmem:[%s249 + $0x20] sm:$0xf]
        %v276 = vld [vmem:[%s249 + $0x24] sm:$0xf]
        %v277 = vld [vmem:[%s249 + $0x28] sm:$0xf]
        %v278 = vld [vmem:[%s249 + $0x2c] sm:$0xf]
        %v279 = vld [vmem:[%s249 + $0x30] sm:$0xf]
        %v280 = vld [vmem:[%s249 + $0x34] sm:$0xf]
        %v281 = vld [vmem:[%s249 + $0x38] sm:$0xf]
        %v282 = vld [vmem:[%s249 + $0x3c] sm:$0xf]
        %v283 = vld [vmem:[%s1] sm:$0xf]
        %v284 = vld [vmem:[%s1 + $0x4] sm:$0xf]
        %v285 = vld [vmem:[%s1 + $0x8] sm:$0xf]
        %v286 = vld [vmem:[%s1 + $0xc] sm:$0xf]
        %v287 = vld [vmem:[%s1 + $0x10] sm:$0xf]
        %v288 = vld [vmem:[%s1 + $0x14] sm:$0xf]
        %v289 = vld [vmem:[%s1 + $0x18] sm:$0xf]
        %v290 = vld [vmem:[%s1 + $0x1c] sm:$0xf]
        %v291 = vld [vmem:[%s1 + $0x20] sm:$0xf]
        %v292 = vld [vmem:[%s1 + $0x24] sm:$0xf]
        %v293 = vld [vmem:[%s1 + $0x28] sm:$0xf]
        %v294 = vld [vmem:[%s1 + $0x2c] sm:$0xf]
        %v295 = vld [vmem:[%s1 + $0x30] sm:$0xf]
        %v296 = vld [vmem:[%s1 + $0x34] sm:$0xf]
        %v297 = vld [vmem:[%s1 + $0x38] sm:$0xf]
        %v298 = vld [vmem:[%s1 + $0x3c] sm:$0xf]
        %v315 = vunpack.c.l.b16 %v267
        %v316 = vunpack.c.l.b16 %v268
        %v317 = vunpack.c.l.b16 %v269
        %v318 = vunpack.c.l.b16 %v270
        %v319 = vunpack.c.l.b16 %v271
        %v320 = vunpack.c.l.b16 %v272
        %v321 = vunpack.c.l.b16 %v273
        %v322 = vunpack.c.l.b16 %v274
        %v323 = vunpack.c.l.b16 %v275
        %v324 = vunpack.c.l.b16 %v276
        %v325 = vunpack.c.l.b16 %v277
        %v326 = vunpack.c.l.b16 %v278
        %v327 = vunpack.c.l.b16 %v279
        %v328 = vunpack.c.l.b16 %v280
        %v329 = vunpack.c.l.b16 %v281
        %v330 = vunpack.c.l.b16 %v282
        %v331 = vpack.c.b16 %v316, %v315
        %v332 = vpack.c.b16 %v318, %v317
        %v333 = vpack.c.b16 %v320, %v319
        %v334 = vpack.c.b16 %v322, %v321
        %v335 = vpack.c.b16 %v324, %v323
        %v336 = vpack.c.b16 %v326, %v325
        %v337 = vpack.c.b16 %v328, %v327
        %v338 = vpack.c.b16 %v330, %v329
        %v363 = vunpack.c.l.b16 %v283
        %v364 = vunpack.c.l.b16 %v284
        %v365 = vunpack.c.l.b16 %v285
        %v366 = vunpack.c.l.b16 %v286
        %v367 = vunpack.c.l.b16 %v287
        %v368 = vunpack.c.l.b16 %v288
        %v369 = vunpack.c.l.b16 %v289
        %v370 = vunpack.c.l.b16 %v290
        %v371 = vunpack.c.l.b16 %v291
        %v372 = vunpack.c.l.b16 %v292
        %v373 = vunpack.c.l.b16 %v293
        %v374 = vunpack.c.l.b16 %v294
        %v375 = vunpack.c.l.b16 %v295
        %v376 = vunpack.c.l.b16 %v296
        %v377 = vunpack.c.l.b16 %v297
        %v378 = vunpack.c.l.b16 %v298
        %v379 = vpack.c.b16 %v364, %v363
        %v380 = vpack.c.b16 %v366, %v365
        %v381 = vpack.c.b16 %v368, %v367
        %v382 = vpack.c.b16 %v370, %v369
        %v383 = vpack.c.b16 %v372, %v371
        %v384 = vpack.c.b16 %v374, %v373
        %v385 = vpack.c.b16 %v376, %v375
        %v386 = vpack.c.b16 %v378, %v377
        %395 = vmatpush.bf16.msra.mxu0 %v386
        %396 = vmatpush.bf16.msra.mxu0 %v385
        %397 = vmatpush.bf16.msra.mxu0 %v384
        %398 = vmatpush.bf16.msra.mxu0 %v383
        %399 = vmatpush.bf16.msra.mxu0 %v382
        %400 = vmatpush.bf16.msra.mxu0 %v381
        %401 = vmatpush.bf16.msra.mxu0 %v380
        %402 = vmatpush.bf16.msra.mxu0 %v379
        %403 = vmatmul.bf16.gmra.mxu0 %v331
        %v404 = vpop.f32.mrf.mxu0
        %v405 = vadd.f32 0.0, %v404
        %v406 = vpop.f32.mrf.mxu0
        %v407 = vadd.f32 0.0, %v406
        %408 = vmatmul.bf16.gmra.mxu0 %v332
        %v409 = vpop.f32.mrf.mxu0
        %v410 = vadd.f32 0.0, %v409
        %v411 = vpop.f32.mrf.mxu0
        %v412 = vadd.f32 0.0, %v411
        %413 = vmatmul.bf16.gmra.mxu0 %v333
        %v414 = vpop.f32.mrf.mxu0
        %v415 = vadd.f32 0.0, %v414
        %v416 = vpop.f32.mrf.mxu0
        %v417 = vadd.f32 0.0, %v416
        %418 = vmatmul.bf16.gmra.mxu0 %v334
        %v419 = vpop.f32.mrf.mxu0
        %v420 = vadd.f32 0.0, %v419
        %v421 = vpop.f32.mrf.mxu0
        %v422 = vadd.f32 0.0, %v421
        %423 = vmatmul.bf16.gmra.mxu0 %v335
        %v424 = vpop.f32.mrf.mxu0
        %v425 = vadd.f32 0.0, %v424
        %v426 = vpop.f32.mrf.mxu0
        %v427 = vadd.f32 0.0, %v426
        %428 = vmatmul.bf16.gmra.mxu0 %v336
        %v429 = vpop.f32.mrf.mxu0
        %v430 = vadd.f32 0.0, %v429
        %v431 = vpop.f32.mrf.mxu0
        %v432 = vadd.f32 0.0, %v431
        %433 = vmatmul.bf16.gmra.mxu0 %v337
        %v434 = vpop.f32.mrf.mxu0
        %v435 = vadd.f32 0.0, %v434
        %v436 = vpop.f32.mrf.mxu0
        %v437 = vadd.f32 0.0, %v436
        %438 = vmatmul.bf16.gmra.mxu0 %v338
        %v439 = vpop.f32.mrf.mxu0
        %v440 = vadd.f32 0.0, %v439
        %v441 = vpop.f32.mrf.mxu0
        %v442 = vadd.f32 0.0, %v441
        %443 = vdwg.mxu0
        %v444 = vld [vmem:[%s4] sm:$0x1]
        %v445 = vld [vmem:[%s4 + $0x1] sm:$0x1]
        %v446 = vperm.slane %v444, 0
        %v447 = vmul.f32 %v405, %v446
        %v448 = vmul.f32 %v407, %v446
        %v449 = vmul.f32 %v410, %v446
        %v450 = vmul.f32 %v412, %v446
        %v451 = vmul.f32 %v415, %v446
        %v452 = vmul.f32 %v417, %v446
        %v453 = vmul.f32 %v420, %v446
        %v454 = vmul.f32 %v422, %v446
        %v455 = vmul.f32 %v425, %v446
        %v456 = vmul.f32 %v427, %v446
        %v457 = vmul.f32 %v430, %v446
        %v458 = vmul.f32 %v432, %v446
        %v459 = vmul.f32 %v435, %v446
        %v460 = vmul.f32 %v437, %v446
        %v461 = vmul.f32 %v440, %v446
        %v462 = vmul.f32 %v442, %v446
        %v463 = vperm.slane %v445, 0
        %v464 = vadd.f32 %v447, %v463
        %v465 = vadd.f32 %v448, %v463
        %v466 = vadd.f32 %v449, %v463
        %v467 = vadd.f32 %v450, %v463
        %v468 = vadd.f32 %v451, %v463
        %v469 = vadd.f32 %v452, %v463
        %v470 = vadd.f32 %v453, %v463
        %v471 = vadd.f32 %v454, %v463
        %v472 = vadd.f32 %v455, %v463
        %v473 = vadd.f32 %v456, %v463
        %v474 = vadd.f32 %v457, %v463
        %v475 = vadd.f32 %v458, %v463
        %v476 = vadd.f32 %v459, %v463
        %v477 = vadd.f32 %v460, %v463
        %v478 = vadd.f32 %v461, %v463
        %v479 = vadd.f32 %v462, %v463
        %v480 = vmax.f32 %v464, 0.0
        %v481 = vmax.f32 %v465, 0.0
        %v482 = vmax.f32 %v466, 0.0
        %v483 = vmax.f32 %v467, 0.0
        %v484 = vmax.f32 %v468, 0.0
        %v485 = vmax.f32 %v469, 0.0
        %v486 = vmax.f32 %v470, 0.0
        %v487 = vmax.f32 %v471, 0.0
        %v488 = vmax.f32 %v472, 0.0
        %v489 = vmax.f32 %v473, 0.0
        %v490 = vmax.f32 %v474, 0.0
        %v491 = vmax.f32 %v475, 0.0
        %v492 = vmax.f32 %v476, 0.0
        %v493 = vmax.f32 %v477, 0.0
        %v494 = vmax.f32 %v478, 0.0
        %v495 = vmax.f32 %v479, 0.0
        %vm496 = vcmask 519168
        %497 = vst.msk [vmem:[#allocation2] sm:$0xf] %vm496, 0
        %498 = vst.msk [vmem:[#allocation2 + $0x4] sm:$0xf] %vm496, 0
        %499 = vst.msk [vmem:[#allocation2 + $0x8] sm:$0xf] %vm496, 0
        %500 = vst.msk [vmem:[#allocation2 + $0x48] sm:$0xf] %vm496, 0
        %501 = vst.msk [vmem:[#allocation2 + $0x4c] sm:$0xf] %vm496, 0
        %502 = vst.msk [vmem:[#allocation2 + $0x50] sm:$0xf] %vm496, 0
        %504 = vset.pattern.permute.xlu0 0
        %505 = vperm.xlu0 %504, %v251
        %v506 = vpop.permute.xlu0 %505
        %509 = vset.pattern.permute.xlu0 0
        %510 = vperm.xlu0 %509, %v252
        %v511 = vpop.permute.xlu0 %510
        %514 = vset.pattern.permute.xlu0 0
        %515 = vperm.xlu0 %514, %v253
        %v516 = vpop.permute.xlu0 %515
        %519 = vset.pattern.permute.xlu0 0
        %520 = vperm.xlu0 %519, %v254
        %v521 = vpop.permute.xlu0 %520
        %524 = vset.pattern.permute.xlu0 0
        %525 = vperm.xlu0 %524, %v255
        %v526 = vpop.permute.xlu0 %525
        %529 = vset.pattern.permute.xlu0 0
        %530 = vperm.xlu0 %529, %v256
        %v531 = vpop.permute.xlu0 %530
        %534 = vset.pattern.permute.xlu0 0
        %535 = vperm.xlu0 %534, %v257
        %v536 = vpop.permute.xlu0 %535
        %539 = vset.pattern.permute.xlu0 0
        %540 = vperm.xlu0 %539, %v258
        %v541 = vpop.permute.xlu0 %540
        %544 = vset.pattern.permute.xlu0 0
        %545 = vperm.xlu0 %544, %v259
        %v546 = vpop.permute.xlu0 %545
        %549 = vset.pattern.permute.xlu0 0
        %550 = vperm.xlu0 %549, %v260
        %v551 = vpop.permute.xlu0 %550
        %554 = vset.pattern.permute.xlu0 0
        %555 = vperm.xlu0 %554, %v261
        %v556 = vpop.permute.xlu0 %555
        %559 = vset.pattern.permute.xlu0 0
        %560 = vperm.xlu0 %559, %v262
        %v561 = vpop.permute.xlu0 %560
        %564 = vset.pattern.permute.xlu0 0
        %565 = vperm.xlu0 %564, %v263
        %v566 = vpop.permute.xlu0 %565
        %569 = vset.pattern.permute.xlu0 0
        %570 = vperm.xlu0 %569, %v264
        %v571 = vpop.permute.xlu0 %570
        %574 = vset.pattern.permute.xlu0 0
        %575 = vperm.xlu0 %574, %v265
        %v576 = vpop.permute.xlu0 %575
        %579 = vset.pattern.permute.xlu0 0
        %580 = vperm.xlu0 %579, %v266
        %v581 = vpop.permute.xlu0 %580
        %v583 = vmul.f32 %v480, %v506
        %v584 = vmul.f32 %v481, %v511
        %v585 = vmul.f32 %v482, %v516
        %v586 = vmul.f32 %v483, %v521
        %v587 = vmul.f32 %v484, %v526
        %v588 = vmul.f32 %v485, %v531
        %v589 = vmul.f32 %v486, %v536
        %v590 = vmul.f32 %v487, %v541
        %v591 = vmul.f32 %v488, %v546
        %v592 = vmul.f32 %v489, %v551
        %v593 = vmul.f32 %v490, %v556
        %v594 = vmul.f32 %v491, %v561
        %v595 = vmul.f32 %v492, %v566
        %v596 = vmul.f32 %v493, %v571
        %v597 = vmul.f32 %v494, %v576
        %v598 = vmul.f32 %v495, %v581
        %v599 = vpack.c.bf16 %v583, %v583
        %v600 = vpack.c.bf16 %v584, %v584
        %v601 = vpack.c.bf16 %v585, %v585
        %v602 = vpack.c.bf16 %v586, %v586
        %v603 = vpack.c.bf16 %v587, %v587
        %v604 = vpack.c.bf16 %v588, %v588
        %v605 = vpack.c.bf16 %v589, %v589
        %v606 = vpack.c.bf16 %v590, %v590
        %v607 = vpack.c.bf16 %v591, %v591
        %v608 = vpack.c.bf16 %v592, %v592
        %v609 = vpack.c.bf16 %v593, %v593
        %v610 = vpack.c.bf16 %v594, %v594
        %v611 = vpack.c.bf16 %v595, %v595
        %v612 = vpack.c.bf16 %v596, %v596
        %v613 = vpack.c.bf16 %v597, %v597
        %v614 = vpack.c.bf16 %v598, %v598
        %vm615 = vsmask.f32 256
        %vm616 = vsmask.f32 4368
        %vm617 = vmor %vm615, %vm616
        %v619 = vshrl.u32 %v599, 16
        %v621 = vrot.slane %v619, 7
        %v622 = vshll.u32 %v599, 16
        %v624 = vor.u32 %v621, %v622
        %v625 = vrot.slane %v621, 4
        %v627 = vshrl.u32 %v600, 16
        %v629 = vrot.slane %v627, 7
        %v630 = vshll.u32 %v600, 16
        %v632 = vor.u32 %v629, %v630
        %v633 = vsel %vm617, %v625, %v632
        %v634 = vrot.slane %v629, 4
        %v636 = vshrl.u32 %v601, 16
        %v638 = vrot.slane %v636, 7
        %v639 = vshll.u32 %v601, 16
        %v641 = vor.u32 %v638, %v639
        %v642 = vsel %vm617, %v634, %v641
        %v643 = vrot.slane %v638, 4
        %v645 = vshrl.u32 %v602, 16
        %v647 = vrot.slane %v645, 7
        %v648 = vshll.u32 %v602, 16
        %v650 = vor.u32 %v647, %v648
        %v651 = vsel %vm617, %v643, %v650
        %v652 = vrot.slane %v647, 4
        %v654 = vshrl.u32 %v603, 16
        %v656 = vrot.slane %v654, 7
        %v657 = vshll.u32 %v603, 16
        %v659 = vor.u32 %v656, %v657
        %v660 = vsel %vm617, %v652, %v659
        %v661 = vrot.slane %v656, 4
        %v663 = vshrl.u32 %v604, 16
        %v665 = vrot.slane %v663, 7
        %v666 = vshll.u32 %v604, 16
        %v668 = vor.u32 %v665, %v666
        %v669 = vsel %vm617, %v661, %v668
        %v670 = vrot.slane %v665, 4
        %v672 = vshrl.u32 %v605, 16
        %v674 = vrot.slane %v672, 7
        %v675 = vshll.u32 %v605, 16
        %v677 = vor.u32 %v674, %v675
        %v678 = vsel %vm617, %v670, %v677
        %v679 = vrot.slane %v674, 4
        %v681 = vshrl.u32 %v606, 16
        %v683 = vrot.slane %v681, 7
        %v684 = vshll.u32 %v606, 16
        %v686 = vor.u32 %v683, %v684
        %v687 = vsel %vm617, %v679, %v686
        %v688 = vrot.slane %v683, 4
        %v690 = vshrl.u32 %v607, 16
        %v692 = vrot.slane %v690, 7
        %v693 = vshll.u32 %v607, 16
        %v695 = vor.u32 %v692, %v693
        %v696 = vsel %vm617, %v688, %v695
        %v697 = vrot.slane %v692, 4
        %v699 = vshrl.u32 %v608, 16
        %v701 = vrot.slane %v699, 7
        %v702 = vshll.u32 %v608, 16
        %v704 = vor.u32 %v701, %v702
        %v705 = vsel %vm617, %v697, %v704
        %v706 = vrot.slane %v701, 4
        %v708 = vshrl.u32 %v609, 16
        %v710 = vrot.slane %v708, 7
        %v711 = vshll.u32 %v609, 16
        %v713 = vor.u32 %v710, %v711
        %v714 = vsel %vm617, %v706, %v713
        %v715 = vrot.slane %v710, 4
        %v717 = vshrl.u32 %v610, 16
        %v719 = vrot.slane %v717, 7
        %v720 = vshll.u32 %v610, 16
        %v722 = vor.u32 %v719, %v720
        %v723 = vsel %vm617, %v715, %v722
        %v724 = vrot.slane %v719, 4
        %v726 = vshrl.u32 %v611, 16
        %v728 = vrot.slane %v726, 7
        %v729 = vshll.u32 %v611, 16
        %v731 = vor.u32 %v728, %v729
        %v732 = vsel %vm617, %v724, %v731
        %v733 = vrot.slane %v728, 4
        %v735 = vshrl.u32 %v612, 16
        %v737 = vrot.slane %v735, 7
        %v738 = vshll.u32 %v612, 16
        %v740 = vor.u32 %v737, %v738
        %v741 = vsel %vm617, %v733, %v740
        %v742 = vrot.slane %v737, 4
        %v744 = vshrl.u32 %v613, 16
        %v746 = vrot.slane %v744, 7
        %v747 = vshll.u32 %v613, 16
        %v749 = vor.u32 %v746, %v747
        %v750 = vsel %vm617, %v742, %v749
        %v751 = vrot.slane %v746, 4
        %v753 = vshrl.u32 %v614, 16
        %v755 = vrot.slane %v753, 7
        %v756 = vshll.u32 %v614, 16
        %v758 = vor.u32 %v755, %v756
        %v759 = vsel %vm617, %v751, %v758
        %v760 = vrot.slane %v755, 4
        %vm778 = vcmask 519168
        %vm779 = vsmask.f32 7938
        %vm780 = vmand %vm778, %vm779
        %v781 = vld [vmem:[#allocation2 + $0x8] sm:$0xf]
        %v782 = vsel %vm780, %v624, %v781
        %783 = vst [vmem:[#allocation2 + $0x8] sm:$0xf] %v782
        %784 = vst.msk [vmem:[#allocation2 + $0xc] sm:$0xf] %vm496, %v633
        %785 = vst.msk [vmem:[#allocation2 + $0x10] sm:$0xf] %vm496, %v642
        %786 = vst.msk [vmem:[#allocation2 + $0x14] sm:$0xf] %vm496, %v651
        %787 = vst.msk [vmem:[#allocation2 + $0x18] sm:$0xf] %vm496, %v660
        %788 = vst.msk [vmem:[#allocation2 + $0x1c] sm:$0xf] %vm496, %v669
        %789 = vst.msk [vmem:[#allocation2 + $0x20] sm:$0xf] %vm496, %v678
        %790 = vst.msk [vmem:[#allocation2 + $0x24] sm:$0xf] %vm496, %v687
        %791 = vst.msk [vmem:[#allocation2 + $0x28] sm:$0xf] %vm496, %v696
        %792 = vst.msk [vmem:[#allocation2 + $0x2c] sm:$0xf] %vm496, %v705
        %793 = vst.msk [vmem:[#allocation2 + $0x30] sm:$0xf] %vm496, %v714
        %794 = vst.msk [vmem:[#allocation2 + $0x34] sm:$0xf] %vm496, %v723
        %795 = vst.msk [vmem:[#allocation2 + $0x38] sm:$0xf] %vm496, %v732
        %796 = vst.msk [vmem:[#allocation2 + $0x3c] sm:$0xf] %vm496, %v741
        %797 = vst.msk [vmem:[#allocation2 + $0x40] sm:$0xf] %vm496, %v750
        %798 = vst.msk [vmem:[#allocation2 + $0x44] sm:$0xf] %vm496, %v759
        %vm799 = vcmask 516096
        %vm800 = vmand %vm799, %vm615
        %v801 = vld [vmem:[#allocation2 + $0x48] sm:$0x1]
        %v802 = vsel %vm800, %v760, %v801
        %803 = vst [vmem:[#allocation2 + $0x48] sm:$0x1] %v802
        %v804 = vld [vmem:[#allocation2] sm:$0xf]
        %v805 = vld [vmem:[#allocation2 + $0x4] sm:$0xf]
        %v806 = vld [vmem:[#allocation2 + $0x8] sm:$0xf]
        %v807 = vld [vmem:[#allocation2 + $0xc] sm:$0xf]
        %v808 = vld [vmem:[#allocation2 + $0x10] sm:$0xf]
        %v809 = vld [vmem:[#allocation2 + $0x14] sm:$0xf]
        %v810 = vld [vmem:[#allocation2 + $0x18] sm:$0xf]
        %v811 = vld [vmem:[#allocation2 + $0x1c] sm:$0xf]
        %v812 = vld [vmem:[#allocation2 + $0x20] sm:$0xf]
        %v813 = vld [vmem:[#allocation2 + $0x24] sm:$0xf]
        %v814 = vld [vmem:[#allocation2 + $0x28] sm:$0xf]
        %v815 = vld [vmem:[#allocation2 + $0x2c] sm:$0xf]
        %v816 = vld [vmem:[#allocation2 + $0x30] sm:$0xf]
        %v817 = vld [vmem:[#allocation2 + $0x34] sm:$0xf]
        %v818 = vld [vmem:[#allocation2 + $0x38] sm:$0xf]
        %v819 = vld [vmem:[#allocation2 + $0x3c] sm:$0xf]
        %v820 = vld [vmem:[%s2] sm:$0xf]
        %v821 = vld [vmem:[%s2 + $0x4] sm:$0xf]
        %v822 = vld [vmem:[%s2 + $0x8] sm:$0xf]
        %v823 = vld [vmem:[%s2 + $0xc] sm:$0xf]
        %v824 = vld [vmem:[%s2 + $0x10] sm:$0xf]
        %v825 = vld [vmem:[%s2 + $0x14] sm:$0xf]
        %v826 = vld [vmem:[%s2 + $0x18] sm:$0xf]
        %v827 = vld [vmem:[%s2 + $0x1c] sm:$0xf]
        %v828 = vld [vmem:[#allocation2 + $0x40] sm:$0x1]
        %s829 = scalar_lea.vmem %s2, 32
        %v830 = vld [vmem:[%s829] sm:$0xf]
        %v831 = vld [vmem:[%s829 + $0x4] sm:$0xf]
        %v832 = vld [vmem:[%s829 + $0x8] sm:$0xf]
        %v833 = vld [vmem:[%s829 + $0xc] sm:$0xf]
        %v834 = vld [vmem:[%s829 + $0x10] sm:$0xf]
        %v835 = vld [vmem:[%s829 + $0x14] sm:$0xf]
        %v836 = vld [vmem:[%s829 + $0x18] sm:$0xf]
        %v837 = vld [vmem:[%s829 + $0x1c] sm:$0xf]
        %v855 = vunpack.c.l.b16 %v804
        %v856 = vunpack.c.l.b16 %v805
        %v857 = vunpack.c.l.b16 %v806
        %v858 = vunpack.c.l.b16 %v807
        %v859 = vunpack.c.l.b16 %v808
        %v860 = vunpack.c.l.b16 %v809
        %v861 = vunpack.c.l.b16 %v810
        %v862 = vunpack.c.l.b16 %v811
        %v863 = vunpack.c.l.b16 %v812
        %v864 = vunpack.c.l.b16 %v813
        %v865 = vunpack.c.l.b16 %v814
        %v866 = vunpack.c.l.b16 %v815
        %v867 = vunpack.c.l.b16 %v816
        %v868 = vunpack.c.l.b16 %v817
        %v869 = vunpack.c.l.b16 %v818
        %v870 = vunpack.c.l.b16 %v819
        %v871 = vunpack.c.l.b16 %v828
        %v872 = vpack.c.b16 %v856, %v855
        %v873 = vpack.c.b16 %v858, %v857
        %v874 = vpack.c.b16 %v860, %v859
        %v875 = vpack.c.b16 %v862, %v861
        %v876 = vpack.c.b16 %v864, %v863
        %v877 = vpack.c.b16 %v866, %v865
        %v878 = vpack.c.b16 %v868, %v867
        %v879 = vpack.c.b16 %v870, %v869
        %v880 = vpack.c.b16 %v871, %v871
        %vm881 = vsmask.f32 7424
        %v883 = vshrl.u32 %v872, 16
        %v885 = vshll.u32 %v872, 16
        %v887 = vrot.slane %v885, 1
        %v888 = vor.u32 %v883, %v887
        %v890 = vshll.u32 %v873, 16
        %v892 = vrot.slane %v890, 1
        %v893 = vsel %vm881, %v888, %v892
        %v894 = vshrl.u32 %v873, 16
        %v896 = vor.u32 %v894, %v892
        %v898 = vshll.u32 %v874, 16
        %v900 = vrot.slane %v898, 1
        %v901 = vsel %vm881, %v896, %v900
        %v902 = vshrl.u32 %v874, 16
        %v904 = vor.u32 %v902, %v900
        %v906 = vshll.u32 %v875, 16
        %v908 = vrot.slane %v906, 1
        %v909 = vsel %vm881, %v904, %v908
        %v910 = vshrl.u32 %v875, 16
        %v912 = vor.u32 %v910, %v908
        %v914 = vshll.u32 %v876, 16
        %v916 = vrot.slane %v914, 1
        %v917 = vsel %vm881, %v912, %v916
        %v918 = vshrl.u32 %v876, 16
        %v920 = vor.u32 %v918, %v916
        %v922 = vshll.u32 %v877, 16
        %v924 = vrot.slane %v922, 1
        %v925 = vsel %vm881, %v920, %v924
        %v926 = vshrl.u32 %v877, 16
        %v928 = vor.u32 %v926, %v924
        %v930 = vshll.u32 %v878, 16
        %v932 = vrot.slane %v930, 1
        %v933 = vsel %vm881, %v928, %v932
        %v934 = vshrl.u32 %v878, 16
        %v936 = vor.u32 %v934, %v932
        %v938 = vshll.u32 %v879, 16
        %v940 = vrot.slane %v938, 1
        %v941 = vsel %vm881, %v936, %v940
        %v942 = vshrl.u32 %v879, 16
        %v944 = vor.u32 %v942, %v940
        %v946 = vshll.u32 %v880, 16
        %v948 = vrot.slane %v946, 1
        %v949 = vsel %vm881, %v944, %v948
        %v958 = vunpack.c.l.b16 %v830
        %v959 = vunpack.c.l.b16 %v831
        %v960 = vunpack.c.l.b16 %v832
        %v961 = vunpack.c.l.b16 %v833
        %v962 = vunpack.c.l.b16 %v834
        %v963 = vunpack.c.l.b16 %v835
        %v964 = vunpack.c.l.b16 %v836
        %v965 = vunpack.c.l.b16 %v837
        %v966 = vpack.c.b16 %v959, %v958
        %v967 = vpack.c.b16 %v961, %v960
        %v968 = vpack.c.b16 %v963, %v962
        %v969 = vpack.c.b16 %v965, %v964
        %vm974 = vcmask 523264
        %v976 = vsel %vm974, %v893, 0
        %v979 = vsel %vm974, %v901, 0
        %v982 = vsel %vm974, %v909, 0
        %v985 = vsel %vm974, %v917, 0
        %v988 = vsel %vm974, %v925, 0
        %v991 = vsel %vm974, %v933, 0
        %v994 = vsel %vm974, %v941, 0
        %v997 = vsel %vm974, %v949, 0
        %999 = vmatpush.bf16.msra.mxu0 0
        %1000 = vmatpush.bf16.msra.mxu0 0
        %1001 = vmatpush.bf16.msra.mxu0 0
        %1002 = vmatpush.bf16.msra.mxu0 0
        %1003 = vmatpush.bf16.msra.mxu0 %v969
        %1004 = vmatpush.bf16.msra.mxu0 %v968
        %1005 = vmatpush.bf16.msra.mxu0 %v967
        %1006 = vmatpush.bf16.msra.mxu0 %v966
        %1007 = vmatmul.bf16.gmra.mxu0 %v976
        %v1008 = vpop.f32.mrf.mxu0
        %v1009 = vadd.f32 0.0, %v1008
        %v1010 = vpop.f32.mrf.mxu0
        %v1011 = vadd.f32 0.0, %v1010
        %1012 = vmatmul.bf16.gmra.mxu0 %v979
        %v1013 = vpop.f32.mrf.mxu0
        %v1014 = vadd.f32 0.0, %v1013
        %v1015 = vpop.f32.mrf.mxu0
        %v1016 = vadd.f32 0.0, %v1015
        %1017 = vmatmul.bf16.gmra.mxu0 %v982
        %v1018 = vpop.f32.mrf.mxu0
        %v1019 = vadd.f32 0.0, %v1018
        %v1020 = vpop.f32.mrf.mxu0
        %v1021 = vadd.f32 0.0, %v1020
        %1022 = vmatmul.bf16.gmra.mxu0 %v985
        %v1023 = vpop.f32.mrf.mxu0
        %v1024 = vadd.f32 0.0, %v1023
        %v1025 = vpop.f32.mrf.mxu0
        %v1026 = vadd.f32 0.0, %v1025
        %1027 = vmatmul.bf16.gmra.mxu0 %v988
        %v1028 = vpop.f32.mrf.mxu0
        %v1029 = vadd.f32 0.0, %v1028
        %v1030 = vpop.f32.mrf.mxu0
        %v1031 = vadd.f32 0.0, %v1030
        %1032 = vmatmul.bf16.gmra.mxu0 %v991
        %v1033 = vpop.f32.mrf.mxu0
        %v1034 = vadd.f32 0.0, %v1033
        %v1035 = vpop.f32.mrf.mxu0
        %v1036 = vadd.f32 0.0, %v1035
        %1037 = vmatmul.bf16.gmra.mxu0 %v994
        %v1038 = vpop.f32.mrf.mxu0
        %v1039 = vadd.f32 0.0, %v1038
        %v1040 = vpop.f32.mrf.mxu0
        %v1041 = vadd.f32 0.0, %v1040
        %1042 = vmatmul.bf16.gmra.mxu0 %v997
        %v1043 = vpop.f32.mrf.mxu0
        %v1044 = vadd.f32 0.0, %v1043
        %v1045 = vpop.f32.mrf.mxu0
        %v1046 = vadd.f32 0.0, %v1045
        %1047 = vdwg.mxu0
        %v1056 = vunpack.c.l.b16 %v820
        %v1057 = vunpack.c.l.b16 %v821
        %v1058 = vunpack.c.l.b16 %v822
        %v1059 = vunpack.c.l.b16 %v823
        %v1060 = vunpack.c.l.b16 %v824
        %v1061 = vunpack.c.l.b16 %v825
        %v1062 = vunpack.c.l.b16 %v826
        %v1063 = vunpack.c.l.b16 %v827
        %v1064 = vpack.c.b16 %v1057, %v1056
        %v1065 = vpack.c.b16 %v1059, %v1058
        %v1066 = vpack.c.b16 %v1061, %v1060
        %v1067 = vpack.c.b16 %v1063, %v1062
        %v1072 = vsel %vm974, %v872, 0
        %v1074 = vsel %vm974, %v873, 0
        %v1076 = vsel %vm974, %v874, 0
        %v1078 = vsel %vm974, %v875, 0
        %v1080 = vsel %vm974, %v876, 0
        %v1082 = vsel %vm974, %v877, 0
        %v1084 = vsel %vm974, %v878, 0
        %v1086 = vsel %vm974, %v879, 0
        %1088 = vmatpush.bf16.msra.mxu0 0
        %1089 = vmatpush.bf16.msra.mxu0 0
        %1090 = vmatpush.bf16.msra.mxu0 0
        %1091 = vmatpush.bf16.msra.mxu0 0
        %1092 = vmatpush.bf16.msra.mxu0 %v1067
        %1093 = vmatpush.bf16.msra.mxu0 %v1066
        %1094 = vmatpush.bf16.msra.mxu0 %v1065
        %1095 = vmatpush.bf16.msra.mxu0 %v1064
        %1096 = vmatmul.bf16.gmra.mxu0 %v1072
        %v1097 = vpop.f32.mrf.mxu0
        %v1098 = vadd.f32 %v1009, %v1097
        %v1099 = vpop.f32.mrf.mxu0
        %v1100 = vadd.f32 %v1011, %v1099
        %1101 = vmatmul.bf16.gmra.mxu0 %v1074
        %v1102 = vpop.f32.mrf.mxu0
        %v1103 = vadd.f32 %v1014, %v1102
        %v1104 = vpop.f32.mrf.mxu0
        %v1105 = vadd.f32 %v1016, %v1104
        %1106 = vmatmul.bf16.gmra.mxu0 %v1076
        %v1107 = vpop.f32.mrf.mxu0
        %v1108 = vadd.f32 %v1019, %v1107
        %v1109 = vpop.f32.mrf.mxu0
        %v1110 = vadd.f32 %v1021, %v1109
        %1111 = vmatmul.bf16.gmra.mxu0 %v1078
        %v1112 = vpop.f32.mrf.mxu0
        %v1113 = vadd.f32 %v1024, %v1112
        %v1114 = vpop.f32.mrf.mxu0
        %v1115 = vadd.f32 %v1026, %v1114
        %1116 = vmatmul.bf16.gmra.mxu0 %v1080
        %v1117 = vpop.f32.mrf.mxu0
        %v1118 = vadd.f32 %v1029, %v1117
        %v1119 = vpop.f32.mrf.mxu0
        %v1120 = vadd.f32 %v1031, %v1119
        %1121 = vmatmul.bf16.gmra.mxu0 %v1082
        %v1122 = vpop.f32.mrf.mxu0
        %v1123 = vadd.f32 %v1034, %v1122
        %v1124 = vpop.f32.mrf.mxu0
        %v1125 = vadd.f32 %v1036, %v1124
        %1126 = vmatmul.bf16.gmra.mxu0 %v1084
        %v1127 = vpop.f32.mrf.mxu0
        %v1128 = vadd.f32 %v1039, %v1127
        %v1129 = vpop.f32.mrf.mxu0
        %v1130 = vadd.f32 %v1041, %v1129
        %1131 = vmatmul.bf16.gmra.mxu0 %v1086
        %v1132 = vpop.f32.mrf.mxu0
        %v1133 = vadd.f32 %v1044, %v1132
        %v1134 = vpop.f32.mrf.mxu0
        %v1135 = vadd.f32 %v1046, %v1134
        %1136 = vdwg.mxu0
        %v1137 = vld [vmem:[#allocation2] sm:$0xe]
        %s1138 = scalar_lea.vmem %s2, 64
        %v1139 = vld [vmem:[%s1138] sm:$0xf]
        %v1140 = vld [vmem:[%s1138 + $0x4] sm:$0xf]
        %v1141 = vld [vmem:[%s1138 + $0x8] sm:$0xf]
        %v1142 = vld [vmem:[%s1138 + $0xc] sm:$0xf]
        %v1143 = vld [vmem:[%s1138 + $0x10] sm:$0xf]
        %v1144 = vld [vmem:[%s1138 + $0x14] sm:$0xf]
        %v1145 = vld [vmem:[%s1138 + $0x18] sm:$0xf]
        %v1146 = vld [vmem:[%s1138 + $0x1c] sm:$0xf]
        %v1148 = vunpack.c.l.b16 %v1137
        %v1149 = vpack.c.b16 %v856, %v1148
        %vm1150 = vcmask 1046528
        %v1151 = vrot.slane %v1149, 1
        %v1152 = vrot.slane %v873, 1
        %v1153 = vsel %vm1150, %v1151, %v1152
        %v1154 = vrot.slane %v874, 1
        %v1155 = vsel %vm1150, %v1152, %v1154
        %v1156 = vrot.slane %v875, 1
        %v1157 = vsel %vm1150, %v1154, %v1156
        %v1158 = vrot.slane %v876, 1
        %v1159 = vsel %vm1150, %v1156, %v1158
        %v1160 = vrot.slane %v877, 1
        %v1161 = vsel %vm1150, %v1158, %v1160
        %v1162 = vrot.slane %v878, 1
        %v1163 = vsel %vm1150, %v1160, %v1162
        %v1164 = vrot.slane %v879, 1
        %v1165 = vsel %vm1150, %v1162, %v1164
        %v1166 = vrot.slane %v880, 1
        %v1167 = vsel %vm1150, %v1164, %v1166
        %v1176 = vunpack.c.l.b16 %v1139
        %v1177 = vunpack.c.l.b16 %v1140
        %v1178 = vunpack.c.l.b16 %v1141
        %v1179 = vunpack.c.l.b16 %v1142
        %v1180 = vunpack.c.l.b16 %v1143
        %v1181 = vunpack.c.l.b16 %v1144
        %v1182 = vunpack.c.l.b16 %v1145
        %v1183 = vunpack.c.l.b16 %v1146
        %v1184 = vpack.c.b16 %v1177, %v1176
        %v1185 = vpack.c.b16 %v1179, %v1178
        %v1186 = vpack.c.b16 %v1181, %v1180
        %v1187 = vpack.c.b16 %v1183, %v1182
        %v1193 = vsel %vm974, %v1153, 0
        %v1196 = vsel %vm974, %v1155, 0
        %v1199 = vsel %vm974, %v1157, 0
        %v1202 = vsel %vm974, %v1159, 0
        %v1205 = vsel %vm974, %v1161, 0
        %v1208 = vsel %vm974, %v1163, 0
        %v1211 = vsel %vm974, %v1165, 0
        %v1214 = vsel %vm974, %v1167, 0
        %1216 = vmatpush.bf16.msra.mxu0 0
        %1217 = vmatpush.bf16.msra.mxu0 0
        %1218 = vmatpush.bf16.msra.mxu0 0
        %1219 = vmatpush.bf16.msra.mxu0 0
        %1220 = vmatpush.bf16.msra.mxu0 %v1187
        %1221 = vmatpush.bf16.msra.mxu0 %v1186
        %1222 = vmatpush.bf16.msra.mxu0 %v1185
        %1223 = vmatpush.bf16.msra.mxu0 %v1184
        %1224 = vmatmul.bf16.gmra.mxu0 %v1193
        %v1225 = vpop.f32.mrf.mxu0
        %v1226 = vadd.f32 0.0, %v1225
        %v1227 = vpop.f32.mrf.mxu0
        %v1228 = vadd.f32 0.0, %v1227
        %1229 = vmatmul.bf16.gmra.mxu0 %v1196
        %v1230 = vpop.f32.mrf.mxu0
        %v1231 = vadd.f32 0.0, %v1230
        %v1232 = vpop.f32.mrf.mxu0
        %v1233 = vadd.f32 0.0, %v1232
        %1234 = vmatmul.bf16.gmra.mxu0 %v1199
        %v1235 = vpop.f32.mrf.mxu0
        %v1236 = vadd.f32 0.0, %v1235
        %v1237 = vpop.f32.mrf.mxu0
        %v1238 = vadd.f32 0.0, %v1237
        %1239 = vmatmul.bf16.gmra.mxu0 %v1202
        %v1240 = vpop.f32.mrf.mxu0
        %v1241 = vadd.f32 0.0, %v1240
        %v1242 = vpop.f32.mrf.mxu0
        %v1243 = vadd.f32 0.0, %v1242
        %1244 = vmatmul.bf16.gmra.mxu0 %v1205
        %v1245 = vpop.f32.mrf.mxu0
        %v1246 = vadd.f32 0.0, %v1245
        %v1247 = vpop.f32.mrf.mxu0
        %v1248 = vadd.f32 0.0, %v1247
        %1249 = vmatmul.bf16.gmra.mxu0 %v1208
        %v1250 = vpop.f32.mrf.mxu0
        %v1251 = vadd.f32 0.0, %v1250
        %v1252 = vpop.f32.mrf.mxu0
        %v1253 = vadd.f32 0.0, %v1252
        %1254 = vmatmul.bf16.gmra.mxu0 %v1211
        %v1255 = vpop.f32.mrf.mxu0
        %v1256 = vadd.f32 0.0, %v1255
        %v1257 = vpop.f32.mrf.mxu0
        %v1258 = vadd.f32 0.0, %v1257
        %1259 = vmatmul.bf16.gmra.mxu0 %v1214
        %v1260 = vpop.f32.mrf.mxu0
        %v1261 = vadd.f32 0.0, %v1260
        %v1262 = vpop.f32.mrf.mxu0
        %v1263 = vadd.f32 0.0, %v1262
        %1264 = vdwg.mxu0
        %v1265 = vadd.f32 %v1098, %v1226
        %v1266 = vadd.f32 %v1100, %v1228
        %v1267 = vadd.f32 %v1103, %v1231
        %v1268 = vadd.f32 %v1105, %v1233
        %v1269 = vadd.f32 %v1108, %v1236
        %v1270 = vadd.f32 %v1110, %v1238
        %v1271 = vadd.f32 %v1113, %v1241
        %v1272 = vadd.f32 %v1115, %v1243
        %v1273 = vadd.f32 %v1118, %v1246
        %v1274 = vadd.f32 %v1120, %v1248
        %v1275 = vadd.f32 %v1123, %v1251
        %v1276 = vadd.f32 %v1125, %v1253
        %v1277 = vadd.f32 %v1128, %v1256
        %v1278 = vadd.f32 %v1130, %v1258
        %v1279 = vadd.f32 %v1133, %v1261
        %v1280 = vadd.f32 %v1135, %v1263
        %v1281 = vld [vmem:[#allocation2 + $0x8] sm:$0xf]
        %v1282 = vld [vmem:[#allocation2 + $0xc] sm:$0xf]
        %v1283 = vld [vmem:[#allocation2 + $0x10] sm:$0xf]
        %v1284 = vld [vmem:[#allocation2 + $0x14] sm:$0xf]
        %v1285 = vld [vmem:[#allocation2 + $0x18] sm:$0xf]
        %v1286 = vld [vmem:[#allocation2 + $0x1c] sm:$0xf]
        %v1287 = vld [vmem:[#allocation2 + $0x20] sm:$0xf]
        %v1288 = vld [vmem:[#allocation2 + $0x24] sm:$0xf]
        %v1289 = vld [vmem:[#allocation2 + $0x28] sm:$0xf]
        %v1290 = vld [vmem:[#allocation2 + $0x2c] sm:$0xf]
        %v1291 = vld [vmem:[#allocation2 + $0x30] sm:$0xf]
        %v1292 = vld [vmem:[#allocation2 + $0x34] sm:$0xf]
        %v1293 = vld [vmem:[#allocation2 + $0x38] sm:$0xf]
        %v1294 = vld [vmem:[#allocation2 + $0x3c] sm:$0xf]
        %v1295 = vld [vmem:[#allocation2 + $0x40] sm:$0xf]
        %v1296 = vld [vmem:[#allocation2 + $0x44] sm:$0xf]
        %s1297 = scalar_lea.vmem %s2, 96
        %v1298 = vld [vmem:[%s1297] sm:$0xf]
        %v1299 = vld [vmem:[%s1297 + $0x4] sm:$0xf]
        %v1300 = vld [vmem:[%s1297 + $0x8] sm:$0xf]
        %v1301 = vld [vmem:[%s1297 + $0xc] sm:$0xf]
        %v1302 = vld [vmem:[%s1297 + $0x10] sm:$0xf]
        %v1303 = vld [vmem:[%s1297 + $0x14] sm:$0xf]
        %v1304 = vld [vmem:[%s1297 + $0x18] sm:$0xf]
        %v1305 = vld [vmem:[%s1297 + $0x1c] sm:$0xf]
        %v1322 = vunpack.c.l.b16 %v1281
        %v1323 = vunpack.c.l.b16 %v1282
        %v1324 = vunpack.c.l.b16 %v1283
        %v1325 = vunpack.c.l.b16 %v1284
        %v1326 = vunpack.c.l.b16 %v1285
        %v1327 = vunpack.c.l.b16 %v1286
        %v1328 = vunpack.c.l.b16 %v1287
        %v1329 = vunpack.c.l.b16 %v1288
        %v1330 = vunpack.c.l.b16 %v1289
        %v1331 = vunpack.c.l.b16 %v1290
        %v1332 = vunpack.c.l.b16 %v1291
        %v1333 = vunpack.c.l.b16 %v1292
        %v1334 = vunpack.c.l.b16 %v1293
        %v1335 = vunpack.c.l.b16 %v1294
        %v1336 = vunpack.c.l.b16 %v1295
        %v1337 = vunpack.c.l.b16 %v1296
        %v1338 = vpack.c.b16 %v1323, %v1322
        %v1339 = vpack.c.b16 %v1325, %v1324
        %v1340 = vpack.c.b16 %v1327, %v1326
        %v1341 = vpack.c.b16 %v1329, %v1328
        %v1342 = vpack.c.b16 %v1331, %v1330
        %v1343 = vpack.c.b16 %v1333, %v1332
        %v1344 = vpack.c.b16 %v1335, %v1334
        %v1345 = vpack.c.b16 %v1337, %v1336
        %v1354 = vunpack.c.l.b16 %v1298
        %v1355 = vunpack.c.l.b16 %v1299
        %v1356 = vunpack.c.l.b16 %v1300
        %v1357 = vunpack.c.l.b16 %v1301
        %v1358 = vunpack.c.l.b16 %v1302
        %v1359 = vunpack.c.l.b16 %v1303
        %v1360 = vunpack.c.l.b16 %v1304
        %v1361 = vunpack.c.l.b16 %v1305
        %v1362 = vpack.c.b16 %v1355, %v1354
        %v1363 = vpack.c.b16 %v1357, %v1356
        %v1364 = vpack.c.b16 %v1359, %v1358
        %v1365 = vpack.c.b16 %v1361, %v1360
        %v1371 = vsel %vm974, %v1338, 0
        %v1374 = vsel %vm974, %v1339, 0
        %v1377 = vsel %vm974, %v1340, 0
        %v1380 = vsel %vm974, %v1341, 0
        %v1383 = vsel %vm974, %v1342, 0
        %v1386 = vsel %vm974, %v1343, 0
        %v1389 = vsel %vm974, %v1344, 0
        %v1392 = vsel %vm974, %v1345, 0
        %1394 = vmatpush.bf16.msra.mxu0 0
        %1395 = vmatpush.bf16.msra.mxu0 0
        %1396 = vmatpush.bf16.msra.mxu0 0
        %1397 = vmatpush.bf16.msra.mxu0 0
        %1398 = vmatpush.bf16.msra.mxu0 %v1365
        %1399 = vmatpush.bf16.msra.mxu0 %v1364
        %1400 = vmatpush.bf16.msra.mxu0 %v1363
        %1401 = vmatpush.bf16.msra.mxu0 %v1362
        %1402 = vmatmul.bf16.gmra.mxu0 %v1371
        %v1403 = vpop.f32.mrf.mxu0
        %v1404 = vadd.f32 0.0, %v1403
        %v1405 = vpop.f32.mrf.mxu0
        %v1406 = vadd.f32 0.0, %v1405
        %1407 = vmatmul.bf16.gmra.mxu0 %v1374
        %v1408 = vpop.f32.mrf.mxu0
        %v1409 = vadd.f32 0.0, %v1408
        %v1410 = vpop.f32.mrf.mxu0
        %v1411 = vadd.f32 0.0, %v1410
        %1412 = vmatmul.bf16.gmra.mxu0 %v1377
        %v1413 = vpop.f32.mrf.mxu0
        %v1414 = vadd.f32 0.0, %v1413
        %v1415 = vpop.f32.mrf.mxu0
        %v1416 = vadd.f32 0.0, %v1415
        %1417 = vmatmul.bf16.gmra.mxu0 %v1380
        %v1418 = vpop.f32.mrf.mxu0
        %v1419 = vadd.f32 0.0, %v1418
        %v1420 = vpop.f32.mrf.mxu0
        %v1421 = vadd.f32 0.0, %v1420
        %1422 = vmatmul.bf16.gmra.mxu0 %v1383
        %v1423 = vpop.f32.mrf.mxu0
        %v1424 = vadd.f32 0.0, %v1423
        %v1425 = vpop.f32.mrf.mxu0
        %v1426 = vadd.f32 0.0, %v1425
        %1427 = vmatmul.bf16.gmra.mxu0 %v1386
        %v1428 = vpop.f32.mrf.mxu0
        %v1429 = vadd.f32 0.0, %v1428
        %v1430 = vpop.f32.mrf.mxu0
        %v1431 = vadd.f32 0.0, %v1430
        %1432 = vmatmul.bf16.gmra.mxu0 %v1389
        %v1433 = vpop.f32.mrf.mxu0
        %v1434 = vadd.f32 0.0, %v1433
        %v1435 = vpop.f32.mrf.mxu0
        %v1436 = vadd.f32 0.0, %v1435
        %1437 = vmatmul.bf16.gmra.mxu0 %v1392
        %v1438 = vpop.f32.mrf.mxu0
        %v1439 = vadd.f32 0.0, %v1438
        %v1440 = vpop.f32.mrf.mxu0
        %v1441 = vadd.f32 0.0, %v1440
        %1442 = vdwg.mxu0
        %v1443 = vadd.f32 %v1265, %v1404
        %v1444 = vadd.f32 %v1266, %v1406
        %v1445 = vadd.f32 %v1267, %v1409
        %v1446 = vadd.f32 %v1268, %v1411
        %v1447 = vadd.f32 %v1269, %v1414
        %v1448 = vadd.f32 %v1270, %v1416
        %v1449 = vadd.f32 %v1271, %v1419
        %v1450 = vadd.f32 %v1272, %v1421
        %v1451 = vadd.f32 %v1273, %v1424
        %v1452 = vadd.f32 %v1274, %v1426
        %v1453 = vadd.f32 %v1275, %v1429
        %v1454 = vadd.f32 %v1276, %v1431
        %v1455 = vadd.f32 %v1277, %v1434
        %v1456 = vadd.f32 %v1278, %v1436
        %v1457 = vadd.f32 %v1279, %v1439
        %v1458 = vadd.f32 %v1280, %v1441
        %v1459 = vld [vmem:[#allocation2 + $0x8] sm:$0xf]
        %v1460 = vld [vmem:[#allocation2 + $0xc] sm:$0xf]
        %v1461 = vld [vmem:[#allocation2 + $0x10] sm:$0xf]
        %v1462 = vld [vmem:[#allocation2 + $0x14] sm:$0xf]
        %v1463 = vld [vmem:[#allocation2 + $0x18] sm:$0xf]
        %v1464 = vld [vmem:[#allocation2 + $0x1c] sm:$0xf]
        %v1465 = vld [vmem:[#allocation2 + $0x20] sm:$0xf]
        %v1466 = vld [vmem:[#allocation2 + $0x24] sm:$0xf]
        %v1467 = vld [vmem:[#allocation2 + $0x28] sm:$0xf]
        %v1468 = vld [vmem:[#allocation2 + $0x2c] sm:$0xf]
        %v1469 = vld [vmem:[#allocation2 + $0x30] sm:$0xf]
        %v1470 = vld [vmem:[#allocation2 + $0x34] sm:$0xf]
        %v1471 = vld [vmem:[#allocation2 + $0x38] sm:$0xf]
        %v1472 = vld [vmem:[#allocation2 + $0x3c] sm:$0xf]
        %v1473 = vld [vmem:[#allocation2 + $0x40] sm:$0xf]
        %v1474 = vld [vmem:[#allocation2 + $0x44] sm:$0xf]
        %v1475 = vld [vmem:[#allocation2 + $0x48] sm:$0x1]
        %s1476 = scalar_lea.vmem %s2, 128
        %v1477 = vld [vmem:[%s1476] sm:$0xf]
        %v1478 = vld [vmem:[%s1476 + $0x4] sm:$0xf]
        %v1479 = vld [vmem:[%s1476 + $0x8] sm:$0xf]
        %v1480 = vld [vmem:[%s1476 + $0xc] sm:$0xf]
        %v1481 = vld [vmem:[%s1476 + $0x10] sm:$0xf]
        %v1482 = vld [vmem:[%s1476 + $0x14] sm:$0xf]
        %v1483 = vld [vmem:[%s1476 + $0x18] sm:$0xf]
        %v1484 = vld [vmem:[%s1476 + $0x1c] sm:$0xf]
        %v1502 = vunpack.c.l.b16 %v1459
        %v1503 = vunpack.c.l.b16 %v1460
        %v1504 = vunpack.c.l.b16 %v1461
        %v1505 = vunpack.c.l.b16 %v1462
        %v1506 = vunpack.c.l.b16 %v1463
        %v1507 = vunpack.c.l.b16 %v1464
        %v1508 = vunpack.c.l.b16 %v1465
        %v1509 = vunpack.c.l.b16 %v1466
        %v1510 = vunpack.c.l.b16 %v1467
        %v1511 = vunpack.c.l.b16 %v1468
        %v1512 = vunpack.c.l.b16 %v1469
        %v1513 = vunpack.c.l.b16 %v1470
        %v1514 = vunpack.c.l.b16 %v1471
        %v1515 = vunpack.c.l.b16 %v1472
        %v1516 = vunpack.c.l.b16 %v1473
        %v1517 = vunpack.c.l.b16 %v1474
        %v1518 = vunpack.c.l.b16 %v1475
        %v1519 = vpack.c.b16 %v1503, %v1502
        %v1520 = vpack.c.b16 %v1505, %v1504
        %v1521 = vpack.c.b16 %v1507, %v1506
        %v1522 = vpack.c.b16 %v1509, %v1508
        %v1523 = vpack.c.b16 %v1511, %v1510
        %v1524 = vpack.c.b16 %v1513, %v1512
        %v1525 = vpack.c.b16 %v1515, %v1514
        %v1526 = vpack.c.b16 %v1517, %v1516
        %v1527 = vpack.c.b16 %v1518, %v1518
        %v1529 = vshrl.u32 %v1519, 16
        %v1531 = vshll.u32 %v1519, 16
        %v1533 = vrot.slane %v1531, 1
        %v1534 = vor.u32 %v1529, %v1533
        %v1536 = vshll.u32 %v1520, 16
        %v1538 = vrot.slane %v1536, 1
        %v1539 = vsel %vm881, %v1534, %v1538
        %v1540 = vshrl.u32 %v1520, 16
        %v1542 = vor.u32 %v1540, %v1538
        %v1544 = vshll.u32 %v1521, 16
        %v1546 = vrot.slane %v1544, 1
        %v1547 = vsel %vm881, %v1542, %v1546
        %v1548 = vshrl.u32 %v1521, 16
        %v1550 = vor.u32 %v1548, %v1546
        %v1552 = vshll.u32 %v1522, 16
        %v1554 = vrot.slane %v1552, 1
        %v1555 = vsel %vm881, %v1550, %v1554
        %v1556 = vshrl.u32 %v1522, 16
        %v1558 = vor.u32 %v1556, %v1554
        %v1560 = vshll.u32 %v1523, 16
        %v1562 = vrot.slane %v1560, 1
        %v1563 = vsel %vm881, %v1558, %v1562
        %v1564 = vshrl.u32 %v1523, 16
        %v1566 = vor.u32 %v1564, %v1562
        %v1568 = vshll.u32 %v1524, 16
        %v1570 = vrot.slane %v1568, 1
        %v1571 = vsel %vm881, %v1566, %v1570
        %v1572 = vshrl.u32 %v1524, 16
        %v1574 = vor.u32 %v1572, %v1570
        %v1576 = vshll.u32 %v1525, 16
        %v1578 = vrot.slane %v1576, 1
        %v1579 = vsel %vm881, %v1574, %v1578
        %v1580 = vshrl.u32 %v1525, 16
        %v1582 = vor.u32 %v1580, %v1578
        %v1584 = vshll.u32 %v1526, 16
        %v1586 = vrot.slane %v1584, 1
        %v1587 = vsel %vm881, %v1582, %v1586
        %v1588 = vshrl.u32 %v1526, 16
        %v1590 = vor.u32 %v1588, %v1586
        %v1592 = vshll.u32 %v1527, 16
        %v1594 = vrot.slane %v1592, 1
        %v1595 = vsel %vm881, %v1590, %v1594
        %v1604 = vunpack.c.l.b16 %v1477
        %v1605 = vunpack.c.l.b16 %v1478
        %v1606 = vunpack.c.l.b16 %v1479
        %v1607 = vunpack.c.l.b16 %v1480
        %v1608 = vunpack.c.l.b16 %v1481
        %v1609 = vunpack.c.l.b16 %v1482
        %v1610 = vunpack.c.l.b16 %v1483
        %v1611 = vunpack.c.l.b16 %v1484
        %v1612 = vpack.c.b16 %v1605, %v1604
        %v1613 = vpack.c.b16 %v1607, %v1606
        %v1614 = vpack.c.b16 %v1609, %v1608
        %v1615 = vpack.c.b16 %v1611, %v1610
        %v1621 = vsel %vm974, %v1539, 0
        %v1624 = vsel %vm974, %v1547, 0
        %v1627 = vsel %vm974, %v1555, 0
        %v1630 = vsel %vm974, %v1563, 0
        %v1633 = vsel %vm974, %v1571, 0
        %v1636 = vsel %vm974, %v1579, 0
        %v1639 = vsel %vm974, %v1587, 0
        %v1642 = vsel %vm974, %v1595, 0
        %1644 = vmatpush.bf16.msra.mxu0 0
        %1645 = vmatpush.bf16.msra.mxu0 0
        %1646 = vmatpush.bf16.msra.mxu0 0
        %1647 = vmatpush.bf16.msra.mxu0 0
        %1648 = vmatpush.bf16.msra.mxu0 %v1615
        %1649 = vmatpush.bf16.msra.mxu0 %v1614
        %1650 = vmatpush.bf16.msra.mxu0 %v1613
        %1651 = vmatpush.bf16.msra.mxu0 %v1612
        %1652 = vmatmul.bf16.gmra.mxu0 %v1621
        %v1653 = vpop.f32.mrf.mxu0
        %v1654 = vadd.f32 0.0, %v1653
        %v1655 = vpop.f32.mrf.mxu0
        %v1656 = vadd.f32 0.0, %v1655
        %1657 = vmatmul.bf16.gmra.mxu0 %v1624
        %v1658 = vpop.f32.mrf.mxu0
        %v1659 = vadd.f32 0.0, %v1658
        %v1660 = vpop.f32.mrf.mxu0
        %v1661 = vadd.f32 0.0, %v1660
        %1662 = vmatmul.bf16.gmra.mxu0 %v1627
        %v1663 = vpop.f32.mrf.mxu0
        %v1664 = vadd.f32 0.0, %v1663
        %v1665 = vpop.f32.mrf.mxu0
        %v1666 = vadd.f32 0.0, %v1665
        %1667 = vmatmul.bf16.gmra.mxu0 %v1630
        %v1668 = vpop.f32.mrf.mxu0
        %v1669 = vadd.f32 0.0, %v1668
        %v1670 = vpop.f32.mrf.mxu0
        %v1671 = vadd.f32 0.0, %v1670
        %1672 = vmatmul.bf16.gmra.mxu0 %v1633
        %v1673 = vpop.f32.mrf.mxu0
        %v1674 = vadd.f32 0.0, %v1673
        %v1675 = vpop.f32.mrf.mxu0
        %v1676 = vadd.f32 0.0, %v1675
        %1677 = vmatmul.bf16.gmra.mxu0 %v1636
        %v1678 = vpop.f32.mrf.mxu0
        %v1679 = vadd.f32 0.0, %v1678
        %v1680 = vpop.f32.mrf.mxu0
        %v1681 = vadd.f32 0.0, %v1680
        %1682 = vmatmul.bf16.gmra.mxu0 %v1639
        %v1683 = vpop.f32.mrf.mxu0
        %v1684 = vadd.f32 0.0, %v1683
        %v1685 = vpop.f32.mrf.mxu0
        %v1686 = vadd.f32 0.0, %v1685
        %1687 = vmatmul.bf16.gmra.mxu0 %v1642
        %v1688 = vpop.f32.mrf.mxu0
        %v1689 = vadd.f32 0.0, %v1688
        %v1690 = vpop.f32.mrf.mxu0
        %v1691 = vadd.f32 0.0, %v1690
        %1692 = vdwg.mxu0
        %v1693 = vadd.f32 %v1443, %v1654
        %v1694 = vadd.f32 %v1444, %v1656
        %v1695 = vadd.f32 %v1445, %v1659
        %v1696 = vadd.f32 %v1446, %v1661
        %v1697 = vadd.f32 %v1447, %v1664
        %v1698 = vadd.f32 %v1448, %v1666
        %v1699 = vadd.f32 %v1449, %v1669
        %v1700 = vadd.f32 %v1450, %v1671
        %v1701 = vadd.f32 %v1451, %v1674
        %v1702 = vadd.f32 %v1452, %v1676
        %v1703 = vadd.f32 %v1453, %v1679
        %v1704 = vadd.f32 %v1454, %v1681
        %v1705 = vadd.f32 %v1455, %v1684
        %v1706 = vadd.f32 %v1456, %v1686
        %v1707 = vadd.f32 %v1457, %v1689
        %v1708 = vadd.f32 %v1458, %v1691
        %v1709 = vld [vmem:[#allocation2 + $0x8] sm:$0xe]
        %s1710 = scalar_lea.vmem %s2, 160
        %v1711 = vld [vmem:[%s1710] sm:$0xf]
        %v1712 = vld [vmem:[%s1710 + $0x4] sm:$0xf]
        %v1713 = vld [vmem:[%s1710 + $0x8] sm:$0xf]
        %v1714 = vld [vmem:[%s1710 + $0xc] sm:$0xf]
        %v1715 = vld [vmem:[%s1710 + $0x10] sm:$0xf]
        %v1716 = vld [vmem:[%s1710 + $0x14] sm:$0xf]
        %v1717 = vld [vmem:[%s1710 + $0x18] sm:$0xf]
        %v1718 = vld [vmem:[%s1710 + $0x1c] sm:$0xf]
        %v1720 = vunpack.c.l.b16 %v1709
        %v1721 = vpack.c.b16 %v1503, %v1720
        %v1722 = vrot.slane %v1721, 1
        %v1723 = vrot.slane %v1520, 1
        %v1724 = vsel %vm1150, %v1722, %v1723
        %v1725 = vrot.slane %v1521, 1
        %v1726 = vsel %vm1150, %v1723, %v1725
        %v1727 = vrot.slane %v1522, 1
        %v1728 = vsel %vm1150, %v1725, %v1727
        %v1729 = vrot.slane %v1523, 1
        %v1730 = vsel %vm1150, %v1727, %v1729
        %v1731 = vrot.slane %v1524, 1
        %v1732 = vsel %vm1150, %v1729, %v1731
        %v1733 = vrot.slane %v1525, 1
        %v1734 = vsel %vm1150, %v1731, %v1733
        %v1735 = vrot.slane %v1526, 1
        %v1736 = vsel %vm1150, %v1733, %v1735
        %v1737 = vrot.slane %v1527, 1
        %v1738 = vsel %vm1150, %v1735, %v1737
        %v1747 = vunpack.c.l.b16 %v1711
        %v1748 = vunpack.c.l.b16 %v1712
        %v1749 = vunpack.c.l.b16 %v1713
        %v1750 = vunpack.c.l.b16 %v1714
        %v1751 = vunpack.c.l.b16 %v1715
        %v1752 = vunpack.c.l.b16 %v1716
        %v1753 = vunpack.c.l.b16 %v1717
        %v1754 = vunpack.c.l.b16 %v1718
        %v1755 = vpack.c.b16 %v1748, %v1747
        %v1756 = vpack.c.b16 %v1750, %v1749
        %v1757 = vpack.c.b16 %v1752, %v1751
        %v1758 = vpack.c.b16 %v1754, %v1753
        %v1764 = vsel %vm974, %v1724, 0
        %v1767 = vsel %vm974, %v1726, 0
        %v1770 = vsel %vm974, %v1728, 0
        %v1773 = vsel %vm974, %v1730, 0
        %v1776 = vsel %vm974, %v1732, 0
        %v1779 = vsel %vm974, %v1734, 0
        %v1782 = vsel %vm974, %v1736, 0
        %v1785 = vsel %vm974, %v1738, 0
        %1787 = vmatpush.bf16.msra.mxu0 0
        %1788 = vmatpush.bf16.msra.mxu0 0
        %1789 = vmatpush.bf16.msra.mxu0 0
        %1790 = vmatpush.bf16.msra.mxu0 0
        %1791 = vmatpush.bf16.msra.mxu0 %v1758
        %1792 = vmatpush.bf16.msra.mxu0 %v1757
        %1793 = vmatpush.bf16.msra.mxu0 %v1756
        %1794 = vmatpush.bf16.msra.mxu0 %v1755
        %1795 = vmatmul.bf16.gmra.mxu0 %v1764
        %v1796 = vpop.f32.mrf.mxu0
        %v1797 = vadd.f32 0.0, %v1796
        %v1798 = vpop.f32.mrf.mxu0
        %v1799 = vadd.f32 0.0, %v1798
        %1800 = vmatmul.bf16.gmra.mxu0 %v1767
        %v1801 = vpop.f32.mrf.mxu0
        %v1802 = vadd.f32 0.0, %v1801
        %v1803 = vpop.f32.mrf.mxu0
        %v1804 = vadd.f32 0.0, %v1803
        %1805 = vmatmul.bf16.gmra.mxu0 %v1770
        %v1806 = vpop.f32.mrf.mxu0
        %v1807 = vadd.f32 0.0, %v1806
        %v1808 = vpop.f32.mrf.mxu0
        %v1809 = vadd.f32 0.0, %v1808
        %1810 = vmatmul.bf16.gmra.mxu0 %v1773
        %v1811 = vpop.f32.mrf.mxu0
        %v1812 = vadd.f32 0.0, %v1811
        %v1813 = vpop.f32.mrf.mxu0
        %v1814 = vadd.f32 0.0, %v1813
        %1815 = vmatmul.bf16.gmra.mxu0 %v1776
        %v1816 = vpop.f32.mrf.mxu0
        %v1817 = vadd.f32 0.0, %v1816
        %v1818 = vpop.f32.mrf.mxu0
        %v1819 = vadd.f32 0.0, %v1818
        %1820 = vmatmul.bf16.gmra.mxu0 %v1779
        %v1821 = vpop.f32.mrf.mxu0
        %v1822 = vadd.f32 0.0, %v1821
        %v1823 = vpop.f32.mrf.mxu0
        %v1824 = vadd.f32 0.0, %v1823
        %1825 = vmatmul.bf16.gmra.mxu0 %v1782
        %v1826 = vpop.f32.mrf.mxu0
        %v1827 = vadd.f32 0.0, %v1826
        %v1828 = vpop.f32.mrf.mxu0
        %v1829 = vadd.f32 0.0, %v1828
        %1830 = vmatmul.bf16.gmra.mxu0 %v1785
        %v1831 = vpop.f32.mrf.mxu0
        %v1832 = vadd.f32 0.0, %v1831
        %v1833 = vpop.f32.mrf.mxu0
        %v1834 = vadd.f32 0.0, %v1833
        %1835 = vdwg.mxu0
        %v1836 = vadd.f32 %v1693, %v1797
        %v1837 = vadd.f32 %v1694, %v1799
        %v1838 = vadd.f32 %v1695, %v1802
        %v1839 = vadd.f32 %v1696, %v1804
        %v1840 = vadd.f32 %v1697, %v1807
        %v1841 = vadd.f32 %v1698, %v1809
        %v1842 = vadd.f32 %v1699, %v1812
        %v1843 = vadd.f32 %v1700, %v1814
        %v1844 = vadd.f32 %v1701, %v1817
        %v1845 = vadd.f32 %v1702, %v1819
        %v1846 = vadd.f32 %v1703, %v1822
        %v1847 = vadd.f32 %v1704, %v1824
        %v1848 = vadd.f32 %v1705, %v1827
        %v1849 = vadd.f32 %v1706, %v1829
        %v1850 = vadd.f32 %v1707, %v1832
        %v1851 = vadd.f32 %v1708, %v1834
        %v1852 = vld [vmem:[#allocation2 + $0x10] sm:$0xf]
        %v1853 = vld [vmem:[#allocation2 + $0x14] sm:$0xf]
        %v1854 = vld [vmem:[#allocation2 + $0x18] sm:$0xf]
        %v1855 = vld [vmem:[#allocation2 + $0x1c] sm:$0xf]
        %v1856 = vld [vmem:[#allocation2 + $0x20] sm:$0xf]
        %v1857 = vld [vmem:[#allocation2 + $0x24] sm:$0xf]
        %v1858 = vld [vmem:[#allocation2 + $0x28] sm:$0xf]
        %v1859 = vld [vmem:[#allocation2 + $0x2c] sm:$0xf]
        %v1860 = vld [vmem:[#allocation2 + $0x30] sm:$0xf]
        %v1861 = vld [vmem:[#allocation2 + $0x34] sm:$0xf]
        %v1862 = vld [vmem:[#allocation2 + $0x38] sm:$0xf]
        %v1863 = vld [vmem:[#allocation2 + $0x3c] sm:$0xf]
        %v1864 = vld [vmem:[#allocation2 + $0x40] sm:$0xf]
        %v1865 = vld [vmem:[#allocation2 + $0x44] sm:$0xf]
        %v1866 = vld [vmem:[#allocation2 + $0x48] sm:$0xf]
        %v1867 = vld [vmem:[#allocation2 + $0x4c] sm:$0xf]
        %s1868 = scalar_lea.vmem %s2, 192
        %v1869 = vld [vmem:[%s1868] sm:$0xf]
        %v1870 = vld [vmem:[%s1868 + $0x4] sm:$0xf]
        %v1871 = vld [vmem:[%s1868 + $0x8] sm:$0xf]
        %v1872 = vld [vmem:[%s1868 + $0xc] sm:$0xf]
        %v1873 = vld [vmem:[%s1868 + $0x10] sm:$0xf]
        %v1874 = vld [vmem:[%s1868 + $0x14] sm:$0xf]
        %v1875 = vld [vmem:[%s1868 + $0x18] sm:$0xf]
        %v1876 = vld [vmem:[%s1868 + $0x1c] sm:$0xf]
        %v1893 = vunpack.c.l.b16 %v1852
        %v1894 = vunpack.c.l.b16 %v1853
        %v1895 = vunpack.c.l.b16 %v1854
        %v1896 = vunpack.c.l.b16 %v1855
        %v1897 = vunpack.c.l.b16 %v1856
        %v1898 = vunpack.c.l.b16 %v1857
        %v1899 = vunpack.c.l.b16 %v1858
        %v1900 = vunpack.c.l.b16 %v1859
        %v1901 = vunpack.c.l.b16 %v1860
        %v1902 = vunpack.c.l.b16 %v1861
        %v1903 = vunpack.c.l.b16 %v1862
        %v1904 = vunpack.c.l.b16 %v1863
        %v1905 = vunpack.c.l.b16 %v1864
        %v1906 = vunpack.c.l.b16 %v1865
        %v1907 = vunpack.c.l.b16 %v1866
        %v1908 = vunpack.c.l.b16 %v1867
        %v1909 = vpack.c.b16 %v1894, %v1893
        %v1910 = vpack.c.b16 %v1896, %v1895
        %v1911 = vpack.c.b16 %v1898, %v1897
        %v1912 = vpack.c.b16 %v1900, %v1899
        %v1913 = vpack.c.b16 %v1902, %v1901
        %v1914 = vpack.c.b16 %v1904, %v1903
        %v1915 = vpack.c.b16 %v1906, %v1905
        %v1916 = vpack.c.b16 %v1908, %v1907
        %v1925 = vunpack.c.l.b16 %v1869
        %v1926 = vunpack.c.l.b16 %v1870
        %v1927 = vunpack.c.l.b16 %v1871
        %v1928 = vunpack.c.l.b16 %v1872
        %v1929 = vunpack.c.l.b16 %v1873
        %v1930 = vunpack.c.l.b16 %v1874
        %v1931 = vunpack.c.l.b16 %v1875
        %v1932 = vunpack.c.l.b16 %v1876
        %v1933 = vpack.c.b16 %v1926, %v1925
        %v1934 = vpack.c.b16 %v1928, %v1927
        %v1935 = vpack.c.b16 %v1930, %v1929
        %v1936 = vpack.c.b16 %v1932, %v1931
        %v1942 = vsel %vm974, %v1909, 0
        %v1945 = vsel %vm974, %v1910, 0
        %v1948 = vsel %vm974, %v1911, 0
        %v1951 = vsel %vm974, %v1912, 0
        %v1954 = vsel %vm974, %v1913, 0
        %v1957 = vsel %vm974, %v1914, 0
        %v1960 = vsel %vm974, %v1915, 0
        %v1963 = vsel %vm974, %v1916, 0
        %1965 = vmatpush.bf16.msra.mxu0 0
        %1966 = vmatpush.bf16.msra.mxu0 0
        %1967 = vmatpush.bf16.msra.mxu0 0
        %1968 = vmatpush.bf16.msra.mxu0 0
        %1969 = vmatpush.bf16.msra.mxu0 %v1936
        %1970 = vmatpush.bf16.msra.mxu0 %v1935
        %1971 = vmatpush.bf16.msra.mxu0 %v1934
        %1972 = vmatpush.bf16.msra.mxu0 %v1933
        %1973 = vmatmul.bf16.gmra.mxu0 %v1942
        %v1974 = vpop.f32.mrf.mxu0
        %v1975 = vadd.f32 0.0, %v1974
        %v1976 = vpop.f32.mrf.mxu0
        %v1977 = vadd.f32 0.0, %v1976
        %1978 = vmatmul.bf16.gmra.mxu0 %v1945
        %v1979 = vpop.f32.mrf.mxu0
        %v1980 = vadd.f32 0.0, %v1979
        %v1981 = vpop.f32.mrf.mxu0
        %v1982 = vadd.f32 0.0, %v1981
        %1983 = vmatmul.bf16.gmra.mxu0 %v1948
        %v1984 = vpop.f32.mrf.mxu0
        %v1985 = vadd.f32 0.0, %v1984
        %v1986 = vpop.f32.mrf.mxu0
        %v1987 = vadd.f32 0.0, %v1986
        %1988 = vmatmul.bf16.gmra.mxu0 %v1951
        %v1989 = vpop.f32.mrf.mxu0
        %v1990 = vadd.f32 0.0, %v1989
        %v1991 = vpop.f32.mrf.mxu0
        %v1992 = vadd.f32 0.0, %v1991
        %1993 = vmatmul.bf16.gmra.mxu0 %v1954
        %v1994 = vpop.f32.mrf.mxu0
        %v1995 = vadd.f32 0.0, %v1994
        %v1996 = vpop.f32.mrf.mxu0
        %v1997 = vadd.f32 0.0, %v1996
        %1998 = vmatmul.bf16.gmra.mxu0 %v1957
        %v1999 = vpop.f32.mrf.mxu0
        %v2000 = vadd.f32 0.0, %v1999
        %v2001 = vpop.f32.mrf.mxu0
        %v2002 = vadd.f32 0.0, %v2001
        %2003 = vmatmul.bf16.gmra.mxu0 %v1960
        %v2004 = vpop.f32.mrf.mxu0
        %v2005 = vadd.f32 0.0, %v2004
        %v2006 = vpop.f32.mrf.mxu0
        %v2007 = vadd.f32 0.0, %v2006
        %2008 = vmatmul.bf16.gmra.mxu0 %v1963
        %v2009 = vpop.f32.mrf.mxu0
        %v2010 = vadd.f32 0.0, %v2009
        %v2011 = vpop.f32.mrf.mxu0
        %v2012 = vadd.f32 0.0, %v2011
        %2013 = vdwg.mxu0
        %v2014 = vadd.f32 %v1836, %v1975
        %v2015 = vadd.f32 %v1837, %v1977
        %v2016 = vadd.f32 %v1838, %v1980
        %v2017 = vadd.f32 %v1839, %v1982
        %v2018 = vadd.f32 %v1840, %v1985
        %v2019 = vadd.f32 %v1841, %v1987
        %v2020 = vadd.f32 %v1842, %v1990
        %v2021 = vadd.f32 %v1843, %v1992
        %v2022 = vadd.f32 %v1844, %v1995
        %v2023 = vadd.f32 %v1845, %v1997
        %v2024 = vadd.f32 %v1846, %v2000
        %v2025 = vadd.f32 %v1847, %v2002
        %v2026 = vadd.f32 %v1848, %v2005
        %v2027 = vadd.f32 %v1849, %v2007
        %v2028 = vadd.f32 %v1850, %v2010
        %v2029 = vadd.f32 %v1851, %v2012
        %v2030 = vld [vmem:[#allocation2 + $0x10] sm:$0xf]
        %v2031 = vld [vmem:[#allocation2 + $0x14] sm:$0xf]
        %v2032 = vld [vmem:[#allocation2 + $0x18] sm:$0xf]
        %v2033 = vld [vmem:[#allocation2 + $0x1c] sm:$0xf]
        %v2034 = vld [vmem:[#allocation2 + $0x20] sm:$0xf]
        %v2035 = vld [vmem:[#allocation2 + $0x24] sm:$0xf]
        %v2036 = vld [vmem:[#allocation2 + $0x28] sm:$0xf]
        %v2037 = vld [vmem:[#allocation2 + $0x2c] sm:$0xf]
        %v2038 = vld [vmem:[#allocation2 + $0x30] sm:$0xf]
        %v2039 = vld [vmem:[#allocation2 + $0x34] sm:$0xf]
        %v2040 = vld [vmem:[#allocation2 + $0x38] sm:$0xf]
        %v2041 = vld [vmem:[#allocation2 + $0x3c] sm:$0xf]
        %v2042 = vld [vmem:[#allocation2 + $0x40] sm:$0xf]
        %v2043 = vld [vmem:[#allocation2 + $0x44] sm:$0xf]
        %v2044 = vld [vmem:[#allocation2 + $0x48] sm:$0xf]
        %v2045 = vld [vmem:[#allocation2 + $0x4c] sm:$0xf]
        %v2046 = vld [vmem:[#allocation2 + $0x50] sm:$0x1]
        %s2047 = scalar_lea.vmem %s2, 224
        %v2048 = vld [vmem:[%s2047] sm:$0xf]
        %v2049 = vld [vmem:[%s2047 + $0x4] sm:$0xf]
        %v2050 = vld [vmem:[%s2047 + $0x8] sm:$0xf]
        %v2051 = vld [vmem:[%s2047 + $0xc] sm:$0xf]
        %v2052 = vld [vmem:[%s2047 + $0x10] sm:$0xf]
        %v2053 = vld [vmem:[%s2047 + $0x14] sm:$0xf]
        %v2054 = vld [vmem:[%s2047 + $0x18] sm:$0xf]
        %v2055 = vld [vmem:[%s2047 + $0x1c] sm:$0xf]
        %v2073 = vunpack.c.l.b16 %v2030
        %v2074 = vunpack.c.l.b16 %v2031
        %v2075 = vunpack.c.l.b16 %v2032
        %v2076 = vunpack.c.l.b16 %v2033
        %v2077 = vunpack.c.l.b16 %v2034
        %v2078 = vunpack.c.l.b16 %v2035
        %v2079 = vunpack.c.l.b16 %v2036
        %v2080 = vunpack.c.l.b16 %v2037
        %v2081 = vunpack.c.l.b16 %v2038
        %v2082 = vunpack.c.l.b16 %v2039
        %v2083 = vunpack.c.l.b16 %v2040
        %v2084 = vunpack.c.l.b16 %v2041
        %v2085 = vunpack.c.l.b16 %v2042
        %v2086 = vunpack.c.l.b16 %v2043
        %v2087 = vunpack.c.l.b16 %v2044
        %v2088 = vunpack.c.l.b16 %v2045
        %v2089 = vunpack.c.l.b16 %v2046
        %v2090 = vpack.c.b16 %v2074, %v2073
        %v2091 = vpack.c.b16 %v2076, %v2075
        %v2092 = vpack.c.b16 %v2078, %v2077
        %v2093 = vpack.c.b16 %v2080, %v2079
        %v2094 = vpack.c.b16 %v2082, %v2081
        %v2095 = vpack.c.b16 %v2084, %v2083
        %v2096 = vpack.c.b16 %v2086, %v2085
        %v2097 = vpack.c.b16 %v2088, %v2087
        %v2098 = vpack.c.b16 %v2089, %v2089
        %v2100 = vshrl.u32 %v2090, 16
        %v2102 = vshll.u32 %v2090, 16
        %v2104 = vrot.slane %v2102, 1
        %v2105 = vor.u32 %v2100, %v2104
        %v2107 = vshll.u32 %v2091, 16
        %v2109 = vrot.slane %v2107, 1
        %v2110 = vsel %vm881, %v2105, %v2109
        %v2111 = vshrl.u32 %v2091, 16
        %v2113 = vor.u32 %v2111, %v2109
        %v2115 = vshll.u32 %v2092, 16
        %v2117 = vrot.slane %v2115, 1
        %v2118 = vsel %vm881, %v2113, %v2117
        %v2119 = vshrl.u32 %v2092, 16
        %v2121 = vor.u32 %v2119, %v2117
        %v2123 = vshll.u32 %v2093, 16
        %v2125 = vrot.slane %v2123, 1
        %v2126 = vsel %vm881, %v2121, %v2125
        %v2127 = vshrl.u32 %v2093, 16
        %v2129 = vor.u32 %v2127, %v2125
        %v2131 = vshll.u32 %v2094, 16
        %v2133 = vrot.slane %v2131, 1
        %v2134 = vsel %vm881, %v2129, %v2133
        %v2135 = vshrl.u32 %v2094, 16
        %v2137 = vor.u32 %v2135, %v2133
        %v2139 = vshll.u32 %v2095, 16
        %v2141 = vrot.slane %v2139, 1
        %v2142 = vsel %vm881, %v2137, %v2141
        %v2143 = vshrl.u32 %v2095, 16
        %v2145 = vor.u32 %v2143, %v2141
        %v2147 = vshll.u32 %v2096, 16
        %v2149 = vrot.slane %v2147, 1
        %v2150 = vsel %vm881, %v2145, %v2149
        %v2151 = vshrl.u32 %v2096, 16
        %v2153 = vor.u32 %v2151, %v2149
        %v2155 = vshll.u32 %v2097, 16
        %v2157 = vrot.slane %v2155, 1
        %v2158 = vsel %vm881, %v2153, %v2157
        %v2159 = vshrl.u32 %v2097, 16
        %v2161 = vor.u32 %v2159, %v2157
        %v2163 = vshll.u32 %v2098, 16
        %v2165 = vrot.slane %v2163, 1
        %v2166 = vsel %vm881, %v2161, %v2165
        %v2175 = vunpack.c.l.b16 %v2048
        %v2176 = vunpack.c.l.b16 %v2049
        %v2177 = vunpack.c.l.b16 %v2050
        %v2178 = vunpack.c.l.b16 %v2051
        %v2179 = vunpack.c.l.b16 %v2052
        %v2180 = vunpack.c.l.b16 %v2053
        %v2181 = vunpack.c.l.b16 %v2054
        %v2182 = vunpack.c.l.b16 %v2055
        %v2183 = vpack.c.b16 %v2176, %v2175
        %v2184 = vpack.c.b16 %v2178, %v2177
        %v2185 = vpack.c.b16 %v2180, %v2179
        %v2186 = vpack.c.b16 %v2182, %v2181
        %v2192 = vsel %vm974, %v2110, 0
        %v2195 = vsel %vm974, %v2118, 0
        %v2198 = vsel %vm974, %v2126, 0
        %v2201 = vsel %vm974, %v2134, 0
        %v2204 = vsel %vm974, %v2142, 0
        %v2207 = vsel %vm974, %v2150, 0
        %v2210 = vsel %vm974, %v2158, 0
        %v2213 = vsel %vm974, %v2166, 0
        %2215 = vmatpush.bf16.msra.mxu0 0
        %2216 = vmatpush.bf16.msra.mxu0 0
        %2217 = vmatpush.bf16.msra.mxu0 0
        %2218 = vmatpush.bf16.msra.mxu0 0
        %2219 = vmatpush.bf16.msra.mxu0 %v2186
        %2220 = vmatpush.bf16.msra.mxu0 %v2185
        %2221 = vmatpush.bf16.msra.mxu0 %v2184
        %2222 = vmatpush.bf16.msra.mxu0 %v2183
        %2223 = vmatmul.bf16.gmra.mxu0 %v2192
        %v2224 = vpop.f32.mrf.mxu0
        %v2225 = vadd.f32 0.0, %v2224
        %v2226 = vpop.f32.mrf.mxu0
        %v2227 = vadd.f32 0.0, %v2226
        %2228 = vmatmul.bf16.gmra.mxu0 %v2195
        %v2229 = vpop.f32.mrf.mxu0
        %v2230 = vadd.f32 0.0, %v2229
        %v2231 = vpop.f32.mrf.mxu0
        %v2232 = vadd.f32 0.0, %v2231
        %2233 = vmatmul.bf16.gmra.mxu0 %v2198
        %v2234 = vpop.f32.mrf.mxu0
        %v2235 = vadd.f32 0.0, %v2234
        %v2236 = vpop.f32.mrf.mxu0
        %v2237 = vadd.f32 0.0, %v2236
        %2238 = vmatmul.bf16.gmra.mxu0 %v2201
        %v2239 = vpop.f32.mrf.mxu0
        %v2240 = vadd.f32 0.0, %v2239
        %v2241 = vpop.f32.mrf.mxu0
        %v2242 = vadd.f32 0.0, %v2241
        %2243 = vmatmul.bf16.gmra.mxu0 %v2204
        %v2244 = vpop.f32.mrf.mxu0
        %v2245 = vadd.f32 0.0, %v2244
        %v2246 = vpop.f32.mrf.mxu0
        %v2247 = vadd.f32 0.0, %v2246
        %2248 = vmatmul.bf16.gmra.mxu0 %v2207
        %v2249 = vpop.f32.mrf.mxu0
        %v2250 = vadd.f32 0.0, %v2249
        %v2251 = vpop.f32.mrf.mxu0
        %v2252 = vadd.f32 0.0, %v2251
        %2253 = vmatmul.bf16.gmra.mxu0 %v2210
        %v2254 = vpop.f32.mrf.mxu0
        %v2255 = vadd.f32 0.0, %v2254
        %v2256 = vpop.f32.mrf.mxu0
        %v2257 = vadd.f32 0.0, %v2256
        %2258 = vmatmul.bf16.gmra.mxu0 %v2213
        %v2259 = vpop.f32.mrf.mxu0
        %v2260 = vadd.f32 0.0, %v2259
        %v2261 = vpop.f32.mrf.mxu0
        %v2262 = vadd.f32 0.0, %v2261
        %2263 = vdwg.mxu0
        %v2264 = vadd.f32 %v2014, %v2225
        %v2265 = vadd.f32 %v2015, %v2227
        %v2266 = vadd.f32 %v2016, %v2230
        %v2267 = vadd.f32 %v2017, %v2232
        %v2268 = vadd.f32 %v2018, %v2235
        %v2269 = vadd.f32 %v2019, %v2237
        %v2270 = vadd.f32 %v2020, %v2240
        %v2271 = vadd.f32 %v2021, %v2242
        %v2272 = vadd.f32 %v2022, %v2245
        %v2273 = vadd.f32 %v2023, %v2247
        %v2274 = vadd.f32 %v2024, %v2250
        %v2275 = vadd.f32 %v2025, %v2252
        %v2276 = vadd.f32 %v2026, %v2255
        %v2277 = vadd.f32 %v2027, %v2257
        %v2278 = vadd.f32 %v2028, %v2260
        %v2279 = vadd.f32 %v2029, %v2262
        %v2280 = vld [vmem:[#allocation2 + $0x10] sm:$0xe]
        %s2281 = scalar_lea.vmem %s2, 256
        %v2282 = vld [vmem:[%s2281] sm:$0xf]
        %v2283 = vld [vmem:[%s2281 + $0x4] sm:$0xf]
        %v2284 = vld [vmem:[%s2281 + $0x8] sm:$0xf]
        %v2285 = vld [vmem:[%s2281 + $0xc] sm:$0xf]
        %v2286 = vld [vmem:[%s2281 + $0x10] sm:$0xf]
        %v2287 = vld [vmem:[%s2281 + $0x14] sm:$0xf]
        %v2288 = vld [vmem:[%s2281 + $0x18] sm:$0xf]
        %v2289 = vld [vmem:[%s2281 + $0x1c] sm:$0xf]
        %v2291 = vunpack.c.l.b16 %v2280
        %v2292 = vpack.c.b16 %v2074, %v2291
        %v2293 = vrot.slane %v2292, 1
        %v2294 = vrot.slane %v2091, 1
        %v2295 = vsel %vm1150, %v2293, %v2294
        %v2296 = vrot.slane %v2092, 1
        %v2297 = vsel %vm1150, %v2294, %v2296
        %v2298 = vrot.slane %v2093, 1
        %v2299 = vsel %vm1150, %v2296, %v2298
        %v2300 = vrot.slane %v2094, 1
        %v2301 = vsel %vm1150, %v2298, %v2300
        %v2302 = vrot.slane %v2095, 1
        %v2303 = vsel %vm1150, %v2300, %v2302
        %v2304 = vrot.slane %v2096, 1
        %v2305 = vsel %vm1150, %v2302, %v2304
        %v2306 = vrot.slane %v2097, 1
        %v2307 = vsel %vm1150, %v2304, %v2306
        %v2308 = vrot.slane %v2098, 1
        %v2309 = vsel %vm1150, %v2306, %v2308
        %v2318 = vunpack.c.l.b16 %v2282
        %v2319 = vunpack.c.l.b16 %v2283
        %v2320 = vunpack.c.l.b16 %v2284
        %v2321 = vunpack.c.l.b16 %v2285
        %v2322 = vunpack.c.l.b16 %v2286
        %v2323 = vunpack.c.l.b16 %v2287
        %v2324 = vunpack.c.l.b16 %v2288
        %v2325 = vunpack.c.l.b16 %v2289
        %v2326 = vpack.c.b16 %v2319, %v2318
        %v2327 = vpack.c.b16 %v2321, %v2320
        %v2328 = vpack.c.b16 %v2323, %v2322
        %v2329 = vpack.c.b16 %v2325, %v2324
        %v2335 = vsel %vm974, %v2295, 0
        %v2338 = vsel %vm974, %v2297, 0
        %v2341 = vsel %vm974, %v2299, 0
        %v2344 = vsel %vm974, %v2301, 0
        %v2347 = vsel %vm974, %v2303, 0
        %v2350 = vsel %vm974, %v2305, 0
        %v2353 = vsel %vm974, %v2307, 0
        %v2356 = vsel %vm974, %v2309, 0
        %2358 = vmatpush.bf16.msra.mxu0 0
        %2359 = vmatpush.bf16.msra.mxu0 0
        %2360 = vmatpush.bf16.msra.mxu0 0
        %2361 = vmatpush.bf16.msra.mxu0 0
        %2362 = vmatpush.bf16.msra.mxu0 %v2329
        %2363 = vmatpush.bf16.msra.mxu0 %v2328
        %2364 = vmatpush.bf16.msra.mxu0 %v2327
        %2365 = vmatpush.bf16.msra.mxu0 %v2326
        %2366 = vmatmul.bf16.gmra.mxu0 %v2335
        %v2367 = vpop.f32.mrf.mxu0
        %v2368 = vadd.f32 0.0, %v2367
        %v2369 = vpop.f32.mrf.mxu0
        %v2370 = vadd.f32 0.0, %v2369
        %2371 = vmatmul.bf16.gmra.mxu0 %v2338
        %v2372 = vpop.f32.mrf.mxu0
        %v2373 = vadd.f32 0.0, %v2372
        %v2374 = vpop.f32.mrf.mxu0
        %v2375 = vadd.f32 0.0, %v2374
        %2376 = vmatmul.bf16.gmra.mxu0 %v2341
        %v2377 = vpop.f32.mrf.mxu0
        %v2378 = vadd.f32 0.0, %v2377
        %v2379 = vpop.f32.mrf.mxu0
        %v2380 = vadd.f32 0.0, %v2379
        %2381 = vmatmul.bf16.gmra.mxu0 %v2344
        %v2382 = vpop.f32.mrf.mxu0
        %v2383 = vadd.f32 0.0, %v2382
        %v2384 = vpop.f32.mrf.mxu0
        %v2385 = vadd.f32 0.0, %v2384
        %2386 = vmatmul.bf16.gmra.mxu0 %v2347
        %v2387 = vpop.f32.mrf.mxu0
        %v2388 = vadd.f32 0.0, %v2387
        %v2389 = vpop.f32.mrf.mxu0
        %v2390 = vadd.f32 0.0, %v2389
        %2391 = vmatmul.bf16.gmra.mxu0 %v2350
        %v2392 = vpop.f32.mrf.mxu0
        %v2393 = vadd.f32 0.0, %v2392
        %v2394 = vpop.f32.mrf.mxu0
        %v2395 = vadd.f32 0.0, %v2394
        %2396 = vmatmul.bf16.gmra.mxu0 %v2353
        %v2397 = vpop.f32.mrf.mxu0
        %v2398 = vadd.f32 0.0, %v2397
        %v2399 = vpop.f32.mrf.mxu0
        %v2400 = vadd.f32 0.0, %v2399
        %2401 = vmatmul.bf16.gmra.mxu0 %v2356
        %v2402 = vpop.f32.mrf.mxu0
        %v2403 = vadd.f32 0.0, %v2402
        %v2404 = vpop.f32.mrf.mxu0
        %v2405 = vadd.f32 0.0, %v2404
        %2406 = vdwg.mxu0
        %v2407 = vadd.f32 %v2264, %v2368
        %v2408 = vadd.f32 %v2265, %v2370
        %v2409 = vadd.f32 %v2266, %v2373
        %v2410 = vadd.f32 %v2267, %v2375
        %v2411 = vadd.f32 %v2268, %v2378
        %v2412 = vadd.f32 %v2269, %v2380
        %v2413 = vadd.f32 %v2270, %v2383
        %v2414 = vadd.f32 %v2271, %v2385
        %v2415 = vadd.f32 %v2272, %v2388
        %v2416 = vadd.f32 %v2273, %v2390
        %v2417 = vadd.f32 %v2274, %v2393
        %v2418 = vadd.f32 %v2275, %v2395
        %v2419 = vadd.f32 %v2276, %v2398
        %v2420 = vadd.f32 %v2277, %v2400
        %v2421 = vadd.f32 %v2278, %v2403
        %v2422 = vadd.f32 %v2279, %v2405
        %v2423 = vld [vmem:[%s4 + $0x2] sm:$0x1]
        %v2424 = vld [vmem:[%s4 + $0x3] sm:$0x1]
        %v2425 = vperm.slane %v2423, 0
        %v2426 = vmul.f32 %v2407, %v2425
        %v2427 = vmul.f32 %v2408, %v2425
        %v2428 = vmul.f32 %v2409, %v2425
        %v2429 = vmul.f32 %v2410, %v2425
        %v2430 = vmul.f32 %v2411, %v2425
        %v2431 = vmul.f32 %v2412, %v2425
        %v2432 = vmul.f32 %v2413, %v2425
        %v2433 = vmul.f32 %v2414, %v2425
        %v2434 = vmul.f32 %v2415, %v2425
        %v2435 = vmul.f32 %v2416, %v2425
        %v2436 = vmul.f32 %v2417, %v2425
        %v2437 = vmul.f32 %v2418, %v2425
        %v2438 = vmul.f32 %v2419, %v2425
        %v2439 = vmul.f32 %v2420, %v2425
        %v2440 = vmul.f32 %v2421, %v2425
        %v2441 = vmul.f32 %v2422, %v2425
        %v2442 = vperm.slane %v2424, 0
        %v2443 = vadd.f32 %v2426, %v2442
        %v2444 = vadd.f32 %v2427, %v2442
        %v2445 = vadd.f32 %v2428, %v2442
        %v2446 = vadd.f32 %v2429, %v2442
        %v2447 = vadd.f32 %v2430, %v2442
        %v2448 = vadd.f32 %v2431, %v2442
        %v2449 = vadd.f32 %v2432, %v2442
        %v2450 = vadd.f32 %v2433, %v2442
        %v2451 = vadd.f32 %v2434, %v2442
        %v2452 = vadd.f32 %v2435, %v2442
        %v2453 = vadd.f32 %v2436, %v2442
        %v2454 = vadd.f32 %v2437, %v2442
        %v2455 = vadd.f32 %v2438, %v2442
        %v2456 = vadd.f32 %v2439, %v2442
        %v2457 = vadd.f32 %v2440, %v2442
        %v2458 = vadd.f32 %v2441, %v2442
        %v2459 = vmax.f32 %v2443, 0.0
        %v2460 = vmax.f32 %v2444, 0.0
        %v2461 = vmax.f32 %v2445, 0.0
        %v2462 = vmax.f32 %v2446, 0.0
        %v2463 = vmax.f32 %v2447, 0.0
        %v2464 = vmax.f32 %v2448, 0.0
        %v2465 = vmax.f32 %v2449, 0.0
        %v2466 = vmax.f32 %v2450, 0.0
        %v2467 = vmax.f32 %v2451, 0.0
        %v2468 = vmax.f32 %v2452, 0.0
        %v2469 = vmax.f32 %v2453, 0.0
        %v2470 = vmax.f32 %v2454, 0.0
        %v2471 = vmax.f32 %v2455, 0.0
        %v2472 = vmax.f32 %v2456, 0.0
        %v2473 = vmax.f32 %v2457, 0.0
        %v2474 = vmax.f32 %v2458, 0.0
        %2475 = vst.msk [vmem:[#allocation3] sm:$0xf] %vm496, 0
        %2476 = vst.msk [vmem:[#allocation3 + $0x4] sm:$0xf] %vm496, 0
        %2477 = vst.msk [vmem:[#allocation3 + $0x8] sm:$0xf] %vm496, 0
        %2478 = vst.msk [vmem:[#allocation3 + $0x48] sm:$0xf] %vm496, 0
        %2479 = vst.msk [vmem:[#allocation3 + $0x4c] sm:$0xf] %vm496, 0
        %2480 = vst.msk [vmem:[#allocation3 + $0x50] sm:$0xf] %vm496, 0
        %v2481 = vmul.f32 %v2459, %v506
        %v2482 = vmul.f32 %v2460, %v511
        %v2483 = vmul.f32 %v2461, %v516
        %v2484 = vmul.f32 %v2462, %v521
        %v2485 = vmul.f32 %v2463, %v526
        %v2486 = vmul.f32 %v2464, %v531
        %v2487 = vmul.f32 %v2465, %v536
        %v2488 = vmul.f32 %v2466, %v541
        %v2489 = vmul.f32 %v2467, %v546
        %v2490 = vmul.f32 %v2468, %v551
        %v2491 = vmul.f32 %v2469, %v556
        %v2492 = vmul.f32 %v2470, %v561
        %v2493 = vmul.f32 %v2471, %v566
        %v2494 = vmul.f32 %v2472, %v571
        %v2495 = vmul.f32 %v2473, %v576
        %v2496 = vmul.f32 %v2474, %v581
        %v2497 = vpack.c.bf16 %v2481, %v2481
        %v2498 = vpack.c.bf16 %v2482, %v2482
        %v2499 = vpack.c.bf16 %v2483, %v2483
        %v2500 = vpack.c.bf16 %v2484, %v2484
        %v2501 = vpack.c.bf16 %v2485, %v2485
        %v2502 = vpack.c.bf16 %v2486, %v2486
        %v2503 = vpack.c.bf16 %v2487, %v2487
        %v2504 = vpack.c.bf16 %v2488, %v2488
        %v2505 = vpack.c.bf16 %v2489, %v2489
        %v2506 = vpack.c.bf16 %v2490, %v2490
        %v2507 = vpack.c.bf16 %v2491, %v2491
        %v2508 = vpack.c.bf16 %v2492, %v2492
        %v2509 = vpack.c.bf16 %v2493, %v2493
        %v2510 = vpack.c.bf16 %v2494, %v2494
        %v2511 = vpack.c.bf16 %v2495, %v2495
        %v2512 = vpack.c.bf16 %v2496, %v2496
        %v2514 = vshrl.u32 %v2497, 16
        %v2516 = vrot.slane %v2514, 7
        %v2517 = vshll.u32 %v2497, 16
        %v2519 = vor.u32 %v2516, %v2517
        %v2520 = vrot.slane %v2516, 4
        %v2522 = vshrl.u32 %v2498, 16
        %v2524 = vrot.slane %v2522, 7
        %v2525 = vshll.u32 %v2498, 16
        %v2527 = vor.u32 %v2524, %v2525
        %v2528 = vsel %vm617, %v2520, %v2527
        %v2529 = vrot.slane %v2524, 4
        %v2531 = vshrl.u32 %v2499, 16
        %v2533 = vrot.slane %v2531, 7
        %v2534 = vshll.u32 %v2499, 16
        %v2536 = vor.u32 %v2533, %v2534
        %v2537 = vsel %vm617, %v2529, %v2536
        %v2538 = vrot.slane %v2533, 4
        %v2540 = vshrl.u32 %v2500, 16
        %v2542 = vrot.slane %v2540, 7
        %v2543 = vshll.u32 %v2500, 16
        %v2545 = vor.u32 %v2542, %v2543
        %v2546 = vsel %vm617, %v2538, %v2545
        %v2547 = vrot.slane %v2542, 4
        %v2549 = vshrl.u32 %v2501, 16
        %v2551 = vrot.slane %v2549, 7
        %v2552 = vshll.u32 %v2501, 16
        %v2554 = vor.u32 %v2551, %v2552
        %v2555 = vsel %vm617, %v2547, %v2554
        %v2556 = vrot.slane %v2551, 4
        %v2558 = vshrl.u32 %v2502, 16
        %v2560 = vrot.slane %v2558, 7
        %v2561 = vshll.u32 %v2502, 16
        %v2563 = vor.u32 %v2560, %v2561
        %v2564 = vsel %vm617, %v2556, %v2563
        %v2565 = vrot.slane %v2560, 4
        %v2567 = vshrl.u32 %v2503, 16
        %v2569 = vrot.slane %v2567, 7
        %v2570 = vshll.u32 %v2503, 16
        %v2572 = vor.u32 %v2569, %v2570
        %v2573 = vsel %vm617, %v2565, %v2572
        %v2574 = vrot.slane %v2569, 4
        %v2576 = vshrl.u32 %v2504, 16
        %v2578 = vrot.slane %v2576, 7
        %v2579 = vshll.u32 %v2504, 16
        %v2581 = vor.u32 %v2578, %v2579
        %v2582 = vsel %vm617, %v2574, %v2581
        %v2583 = vrot.slane %v2578, 4
        %v2585 = vshrl.u32 %v2505, 16
        %v2587 = vrot.slane %v2585, 7
        %v2588 = vshll.u32 %v2505, 16
        %v2590 = vor.u32 %v2587, %v2588
        %v2591 = vsel %vm617, %v2583, %v2590
        %v2592 = vrot.slane %v2587, 4
        %v2594 = vshrl.u32 %v2506, 16
        %v2596 = vrot.slane %v2594, 7
        %v2597 = vshll.u32 %v2506, 16
        %v2599 = vor.u32 %v2596, %v2597
        %v2600 = vsel %vm617, %v2592, %v2599
        %v2601 = vrot.slane %v2596, 4
        %v2603 = vshrl.u32 %v2507, 16
        %v2605 = vrot.slane %v2603, 7
        %v2606 = vshll.u32 %v2507, 16
        %v2608 = vor.u32 %v2605, %v2606
        %v2609 = vsel %vm617, %v2601, %v2608
        %v2610 = vrot.slane %v2605, 4
        %v2612 = vshrl.u32 %v2508, 16
        %v2614 = vrot.slane %v2612, 7
        %v2615 = vshll.u32 %v2508, 16
        %v2617 = vor.u32 %v2614, %v2615
        %v2618 = vsel %vm617, %v2610, %v2617
        %v2619 = vrot.slane %v2614, 4
        %v2621 = vshrl.u32 %v2509, 16
        %v2623 = vrot.slane %v2621, 7
        %v2624 = vshll.u32 %v2509, 16
        %v2626 = vor.u32 %v2623, %v2624
        %v2627 = vsel %vm617, %v2619, %v2626
        %v2628 = vrot.slane %v2623, 4
        %v2630 = vshrl.u32 %v2510, 16
        %v2632 = vrot.slane %v2630, 7
        %v2633 = vshll.u32 %v2510, 16
        %v2635 = vor.u32 %v2632, %v2633
        %v2636 = vsel %vm617, %v2628, %v2635
        %v2637 = vrot.slane %v2632, 4
        %v2639 = vshrl.u32 %v2511, 16
        %v2641 = vrot.slane %v2639, 7
        %v2642 = vshll.u32 %v2511, 16
        %v2644 = vor.u32 %v2641, %v2642
        %v2645 = vsel %vm617, %v2637, %v2644
        %v2646 = vrot.slane %v2641, 4
        %v2648 = vshrl.u32 %v2512, 16
        %v2650 = vrot.slane %v2648, 7
        %v2651 = vshll.u32 %v2512, 16
        %v2653 = vor.u32 %v2650, %v2651
        %v2654 = vsel %vm617, %v2646, %v2653
        %v2655 = vrot.slane %v2650, 4
        %v2673 = vld [vmem:[#allocation3 + $0x8] sm:$0xf]
        %v2674 = vsel %vm780, %v2519, %v2673
        %2675 = vst [vmem:[#allocation3 + $0x8] sm:$0xf] %v2674
        %2676 = vst.msk [vmem:[#allocation3 + $0xc] sm:$0xf] %vm496, %v2528
        %2677 = vst.msk [vmem:[#allocation3 + $0x10] sm:$0xf] %vm496, %v2537
        %2678 = vst.msk [vmem:[#allocation3 + $0x14] sm:$0xf] %vm496, %v2546
        %2679 = vst.msk [vmem:[#allocation3 + $0x18] sm:$0xf] %vm496, %v2555
        %2680 = vst.msk [vmem:[#allocation3 + $0x1c] sm:$0xf] %vm496, %v2564
        %2681 = vst.msk [vmem:[#allocation3 + $0x20] sm:$0xf] %vm496, %v2573
        %2682 = vst.msk [vmem:[#allocation3 + $0x24] sm:$0xf] %vm496, %v2582
        %2683 = vst.msk [vmem:[#allocation3 + $0x28] sm:$0xf] %vm496, %v2591
        %2684 = vst.msk [vmem:[#allocation3 + $0x2c] sm:$0xf] %vm496, %v2600
        %2685 = vst.msk [vmem:[#allocation3 + $0x30] sm:$0xf] %vm496, %v2609
        %2686 = vst.msk [vmem:[#allocation3 + $0x34] sm:$0xf] %vm496, %v2618
        %2687 = vst.msk [vmem:[#allocation3 + $0x38] sm:$0xf] %vm496, %v2627
        %2688 = vst.msk [vmem:[#allocation3 + $0x3c] sm:$0xf] %vm496, %v2636
        %2689 = vst.msk [vmem:[#allocation3 + $0x40] sm:$0xf] %vm496, %v2645
        %2690 = vst.msk [vmem:[#allocation3 + $0x44] sm:$0xf] %vm496, %v2654
        %v2691 = vld [vmem:[#allocation3 + $0x48] sm:$0x1]
        %v2692 = vsel %vm800, %v2655, %v2691
        %2693 = vst [vmem:[#allocation3 + $0x48] sm:$0x1] %v2692
        %v2694 = vld [vmem:[#allocation3] sm:$0xf]
        %v2695 = vld [vmem:[#allocation3 + $0x4] sm:$0xf]
        %v2696 = vld [vmem:[#allocation3 + $0x8] sm:$0xf]
        %v2697 = vld [vmem:[#allocation3 + $0xc] sm:$0xf]
        %v2698 = vld [vmem:[#allocation3 + $0x10] sm:$0xf]
        %v2699 = vld [vmem:[#allocation3 + $0x14] sm:$0xf]
        %v2700 = vld [vmem:[#allocation3 + $0x18] sm:$0xf]
        %v2701 = vld [vmem:[#allocation3 + $0x1c] sm:$0xf]
        %v2702 = vld [vmem:[#allocation3 + $0x20] sm:$0xf]
        %v2703 = vld [vmem:[#allocation3 + $0x24] sm:$0xf]
        %v2704 = vld [vmem:[#allocation3 + $0x28] sm:$0xf]
        %v2705 = vld [vmem:[#allocation3 + $0x2c] sm:$0xf]
        %v2706 = vld [vmem:[#allocation3 + $0x30] sm:$0xf]
        %v2707 = vld [vmem:[#allocation3 + $0x34] sm:$0xf]
        %v2708 = vld [vmem:[#allocation3 + $0x38] sm:$0xf]
        %v2709 = vld [vmem:[#allocation3 + $0x3c] sm:$0xf]
        %v2710 = vld [vmem:[%s3] sm:$0xf]
        %v2711 = vld [vmem:[%s3 + $0x4] sm:$0xf]
        %v2712 = vld [vmem:[%s3 + $0x8] sm:$0xf]
        %v2713 = vld [vmem:[%s3 + $0xc] sm:$0xf]
        %v2714 = vld [vmem:[%s3 + $0x10] sm:$0xf]
        %v2715 = vld [vmem:[%s3 + $0x14] sm:$0xf]
        %v2716 = vld [vmem:[%s3 + $0x18] sm:$0xf]
        %v2717 = vld [vmem:[%s3 + $0x1c] sm:$0xf]
        %v2718 = vld [vmem:[#allocation3 + $0x40] sm:$0x1]
        %s2719 = scalar_lea.vmem %s3, 32
        %v2720 = vld [vmem:[%s2719] sm:$0xf]
        %v2721 = vld [vmem:[%s2719 + $0x4] sm:$0xf]
        %v2722 = vld [vmem:[%s2719 + $0x8] sm:$0xf]
        %v2723 = vld [vmem:[%s2719 + $0xc] sm:$0xf]
        %v2724 = vld [vmem:[%s2719 + $0x10] sm:$0xf]
        %v2725 = vld [vmem:[%s2719 + $0x14] sm:$0xf]
        %v2726 = vld [vmem:[%s2719 + $0x18] sm:$0xf]
        %v2727 = vld [vmem:[%s2719 + $0x1c] sm:$0xf]
        %v2745 = vunpack.c.l.b16 %v2694
        %v2746 = vunpack.c.l.b16 %v2695
        %v2747 = vunpack.c.l.b16 %v2696
        %v2748 = vunpack.c.l.b16 %v2697
        %v2749 = vunpack.c.l.b16 %v2698
        %v2750 = vunpack.c.l.b16 %v2699
        %v2751 = vunpack.c.l.b16 %v2700
        %v2752 = vunpack.c.l.b16 %v2701
        %v2753 = vunpack.c.l.b16 %v2702
        %v2754 = vunpack.c.l.b16 %v2703
        %v2755 = vunpack.c.l.b16 %v2704
        %v2756 = vunpack.c.l.b16 %v2705
        %v2757 = vunpack.c.l.b16 %v2706
        %v2758 = vunpack.c.l.b16 %v2707
        %v2759 = vunpack.c.l.b16 %v2708
        %v2760 = vunpack.c.l.b16 %v2709
        %v2761 = vunpack.c.l.b16 %v2718
        %v2762 = vpack.c.b16 %v2746, %v2745
        %v2763 = vpack.c.b16 %v2748, %v2747
        %v2764 = vpack.c.b16 %v2750, %v2749
        %v2765 = vpack.c.b16 %v2752, %v2751
        %v2766 = vpack.c.b16 %v2754, %v2753
        %v2767 = vpack.c.b16 %v2756, %v2755
        %v2768 = vpack.c.b16 %v2758, %v2757
        %v2769 = vpack.c.b16 %v2760, %v2759
        %v2770 = vpack.c.b16 %v2761, %v2761
        %v2772 = vshrl.u32 %v2762, 16
        %v2774 = vshll.u32 %v2762, 16
        %v2776 = vrot.slane %v2774, 1
        %v2777 = vor.u32 %v2772, %v2776
        %v2779 = vshll.u32 %v2763, 16
        %v2781 = vrot.slane %v2779, 1
        %v2782 = vsel %vm881, %v2777, %v2781
        %v2783 = vshrl.u32 %v2763, 16
        %v2785 = vor.u32 %v2783, %v2781
        %v2787 = vshll.u32 %v2764, 16
        %v2789 = vrot.slane %v2787, 1
        %v2790 = vsel %vm881, %v2785, %v2789
        %v2791 = vshrl.u32 %v2764, 16
        %v2793 = vor.u32 %v2791, %v2789
        %v2795 = vshll.u32 %v2765, 16
        %v2797 = vrot.slane %v2795, 1
        %v2798 = vsel %vm881, %v2793, %v2797
        %v2799 = vshrl.u32 %v2765, 16
        %v2801 = vor.u32 %v2799, %v2797
        %v2803 = vshll.u32 %v2766, 16
        %v2805 = vrot.slane %v2803, 1
        %v2806 = vsel %vm881, %v2801, %v2805
        %v2807 = vshrl.u32 %v2766, 16
        %v2809 = vor.u32 %v2807, %v2805
        %v2811 = vshll.u32 %v2767, 16
        %v2813 = vrot.slane %v2811, 1
        %v2814 = vsel %vm881, %v2809, %v2813
        %v2815 = vshrl.u32 %v2767, 16
        %v2817 = vor.u32 %v2815, %v2813
        %v2819 = vshll.u32 %v2768, 16
        %v2821 = vrot.slane %v2819, 1
        %v2822 = vsel %vm881, %v2817, %v2821
        %v2823 = vshrl.u32 %v2768, 16
        %v2825 = vor.u32 %v2823, %v2821
        %v2827 = vshll.u32 %v2769, 16
        %v2829 = vrot.slane %v2827, 1
        %v2830 = vsel %vm881, %v2825, %v2829
        %v2831 = vshrl.u32 %v2769, 16
        %v2833 = vor.u32 %v2831, %v2829
        %v2835 = vshll.u32 %v2770, 16
        %v2837 = vrot.slane %v2835, 1
        %v2838 = vsel %vm881, %v2833, %v2837
        %v2847 = vunpack.c.l.b16 %v2720
        %v2848 = vunpack.c.l.b16 %v2721
        %v2849 = vunpack.c.l.b16 %v2722
        %v2850 = vunpack.c.l.b16 %v2723
        %v2851 = vunpack.c.l.b16 %v2724
        %v2852 = vunpack.c.l.b16 %v2725
        %v2853 = vunpack.c.l.b16 %v2726
        %v2854 = vunpack.c.l.b16 %v2727
        %v2855 = vpack.c.b16 %v2848, %v2847
        %v2856 = vpack.c.b16 %v2850, %v2849
        %v2857 = vpack.c.b16 %v2852, %v2851
        %v2858 = vpack.c.b16 %v2854, %v2853
        %v2864 = vsel %vm974, %v2782, 0
        %v2867 = vsel %vm974, %v2790, 0
        %v2870 = vsel %vm974, %v2798, 0
        %v2873 = vsel %vm974, %v2806, 0
        %v2876 = vsel %vm974, %v2814, 0
        %v2879 = vsel %vm974, %v2822, 0
        %v2882 = vsel %vm974, %v2830, 0
        %v2885 = vsel %vm974, %v2838, 0
        %2887 = vmatpush.bf16.msra.mxu0 0
        %2888 = vmatpush.bf16.msra.mxu0 0
        %2889 = vmatpush.bf16.msra.mxu0 0
        %2890 = vmatpush.bf16.msra.mxu0 0
        %2891 = vmatpush.bf16.msra.mxu0 %v2858
        %2892 = vmatpush.bf16.msra.mxu0 %v2857
        %2893 = vmatpush.bf16.msra.mxu0 %v2856
        %2894 = vmatpush.bf16.msra.mxu0 %v2855
        %2895 = vmatmul.bf16.gmra.mxu0 %v2864
        %v2896 = vpop.f32.mrf.mxu0
        %v2897 = vadd.f32 0.0, %v2896
        %v2898 = vpop.f32.mrf.mxu0
        %2899 = vmatmul.bf16.gmra.mxu0 %v2867
        %v2900 = vpop.f32.mrf.mxu0
        %v2901 = vadd.f32 0.0, %v2900
        %v2902 = vpop.f32.mrf.mxu0
        %2903 = vmatmul.bf16.gmra.mxu0 %v2870
        %v2904 = vpop.f32.mrf.mxu0
        %v2905 = vadd.f32 0.0, %v2904
        %v2906 = vpop.f32.mrf.mxu0
        %2907 = vmatmul.bf16.gmra.mxu0 %v2873
        %v2908 = vpop.f32.mrf.mxu0
        %v2909 = vadd.f32 0.0, %v2908
        %v2910 = vpop.f32.mrf.mxu0
        %2911 = vmatmul.bf16.gmra.mxu0 %v2876
        %v2912 = vpop.f32.mrf.mxu0
        %v2913 = vadd.f32 0.0, %v2912
        %v2914 = vpop.f32.mrf.mxu0
        %2915 = vmatmul.bf16.gmra.mxu0 %v2879
        %v2916 = vpop.f32.mrf.mxu0
        %v2917 = vadd.f32 0.0, %v2916
        %v2918 = vpop.f32.mrf.mxu0
        %2919 = vmatmul.bf16.gmra.mxu0 %v2882
        %v2920 = vpop.f32.mrf.mxu0
        %v2921 = vadd.f32 0.0, %v2920
        %v2922 = vpop.f32.mrf.mxu0
        %2923 = vmatmul.bf16.gmra.mxu0 %v2885
        %v2924 = vpop.f32.mrf.mxu0
        %v2925 = vadd.f32 0.0, %v2924
        %v2926 = vpop.f32.mrf.mxu0
        %2927 = vdwg.mxu0
        %v2936 = vunpack.c.l.b16 %v2710
        %v2937 = vunpack.c.l.b16 %v2711
        %v2938 = vunpack.c.l.b16 %v2712
        %v2939 = vunpack.c.l.b16 %v2713
        %v2940 = vunpack.c.l.b16 %v2714
        %v2941 = vunpack.c.l.b16 %v2715
        %v2942 = vunpack.c.l.b16 %v2716
        %v2943 = vunpack.c.l.b16 %v2717
        %v2944 = vpack.c.b16 %v2937, %v2936
        %v2945 = vpack.c.b16 %v2939, %v2938
        %v2946 = vpack.c.b16 %v2941, %v2940
        %v2947 = vpack.c.b16 %v2943, %v2942
        %v2952 = vsel %vm974, %v2762, 0
        %v2954 = vsel %vm974, %v2763, 0
        %v2956 = vsel %vm974, %v2764, 0
        %v2958 = vsel %vm974, %v2765, 0
        %v2960 = vsel %vm974, %v2766, 0
        %v2962 = vsel %vm974, %v2767, 0
        %v2964 = vsel %vm974, %v2768, 0
        %v2966 = vsel %vm974, %v2769, 0
        %2968 = vmatpush.bf16.msra.mxu0 0
        %2969 = vmatpush.bf16.msra.mxu0 0
        %2970 = vmatpush.bf16.msra.mxu0 0
        %2971 = vmatpush.bf16.msra.mxu0 0
        %2972 = vmatpush.bf16.msra.mxu0 %v2947
        %2973 = vmatpush.bf16.msra.mxu0 %v2946
        %2974 = vmatpush.bf16.msra.mxu0 %v2945
        %2975 = vmatpush.bf16.msra.mxu0 %v2944
        %2976 = vmatmul.bf16.gmra.mxu0 %v2952
        %v2977 = vpop.f32.mrf.mxu0
        %v2978 = vadd.f32 %v2897, %v2977
        %v2979 = vpop.f32.mrf.mxu0
        %2980 = vmatmul.bf16.gmra.mxu0 %v2954
        %v2981 = vpop.f32.mrf.mxu0
        %v2982 = vadd.f32 %v2901, %v2981
        %v2983 = vpop.f32.mrf.mxu0
        %2984 = vmatmul.bf16.gmra.mxu0 %v2956
        %v2985 = vpop.f32.mrf.mxu0
        %v2986 = vadd.f32 %v2905, %v2985
        %v2987 = vpop.f32.mrf.mxu0
        %2988 = vmatmul.bf16.gmra.mxu0 %v2958
        %v2989 = vpop.f32.mrf.mxu0
        %v2990 = vadd.f32 %v2909, %v2989
        %v2991 = vpop.f32.mrf.mxu0
        %2992 = vmatmul.bf16.gmra.mxu0 %v2960
        %v2993 = vpop.f32.mrf.mxu0
        %v2994 = vadd.f32 %v2913, %v2993
        %v2995 = vpop.f32.mrf.mxu0
        %2996 = vmatmul.bf16.gmra.mxu0 %v2962
        %v2997 = vpop.f32.mrf.mxu0
        %v2998 = vadd.f32 %v2917, %v2997
        %v2999 = vpop.f32.mrf.mxu0
        %3000 = vmatmul.bf16.gmra.mxu0 %v2964
        %v3001 = vpop.f32.mrf.mxu0
        %v3002 = vadd.f32 %v2921, %v3001
        %v3003 = vpop.f32.mrf.mxu0
        %3004 = vmatmul.bf16.gmra.mxu0 %v2966
        %v3005 = vpop.f32.mrf.mxu0
        %v3006 = vadd.f32 %v2925, %v3005
        %v3007 = vpop.f32.mrf.mxu0
        %3008 = vdwg.mxu0
        %v3009 = vld [vmem:[#allocation3] sm:$0xe]
        %s3010 = scalar_lea.vmem %s3, 64
        %v3011 = vld [vmem:[%s3010] sm:$0xf]
        %v3012 = vld [vmem:[%s3010 + $0x4] sm:$0xf]
        %v3013 = vld [vmem:[%s3010 + $0x8] sm:$0xf]
        %v3014 = vld [vmem:[%s3010 + $0xc] sm:$0xf]
        %v3015 = vld [vmem:[%s3010 + $0x10] sm:$0xf]
        %v3016 = vld [vmem:[%s3010 + $0x14] sm:$0xf]
        %v3017 = vld [vmem:[%s3010 + $0x18] sm:$0xf]
        %v3018 = vld [vmem:[%s3010 + $0x1c] sm:$0xf]
        %v3020 = vunpack.c.l.b16 %v3009
        %v3021 = vpack.c.b16 %v2746, %v3020
        %v3022 = vrot.slane %v3021, 1
        %v3023 = vrot.slane %v2763, 1
        %v3024 = vsel %vm1150, %v3022, %v3023
        %v3025 = vrot.slane %v2764, 1
        %v3026 = vsel %vm1150, %v3023, %v3025
        %v3027 = vrot.slane %v2765, 1
        %v3028 = vsel %vm1150, %v3025, %v3027
        %v3029 = vrot.slane %v2766, 1
        %v3030 = vsel %vm1150, %v3027, %v3029
        %v3031 = vrot.slane %v2767, 1
        %v3032 = vsel %vm1150, %v3029, %v3031
        %v3033 = vrot.slane %v2768, 1
        %v3034 = vsel %vm1150, %v3031, %v3033
        %v3035 = vrot.slane %v2769, 1
        %v3036 = vsel %vm1150, %v3033, %v3035
        %v3037 = vrot.slane %v2770, 1
        %v3038 = vsel %vm1150, %v3035, %v3037
        %v3047 = vunpack.c.l.b16 %v3011
        %v3048 = vunpack.c.l.b16 %v3012
        %v3049 = vunpack.c.l.b16 %v3013
        %v3050 = vunpack.c.l.b16 %v3014
        %v3051 = vunpack.c.l.b16 %v3015
        %v3052 = vunpack.c.l.b16 %v3016
        %v3053 = vunpack.c.l.b16 %v3017
        %v3054 = vunpack.c.l.b16 %v3018
        %v3055 = vpack.c.b16 %v3048, %v3047
        %v3056 = vpack.c.b16 %v3050, %v3049
        %v3057 = vpack.c.b16 %v3052, %v3051
        %v3058 = vpack.c.b16 %v3054, %v3053
        %v3064 = vsel %vm974, %v3024, 0
        %v3067 = vsel %vm974, %v3026, 0
        %v3070 = vsel %vm974, %v3028, 0
        %v3073 = vsel %vm974, %v3030, 0
        %v3076 = vsel %vm974, %v3032, 0
        %v3079 = vsel %vm974, %v3034, 0
        %v3082 = vsel %vm974, %v3036, 0
        %v3085 = vsel %vm974, %v3038, 0
        %3087 = vmatpush.bf16.msra.mxu0 0
        %3088 = vmatpush.bf16.msra.mxu0 0
        %3089 = vmatpush.bf16.msra.mxu0 0
        %3090 = vmatpush.bf16.msra.mxu0 0
        %3091 = vmatpush.bf16.msra.mxu0 %v3058
        %3092 = vmatpush.bf16.msra.mxu0 %v3057
        %3093 = vmatpush.bf16.msra.mxu0 %v3056
        %3094 = vmatpush.bf16.msra.mxu0 %v3055
        %3095 = vmatmul.bf16.gmra.mxu0 %v3064
        %v3096 = vpop.f32.mrf.mxu0
        %v3097 = vadd.f32 0.0, %v3096
        %v3098 = vpop.f32.mrf.mxu0
        %3099 = vmatmul.bf16.gmra.mxu0 %v3067
        %v3100 = vpop.f32.mrf.mxu0
        %v3101 = vadd.f32 0.0, %v3100
        %v3102 = vpop.f32.mrf.mxu0
        %3103 = vmatmul.bf16.gmra.mxu0 %v3070
        %v3104 = vpop.f32.mrf.mxu0
        %v3105 = vadd.f32 0.0, %v3104
        %v3106 = vpop.f32.mrf.mxu0
        %3107 = vmatmul.bf16.gmra.mxu0 %v3073
        %v3108 = vpop.f32.mrf.mxu0
        %v3109 = vadd.f32 0.0, %v3108
        %v3110 = vpop.f32.mrf.mxu0
        %3111 = vmatmul.bf16.gmra.mxu0 %v3076
        %v3112 = vpop.f32.mrf.mxu0
        %v3113 = vadd.f32 0.0, %v3112
        %v3114 = vpop.f32.mrf.mxu0
        %3115 = vmatmul.bf16.gmra.mxu0 %v3079
        %v3116 = vpop.f32.mrf.mxu0
        %v3117 = vadd.f32 0.0, %v3116
        %v3118 = vpop.f32.mrf.mxu0
        %3119 = vmatmul.bf16.gmra.mxu0 %v3082
        %v3120 = vpop.f32.mrf.mxu0
        %v3121 = vadd.f32 0.0, %v3120
        %v3122 = vpop.f32.mrf.mxu0
        %3123 = vmatmul.bf16.gmra.mxu0 %v3085
        %v3124 = vpop.f32.mrf.mxu0
        %v3125 = vadd.f32 0.0, %v3124
        %v3126 = vpop.f32.mrf.mxu0
        %3127 = vdwg.mxu0
        %v3128 = vadd.f32 %v2978, %v3097
        %v3129 = vadd.f32 %v2982, %v3101
        %v3130 = vadd.f32 %v2986, %v3105
        %v3131 = vadd.f32 %v2990, %v3109
        %v3132 = vadd.f32 %v2994, %v3113
        %v3133 = vadd.f32 %v2998, %v3117
        %v3134 = vadd.f32 %v3002, %v3121
        %v3135 = vadd.f32 %v3006, %v3125
        %v3136 = vld [vmem:[#allocation3 + $0x8] sm:$0xf]
        %v3137 = vld [vmem:[#allocation3 + $0xc] sm:$0xf]
        %v3138 = vld [vmem:[#allocation3 + $0x10] sm:$0xf]
        %v3139 = vld [vmem:[#allocation3 + $0x14] sm:$0xf]
        %v3140 = vld [vmem:[#allocation3 + $0x18] sm:$0xf]
        %v3141 = vld [vmem:[#allocation3 + $0x1c] sm:$0xf]
        %v3142 = vld [vmem:[#allocation3 + $0x20] sm:$0xf]
        %v3143 = vld [vmem:[#allocation3 + $0x24] sm:$0xf]
        %v3144 = vld [vmem:[#allocation3 + $0x28] sm:$0xf]
        %v3145 = vld [vmem:[#allocation3 + $0x2c] sm:$0xf]
        %v3146 = vld [vmem:[#allocation3 + $0x30] sm:$0xf]
        %v3147 = vld [vmem:[#allocation3 + $0x34] sm:$0xf]
        %v3148 = vld [vmem:[#allocation3 + $0x38] sm:$0xf]
        %v3149 = vld [vmem:[#allocation3 + $0x3c] sm:$0xf]
        %v3150 = vld [vmem:[#allocation3 + $0x40] sm:$0xf]
        %v3151 = vld [vmem:[#allocation3 + $0x44] sm:$0xf]
        %s3152 = scalar_lea.vmem %s3, 96
        %v3153 = vld [vmem:[%s3152] sm:$0xf]
        %v3154 = vld [vmem:[%s3152 + $0x4] sm:$0xf]
        %v3155 = vld [vmem:[%s3152 + $0x8] sm:$0xf]
        %v3156 = vld [vmem:[%s3152 + $0xc] sm:$0xf]
        %v3157 = vld [vmem:[%s3152 + $0x10] sm:$0xf]
        %v3158 = vld [vmem:[%s3152 + $0x14] sm:$0xf]
        %v3159 = vld [vmem:[%s3152 + $0x18] sm:$0xf]
        %v3160 = vld [vmem:[%s3152 + $0x1c] sm:$0xf]
        %v3177 = vunpack.c.l.b16 %v3136
        %v3178 = vunpack.c.l.b16 %v3137
        %v3179 = vunpack.c.l.b16 %v3138
        %v3180 = vunpack.c.l.b16 %v3139
        %v3181 = vunpack.c.l.b16 %v3140
        %v3182 = vunpack.c.l.b16 %v3141
        %v3183 = vunpack.c.l.b16 %v3142
        %v3184 = vunpack.c.l.b16 %v3143
        %v3185 = vunpack.c.l.b16 %v3144
        %v3186 = vunpack.c.l.b16 %v3145
        %v3187 = vunpack.c.l.b16 %v3146
        %v3188 = vunpack.c.l.b16 %v3147
        %v3189 = vunpack.c.l.b16 %v3148
        %v3190 = vunpack.c.l.b16 %v3149
        %v3191 = vunpack.c.l.b16 %v3150
        %v3192 = vunpack.c.l.b16 %v3151
        %v3193 = vpack.c.b16 %v3178, %v3177
        %v3194 = vpack.c.b16 %v3180, %v3179
        %v3195 = vpack.c.b16 %v3182, %v3181
        %v3196 = vpack.c.b16 %v3184, %v3183
        %v3197 = vpack.c.b16 %v3186, %v3185
        %v3198 = vpack.c.b16 %v3188, %v3187
        %v3199 = vpack.c.b16 %v3190, %v3189
        %v3200 = vpack.c.b16 %v3192, %v3191
        %v3209 = vunpack.c.l.b16 %v3153
        %v3210 = vunpack.c.l.b16 %v3154
        %v3211 = vunpack.c.l.b16 %v3155
        %v3212 = vunpack.c.l.b16 %v3156
        %v3213 = vunpack.c.l.b16 %v3157
        %v3214 = vunpack.c.l.b16 %v3158
        %v3215 = vunpack.c.l.b16 %v3159
        %v3216 = vunpack.c.l.b16 %v3160
        %v3217 = vpack.c.b16 %v3210, %v3209
        %v3218 = vpack.c.b16 %v3212, %v3211
        %v3219 = vpack.c.b16 %v3214, %v3213
        %v3220 = vpack.c.b16 %v3216, %v3215
        %v3226 = vsel %vm974, %v3193, 0
        %v3229 = vsel %vm974, %v3194, 0
        %v3232 = vsel %vm974, %v3195, 0
        %v3235 = vsel %vm974, %v3196, 0
        %v3238 = vsel %vm974, %v3197, 0
        %v3241 = vsel %vm974, %v3198, 0
        %v3244 = vsel %vm974, %v3199, 0
        %v3247 = vsel %vm974, %v3200, 0
        %3249 = vmatpush.bf16.msra.mxu0 0
        %3250 = vmatpush.bf16.msra.mxu0 0
        %3251 = vmatpush.bf16.msra.mxu0 0
        %3252 = vmatpush.bf16.msra.mxu0 0
        %3253 = vmatpush.bf16.msra.mxu0 %v3220
        %3254 = vmatpush.bf16.msra.mxu0 %v3219
        %3255 = vmatpush.bf16.msra.mxu0 %v3218
        %3256 = vmatpush.bf16.msra.mxu0 %v3217
        %3257 = vmatmul.bf16.gmra.mxu0 %v3226
        %v3258 = vpop.f32.mrf.mxu0
        %v3259 = vadd.f32 0.0, %v3258
        %v3260 = vpop.f32.mrf.mxu0
        %3261 = vmatmul.bf16.gmra.mxu0 %v3229
        %v3262 = vpop.f32.mrf.mxu0
        %v3263 = vadd.f32 0.0, %v3262
        %v3264 = vpop.f32.mrf.mxu0
        %3265 = vmatmul.bf16.gmra.mxu0 %v3232
        %v3266 = vpop.f32.mrf.mxu0
        %v3267 = vadd.f32 0.0, %v3266
        %v3268 = vpop.f32.mrf.mxu0
        %3269 = vmatmul.bf16.gmra.mxu0 %v3235
        %v3270 = vpop.f32.mrf.mxu0
        %v3271 = vadd.f32 0.0, %v3270
        %v3272 = vpop.f32.mrf.mxu0
        %3273 = vmatmul.bf16.gmra.mxu0 %v3238
        %v3274 = vpop.f32.mrf.mxu0
        %v3275 = vadd.f32 0.0, %v3274
        %v3276 = vpop.f32.mrf.mxu0
        %3277 = vmatmul.bf16.gmra.mxu0 %v3241
        %v3278 = vpop.f32.mrf.mxu0
        %v3279 = vadd.f32 0.0, %v3278
        %v3280 = vpop.f32.mrf.mxu0
        %3281 = vmatmul.bf16.gmra.mxu0 %v3244
        %v3282 = vpop.f32.mrf.mxu0
        %v3283 = vadd.f32 0.0, %v3282
        %v3284 = vpop.f32.mrf.mxu0
        %3285 = vmatmul.bf16.gmra.mxu0 %v3247
        %v3286 = vpop.f32.mrf.mxu0
        %v3287 = vadd.f32 0.0, %v3286
        %v3288 = vpop.f32.mrf.mxu0
        %3289 = vdwg.mxu0
        %v3290 = vadd.f32 %v3128, %v3259
        %v3291 = vadd.f32 %v3129, %v3263
        %v3292 = vadd.f32 %v3130, %v3267
        %v3293 = vadd.f32 %v3131, %v3271
        %v3294 = vadd.f32 %v3132, %v3275
        %v3295 = vadd.f32 %v3133, %v3279
        %v3296 = vadd.f32 %v3134, %v3283
        %v3297 = vadd.f32 %v3135, %v3287
        %v3298 = vld [vmem:[#allocation3 + $0x8] sm:$0xf]
        %v3299 = vld [vmem:[#allocation3 + $0xc] sm:$0xf]
        %v3300 = vld [vmem:[#allocation3 + $0x10] sm:$0xf]
        %v3301 = vld [vmem:[#allocation3 + $0x14] sm:$0xf]
        %v3302 = vld [vmem:[#allocation3 + $0x18] sm:$0xf]
        %v3303 = vld [vmem:[#allocation3 + $0x1c] sm:$0xf]
        %v3304 = vld [vmem:[#allocation3 + $0x20] sm:$0xf]
        %v3305 = vld [vmem:[#allocation3 + $0x24] sm:$0xf]
        %v3306 = vld [vmem:[#allocation3 + $0x28] sm:$0xf]
        %v3307 = vld [vmem:[#allocation3 + $0x2c] sm:$0xf]
        %v3308 = vld [vmem:[#allocation3 + $0x30] sm:$0xf]
        %v3309 = vld [vmem:[#allocation3 + $0x34] sm:$0xf]
        %v3310 = vld [vmem:[#allocation3 + $0x38] sm:$0xf]
        %v3311 = vld [vmem:[#allocation3 + $0x3c] sm:$0xf]
        %v3312 = vld [vmem:[#allocation3 + $0x40] sm:$0xf]
        %v3313 = vld [vmem:[#allocation3 + $0x44] sm:$0xf]
        %v3314 = vld [vmem:[#allocation3 + $0x48] sm:$0x1]
        %s3315 = scalar_lea.vmem %s3, 128
        %v3316 = vld [vmem:[%s3315] sm:$0xf]
        %v3317 = vld [vmem:[%s3315 + $0x4] sm:$0xf]
        %v3318 = vld [vmem:[%s3315 + $0x8] sm:$0xf]
        %v3319 = vld [vmem:[%s3315 + $0xc] sm:$0xf]
        %v3320 = vld [vmem:[%s3315 + $0x10] sm:$0xf]
        %v3321 = vld [vmem:[%s3315 + $0x14] sm:$0xf]
        %v3322 = vld [vmem:[%s3315 + $0x18] sm:$0xf]
        %v3323 = vld [vmem:[%s3315 + $0x1c] sm:$0xf]
        %v3341 = vunpack.c.l.b16 %v3298
        %v3342 = vunpack.c.l.b16 %v3299
        %v3343 = vunpack.c.l.b16 %v3300
        %v3344 = vunpack.c.l.b16 %v3301
        %v3345 = vunpack.c.l.b16 %v3302
        %v3346 = vunpack.c.l.b16 %v3303
        %v3347 = vunpack.c.l.b16 %v3304
        %v3348 = vunpack.c.l.b16 %v3305
        %v3349 = vunpack.c.l.b16 %v3306
        %v3350 = vunpack.c.l.b16 %v3307
        %v3351 = vunpack.c.l.b16 %v3308
        %v3352 = vunpack.c.l.b16 %v3309
        %v3353 = vunpack.c.l.b16 %v3310
        %v3354 = vunpack.c.l.b16 %v3311
        %v3355 = vunpack.c.l.b16 %v3312
        %v3356 = vunpack.c.l.b16 %v3313
        %v3357 = vunpack.c.l.b16 %v3314
        %v3358 = vpack.c.b16 %v3342, %v3341
        %v3359 = vpack.c.b16 %v3344, %v3343
        %v3360 = vpack.c.b16 %v3346, %v3345
        %v3361 = vpack.c.b16 %v3348, %v3347
        %v3362 = vpack.c.b16 %v3350, %v3349
        %v3363 = vpack.c.b16 %v3352, %v3351
        %v3364 = vpack.c.b16 %v3354, %v3353
        %v3365 = vpack.c.b16 %v3356, %v3355
        %v3366 = vpack.c.b16 %v3357, %v3357
        %v3368 = vshrl.u32 %v3358, 16
        %v3370 = vshll.u32 %v3358, 16
        %v3372 = vrot.slane %v3370, 1
        %v3373 = vor.u32 %v3368, %v3372
        %v3375 = vshll.u32 %v3359, 16
        %v3377 = vrot.slane %v3375, 1
        %v3378 = vsel %vm881, %v3373, %v3377
        %v3379 = vshrl.u32 %v3359, 16
        %v3381 = vor.u32 %v3379, %v3377
        %v3383 = vshll.u32 %v3360, 16
        %v3385 = vrot.slane %v3383, 1
        %v3386 = vsel %vm881, %v3381, %v3385
        %v3387 = vshrl.u32 %v3360, 16
        %v3389 = vor.u32 %v3387, %v3385
        %v3391 = vshll.u32 %v3361, 16
        %v3393 = vrot.slane %v3391, 1
        %v3394 = vsel %vm881, %v3389, %v3393
        %v3395 = vshrl.u32 %v3361, 16
        %v3397 = vor.u32 %v3395, %v3393
        %v3399 = vshll.u32 %v3362, 16
        %v3401 = vrot.slane %v3399, 1
        %v3402 = vsel %vm881, %v3397, %v3401
        %v3403 = vshrl.u32 %v3362, 16
        %v3405 = vor.u32 %v3403, %v3401
        %v3407 = vshll.u32 %v3363, 16
        %v3409 = vrot.slane %v3407, 1
        %v3410 = vsel %vm881, %v3405, %v3409
        %v3411 = vshrl.u32 %v3363, 16
        %v3413 = vor.u32 %v3411, %v3409
        %v3415 = vshll.u32 %v3364, 16
        %v3417 = vrot.slane %v3415, 1
        %v3418 = vsel %vm881, %v3413, %v3417
        %v3419 = vshrl.u32 %v3364, 16
        %v3421 = vor.u32 %v3419, %v3417
        %v3423 = vshll.u32 %v3365, 16
        %v3425 = vrot.slane %v3423, 1
        %v3426 = vsel %vm881, %v3421, %v3425
        %v3427 = vshrl.u32 %v3365, 16
        %v3429 = vor.u32 %v3427, %v3425
        %v3431 = vshll.u32 %v3366, 16
        %v3433 = vrot.slane %v3431, 1
        %v3434 = vsel %vm881, %v3429, %v3433
        %v3443 = vunpack.c.l.b16 %v3316
        %v3444 = vunpack.c.l.b16 %v3317
        %v3445 = vunpack.c.l.b16 %v3318
        %v3446 = vunpack.c.l.b16 %v3319
        %v3447 = vunpack.c.l.b16 %v3320
        %v3448 = vunpack.c.l.b16 %v3321
        %v3449 = vunpack.c.l.b16 %v3322
        %v3450 = vunpack.c.l.b16 %v3323
        %v3451 = vpack.c.b16 %v3444, %v3443
        %v3452 = vpack.c.b16 %v3446, %v3445
        %v3453 = vpack.c.b16 %v3448, %v3447
        %v3454 = vpack.c.b16 %v3450, %v3449
        %v3460 = vsel %vm974, %v3378, 0
        %v3463 = vsel %vm974, %v3386, 0
        %v3466 = vsel %vm974, %v3394, 0
        %v3469 = vsel %vm974, %v3402, 0
        %v3472 = vsel %vm974, %v3410, 0
        %v3475 = vsel %vm974, %v3418, 0
        %v3478 = vsel %vm974, %v3426, 0
        %v3481 = vsel %vm974, %v3434, 0
        %3483 = vmatpush.bf16.msra.mxu0 0
        %3484 = vmatpush.bf16.msra.mxu0 0
        %3485 = vmatpush.bf16.msra.mxu0 0
        %3486 = vmatpush.bf16.msra.mxu0 0
        %3487 = vmatpush.bf16.msra.mxu0 %v3454
        %3488 = vmatpush.bf16.msra.mxu0 %v3453
        %3489 = vmatpush.bf16.msra.mxu0 %v3452
        %3490 = vmatpush.bf16.msra.mxu0 %v3451
        %3491 = vmatmul.bf16.gmra.mxu0 %v3460
        %v3492 = vpop.f32.mrf.mxu0
        %v3493 = vadd.f32 0.0, %v3492
        %v3494 = vpop.f32.mrf.mxu0
        %3495 = vmatmul.bf16.gmra.mxu0 %v3463
        %v3496 = vpop.f32.mrf.mxu0
        %v3497 = vadd.f32 0.0, %v3496
        %v3498 = vpop.f32.mrf.mxu0
        %3499 = vmatmul.bf16.gmra.mxu0 %v3466
        %v3500 = vpop.f32.mrf.mxu0
        %v3501 = vadd.f32 0.0, %v3500
        %v3502 = vpop.f32.mrf.mxu0
        %3503 = vmatmul.bf16.gmra.mxu0 %v3469
        %v3504 = vpop.f32.mrf.mxu0
        %v3505 = vadd.f32 0.0, %v3504
        %v3506 = vpop.f32.mrf.mxu0
        %3507 = vmatmul.bf16.gmra.mxu0 %v3472
        %v3508 = vpop.f32.mrf.mxu0
        %v3509 = vadd.f32 0.0, %v3508
        %v3510 = vpop.f32.mrf.mxu0
        %3511 = vmatmul.bf16.gmra.mxu0 %v3475
        %v3512 = vpop.f32.mrf.mxu0
        %v3513 = vadd.f32 0.0, %v3512
        %v3514 = vpop.f32.mrf.mxu0
        %3515 = vmatmul.bf16.gmra.mxu0 %v3478
        %v3516 = vpop.f32.mrf.mxu0
        %v3517 = vadd.f32 0.0, %v3516
        %v3518 = vpop.f32.mrf.mxu0
        %3519 = vmatmul.bf16.gmra.mxu0 %v3481
        %v3520 = vpop.f32.mrf.mxu0
        %v3521 = vadd.f32 0.0, %v3520
        %v3522 = vpop.f32.mrf.mxu0
        %3523 = vdwg.mxu0
        %v3524 = vadd.f32 %v3290, %v3493
        %v3525 = vadd.f32 %v3291, %v3497
        %v3526 = vadd.f32 %v3292, %v3501
        %v3527 = vadd.f32 %v3293, %v3505
        %v3528 = vadd.f32 %v3294, %v3509
        %v3529 = vadd.f32 %v3295, %v3513
        %v3530 = vadd.f32 %v3296, %v3517
        %v3531 = vadd.f32 %v3297, %v3521
        %v3532 = vld [vmem:[#allocation3 + $0x8] sm:$0xe]
        %s3533 = scalar_lea.vmem %s3, 160
        %v3534 = vld [vmem:[%s3533] sm:$0xf]
        %v3535 = vld [vmem:[%s3533 + $0x4] sm:$0xf]
        %v3536 = vld [vmem:[%s3533 + $0x8] sm:$0xf]
        %v3537 = vld [vmem:[%s3533 + $0xc] sm:$0xf]
        %v3538 = vld [vmem:[%s3533 + $0x10] sm:$0xf]
        %v3539 = vld [vmem:[%s3533 + $0x14] sm:$0xf]
        %v3540 = vld [vmem:[%s3533 + $0x18] sm:$0xf]
        %v3541 = vld [vmem:[%s3533 + $0x1c] sm:$0xf]
        %v3543 = vunpack.c.l.b16 %v3532
        %v3544 = vpack.c.b16 %v3342, %v3543
        %v3545 = vrot.slane %v3544, 1
        %v3546 = vrot.slane %v3359, 1
        %v3547 = vsel %vm1150, %v3545, %v3546
        %v3548 = vrot.slane %v3360, 1
        %v3549 = vsel %vm1150, %v3546, %v3548
        %v3550 = vrot.slane %v3361, 1
        %v3551 = vsel %vm1150, %v3548, %v3550
        %v3552 = vrot.slane %v3362, 1
        %v3553 = vsel %vm1150, %v3550, %v3552
        %v3554 = vrot.slane %v3363, 1
        %v3555 = vsel %vm1150, %v3552, %v3554
        %v3556 = vrot.slane %v3364, 1
        %v3557 = vsel %vm1150, %v3554, %v3556
        %v3558 = vrot.slane %v3365, 1
        %v3559 = vsel %vm1150, %v3556, %v3558
        %v3560 = vrot.slane %v3366, 1
        %v3561 = vsel %vm1150, %v3558, %v3560
        %v3570 = vunpack.c.l.b16 %v3534
        %v3571 = vunpack.c.l.b16 %v3535
        %v3572 = vunpack.c.l.b16 %v3536
        %v3573 = vunpack.c.l.b16 %v3537
        %v3574 = vunpack.c.l.b16 %v3538
        %v3575 = vunpack.c.l.b16 %v3539
        %v3576 = vunpack.c.l.b16 %v3540
        %v3577 = vunpack.c.l.b16 %v3541
        %v3578 = vpack.c.b16 %v3571, %v3570
        %v3579 = vpack.c.b16 %v3573, %v3572
        %v3580 = vpack.c.b16 %v3575, %v3574
        %v3581 = vpack.c.b16 %v3577, %v3576
        %v3587 = vsel %vm974, %v3547, 0
        %v3590 = vsel %vm974, %v3549, 0
        %v3593 = vsel %vm974, %v3551, 0
        %v3596 = vsel %vm974, %v3553, 0
        %v3599 = vsel %vm974, %v3555, 0
        %v3602 = vsel %vm974, %v3557, 0
        %v3605 = vsel %vm974, %v3559, 0
        %v3608 = vsel %vm974, %v3561, 0
        %3610 = vmatpush.bf16.msra.mxu0 0
        %3611 = vmatpush.bf16.msra.mxu0 0
        %3612 = vmatpush.bf16.msra.mxu0 0
        %3613 = vmatpush.bf16.msra.mxu0 0
        %3614 = vmatpush.bf16.msra.mxu0 %v3581
        %3615 = vmatpush.bf16.msra.mxu0 %v3580
        %3616 = vmatpush.bf16.msra.mxu0 %v3579
        %3617 = vmatpush.bf16.msra.mxu0 %v3578
        %3618 = vmatmul.bf16.gmra.mxu0 %v3587
        %v3619 = vpop.f32.mrf.mxu0
        %v3620 = vadd.f32 0.0, %v3619
        %v3621 = vpop.f32.mrf.mxu0
        %3622 = vmatmul.bf16.gmra.mxu0 %v3590
        %v3623 = vpop.f32.mrf.mxu0
        %v3624 = vadd.f32 0.0, %v3623
        %v3625 = vpop.f32.mrf.mxu0
        %3626 = vmatmul.bf16.gmra.mxu0 %v3593
        %v3627 = vpop.f32.mrf.mxu0
        %v3628 = vadd.f32 0.0, %v3627
        %v3629 = vpop.f32.mrf.mxu0
        %3630 = vmatmul.bf16.gmra.mxu0 %v3596
        %v3631 = vpop.f32.mrf.mxu0
        %v3632 = vadd.f32 0.0, %v3631
        %v3633 = vpop.f32.mrf.mxu0
        %3634 = vmatmul.bf16.gmra.mxu0 %v3599
        %v3635 = vpop.f32.mrf.mxu0
        %v3636 = vadd.f32 0.0, %v3635
        %v3637 = vpop.f32.mrf.mxu0
        %3638 = vmatmul.bf16.gmra.mxu0 %v3602
        %v3639 = vpop.f32.mrf.mxu0
        %v3640 = vadd.f32 0.0, %v3639
        %v3641 = vpop.f32.mrf.mxu0
        %3642 = vmatmul.bf16.gmra.mxu0 %v3605
        %v3643 = vpop.f32.mrf.mxu0
        %v3644 = vadd.f32 0.0, %v3643
        %v3645 = vpop.f32.mrf.mxu0
        %3646 = vmatmul.bf16.gmra.mxu0 %v3608
        %v3647 = vpop.f32.mrf.mxu0
        %v3648 = vadd.f32 0.0, %v3647
        %v3649 = vpop.f32.mrf.mxu0
        %3650 = vdwg.mxu0
        %v3651 = vadd.f32 %v3524, %v3620
        %v3652 = vadd.f32 %v3525, %v3624
        %v3653 = vadd.f32 %v3526, %v3628
        %v3654 = vadd.f32 %v3527, %v3632
        %v3655 = vadd.f32 %v3528, %v3636
        %v3656 = vadd.f32 %v3529, %v3640
        %v3657 = vadd.f32 %v3530, %v3644
        %v3658 = vadd.f32 %v3531, %v3648
        %v3659 = vld [vmem:[#allocation3 + $0x10] sm:$0xf]
        %v3660 = vld [vmem:[#allocation3 + $0x14] sm:$0xf]
        %v3661 = vld [vmem:[#allocation3 + $0x18] sm:$0xf]
        %v3662 = vld [vmem:[#allocation3 + $0x1c] sm:$0xf]
        %v3663 = vld [vmem:[#allocation3 + $0x20] sm:$0xf]
        %v3664 = vld [vmem:[#allocation3 + $0x24] sm:$0xf]
        %v3665 = vld [vmem:[#allocation3 + $0x28] sm:$0xf]
        %v3666 = vld [vmem:[#allocation3 + $0x2c] sm:$0xf]
        %v3667 = vld [vmem:[#allocation3 + $0x30] sm:$0xf]
        %v3668 = vld [vmem:[#allocation3 + $0x34] sm:$0xf]
        %v3669 = vld [vmem:[#allocation3 + $0x38] sm:$0xf]
        %v3670 = vld [vmem:[#allocation3 + $0x3c] sm:$0xf]
        %v3671 = vld [vmem:[#allocation3 + $0x40] sm:$0xf]
        %v3672 = vld [vmem:[#allocation3 + $0x44] sm:$0xf]
        %v3673 = vld [vmem:[#allocation3 + $0x48] sm:$0xf]
        %v3674 = vld [vmem:[#allocation3 + $0x4c] sm:$0xf]
        %s3675 = scalar_lea.vmem %s3, 192
        %v3676 = vld [vmem:[%s3675] sm:$0xf]
        %v3677 = vld [vmem:[%s3675 + $0x4] sm:$0xf]
        %v3678 = vld [vmem:[%s3675 + $0x8] sm:$0xf]
        %v3679 = vld [vmem:[%s3675 + $0xc] sm:$0xf]
        %v3680 = vld [vmem:[%s3675 + $0x10] sm:$0xf]
        %v3681 = vld [vmem:[%s3675 + $0x14] sm:$0xf]
        %v3682 = vld [vmem:[%s3675 + $0x18] sm:$0xf]
        %v3683 = vld [vmem:[%s3675 + $0x1c] sm:$0xf]
        %v3700 = vunpack.c.l.b16 %v3659
        %v3701 = vunpack.c.l.b16 %v3660
        %v3702 = vunpack.c.l.b16 %v3661
        %v3703 = vunpack.c.l.b16 %v3662
        %v3704 = vunpack.c.l.b16 %v3663
        %v3705 = vunpack.c.l.b16 %v3664
        %v3706 = vunpack.c.l.b16 %v3665
        %v3707 = vunpack.c.l.b16 %v3666
        %v3708 = vunpack.c.l.b16 %v3667
        %v3709 = vunpack.c.l.b16 %v3668
        %v3710 = vunpack.c.l.b16 %v3669
        %v3711 = vunpack.c.l.b16 %v3670
        %v3712 = vunpack.c.l.b16 %v3671
        %v3713 = vunpack.c.l.b16 %v3672
        %v3714 = vunpack.c.l.b16 %v3673
        %v3715 = vunpack.c.l.b16 %v3674
        %v3716 = vpack.c.b16 %v3701, %v3700
        %v3717 = vpack.c.b16 %v3703, %v3702
        %v3718 = vpack.c.b16 %v3705, %v3704
        %v3719 = vpack.c.b16 %v3707, %v3706
        %v3720 = vpack.c.b16 %v3709, %v3708
        %v3721 = vpack.c.b16 %v3711, %v3710
        %v3722 = vpack.c.b16 %v3713, %v3712
        %v3723 = vpack.c.b16 %v3715, %v3714
        %v3732 = vunpack.c.l.b16 %v3676
        %v3733 = vunpack.c.l.b16 %v3677
        %v3734 = vunpack.c.l.b16 %v3678
        %v3735 = vunpack.c.l.b16 %v3679
        %v3736 = vunpack.c.l.b16 %v3680
        %v3737 = vunpack.c.l.b16 %v3681
        %v3738 = vunpack.c.l.b16 %v3682
        %v3739 = vunpack.c.l.b16 %v3683
        %v3740 = vpack.c.b16 %v3733, %v3732
        %v3741 = vpack.c.b16 %v3735, %v3734
        %v3742 = vpack.c.b16 %v3737, %v3736
        %v3743 = vpack.c.b16 %v3739, %v3738
        %v3749 = vsel %vm974, %v3716, 0
        %v3752 = vsel %vm974, %v3717, 0
        %v3755 = vsel %vm974, %v3718, 0
        %v3758 = vsel %vm974, %v3719, 0
        %v3761 = vsel %vm974, %v3720, 0
        %v3764 = vsel %vm974, %v3721, 0
        %v3767 = vsel %vm974, %v3722, 0
        %v3770 = vsel %vm974, %v3723, 0
        %3772 = vmatpush.bf16.msra.mxu0 0
        %3773 = vmatpush.bf16.msra.mxu0 0
        %3774 = vmatpush.bf16.msra.mxu0 0
        %3775 = vmatpush.bf16.msra.mxu0 0
        %3776 = vmatpush.bf16.msra.mxu0 %v3743
        %3777 = vmatpush.bf16.msra.mxu0 %v3742
        %3778 = vmatpush.bf16.msra.mxu0 %v3741
        %3779 = vmatpush.bf16.msra.mxu0 %v3740
        %3780 = vmatmul.bf16.gmra.mxu0 %v3749
        %v3781 = vpop.f32.mrf.mxu0
        %v3782 = vadd.f32 0.0, %v3781
        %v3783 = vpop.f32.mrf.mxu0
        %3784 = vmatmul.bf16.gmra.mxu0 %v3752
        %v3785 = vpop.f32.mrf.mxu0
        %v3786 = vadd.f32 0.0, %v3785
        %v3787 = vpop.f32.mrf.mxu0
        %3788 = vmatmul.bf16.gmra.mxu0 %v3755
        %v3789 = vpop.f32.mrf.mxu0
        %v3790 = vadd.f32 0.0, %v3789
        %v3791 = vpop.f32.mrf.mxu0
        %3792 = vmatmul.bf16.gmra.mxu0 %v3758
        %v3793 = vpop.f32.mrf.mxu0
        %v3794 = vadd.f32 0.0, %v3793
        %v3795 = vpop.f32.mrf.mxu0
        %3796 = vmatmul.bf16.gmra.mxu0 %v3761
        %v3797 = vpop.f32.mrf.mxu0
        %v3798 = vadd.f32 0.0, %v3797
        %v3799 = vpop.f32.mrf.mxu0
        %3800 = vmatmul.bf16.gmra.mxu0 %v3764
        %v3801 = vpop.f32.mrf.mxu0
        %v3802 = vadd.f32 0.0, %v3801
        %v3803 = vpop.f32.mrf.mxu0
        %3804 = vmatmul.bf16.gmra.mxu0 %v3767
        %v3805 = vpop.f32.mrf.mxu0
        %v3806 = vadd.f32 0.0, %v3805
        %v3807 = vpop.f32.mrf.mxu0
        %3808 = vmatmul.bf16.gmra.mxu0 %v3770
        %v3809 = vpop.f32.mrf.mxu0
        %v3810 = vadd.f32 0.0, %v3809
        %v3811 = vpop.f32.mrf.mxu0
        %3812 = vdwg.mxu0
        %v3813 = vadd.f32 %v3651, %v3782
        %v3814 = vadd.f32 %v3652, %v3786
        %v3815 = vadd.f32 %v3653, %v3790
        %v3816 = vadd.f32 %v3654, %v3794
        %v3817 = vadd.f32 %v3655, %v3798
        %v3818 = vadd.f32 %v3656, %v3802
        %v3819 = vadd.f32 %v3657, %v3806
        %v3820 = vadd.f32 %v3658, %v3810
        %v3821 = vld [vmem:[#allocation3 + $0x10] sm:$0xf]
        %v3822 = vld [vmem:[#allocation3 + $0x14] sm:$0xf]
        %v3823 = vld [vmem:[#allocation3 + $0x18] sm:$0xf]
        %v3824 = vld [vmem:[#allocation3 + $0x1c] sm:$0xf]
        %v3825 = vld [vmem:[#allocation3 + $0x20] sm:$0xf]
        %v3826 = vld [vmem:[#allocation3 + $0x24] sm:$0xf]
        %v3827 = vld [vmem:[#allocation3 + $0x28] sm:$0xf]
        %v3828 = vld [vmem:[#allocation3 + $0x2c] sm:$0xf]
        %v3829 = vld [vmem:[#allocation3 + $0x30] sm:$0xf]
        %v3830 = vld [vmem:[#allocation3 + $0x34] sm:$0xf]
        %v3831 = vld [vmem:[#allocation3 + $0x38] sm:$0xf]
        %v3832 = vld [vmem:[#allocation3 + $0x3c] sm:$0xf]
        %v3833 = vld [vmem:[#allocation3 + $0x40] sm:$0xf]
        %v3834 = vld [vmem:[#allocation3 + $0x44] sm:$0xf]
        %v3835 = vld [vmem:[#allocation3 + $0x48] sm:$0xf]
        %v3836 = vld [vmem:[#allocation3 + $0x4c] sm:$0xf]
        %v3837 = vld [vmem:[#allocation3 + $0x50] sm:$0x1]
        %s3838 = scalar_lea.vmem %s3, 224
        %v3839 = vld [vmem:[%s3838] sm:$0xf]
        %v3840 = vld [vmem:[%s3838 + $0x4] sm:$0xf]
        %v3841 = vld [vmem:[%s3838 + $0x8] sm:$0xf]
        %v3842 = vld [vmem:[%s3838 + $0xc] sm:$0xf]
        %v3843 = vld [vmem:[%s3838 + $0x10] sm:$0xf]
        %v3844 = vld [vmem:[%s3838 + $0x14] sm:$0xf]
        %v3845 = vld [vmem:[%s3838 + $0x18] sm:$0xf]
        %v3846 = vld [vmem:[%s3838 + $0x1c] sm:$0xf]
        %v3864 = vunpack.c.l.b16 %v3821
        %v3865 = vunpack.c.l.b16 %v3822
        %v3866 = vunpack.c.l.b16 %v3823
        %v3867 = vunpack.c.l.b16 %v3824
        %v3868 = vunpack.c.l.b16 %v3825
        %v3869 = vunpack.c.l.b16 %v3826
        %v3870 = vunpack.c.l.b16 %v3827
        %v3871 = vunpack.c.l.b16 %v3828
        %v3872 = vunpack.c.l.b16 %v3829
        %v3873 = vunpack.c.l.b16 %v3830
        %v3874 = vunpack.c.l.b16 %v3831
        %v3875 = vunpack.c.l.b16 %v3832
        %v3876 = vunpack.c.l.b16 %v3833
        %v3877 = vunpack.c.l.b16 %v3834
        %v3878 = vunpack.c.l.b16 %v3835
        %v3879 = vunpack.c.l.b16 %v3836
        %v3880 = vunpack.c.l.b16 %v3837
        %v3881 = vpack.c.b16 %v3865, %v3864
        %v3882 = vpack.c.b16 %v3867, %v3866
        %v3883 = vpack.c.b16 %v3869, %v3868
        %v3884 = vpack.c.b16 %v3871, %v3870
        %v3885 = vpack.c.b16 %v3873, %v3872
        %v3886 = vpack.c.b16 %v3875, %v3874
        %v3887 = vpack.c.b16 %v3877, %v3876
        %v3888 = vpack.c.b16 %v3879, %v3878
        %v3889 = vpack.c.b16 %v3880, %v3880
        %v3891 = vshrl.u32 %v3881, 16
        %v3893 = vshll.u32 %v3881, 16
        %v3895 = vrot.slane %v3893, 1
        %v3896 = vor.u32 %v3891, %v3895
        %v3898 = vshll.u32 %v3882, 16
        %v3900 = vrot.slane %v3898, 1
        %v3901 = vsel %vm881, %v3896, %v3900
        %v3902 = vshrl.u32 %v3882, 16
        %v3904 = vor.u32 %v3902, %v3900
        %v3906 = vshll.u32 %v3883, 16
        %v3908 = vrot.slane %v3906, 1
        %v3909 = vsel %vm881, %v3904, %v3908
        %v3910 = vshrl.u32 %v3883, 16
        %v3912 = vor.u32 %v3910, %v3908
        %v3914 = vshll.u32 %v3884, 16
        %v3916 = vrot.slane %v3914, 1
        %v3917 = vsel %vm881, %v3912, %v3916
        %v3918 = vshrl.u32 %v3884, 16
        %v3920 = vor.u32 %v3918, %v3916
        %v3922 = vshll.u32 %v3885, 16
        %v3924 = vrot.slane %v3922, 1
        %v3925 = vsel %vm881, %v3920, %v3924
        %v3926 = vshrl.u32 %v3885, 16
        %v3928 = vor.u32 %v3926, %v3924
        %v3930 = vshll.u32 %v3886, 16
        %v3932 = vrot.slane %v3930, 1
        %v3933 = vsel %vm881, %v3928, %v3932
        %v3934 = vshrl.u32 %v3886, 16
        %v3936 = vor.u32 %v3934, %v3932
        %v3938 = vshll.u32 %v3887, 16
        %v3940 = vrot.slane %v3938, 1
        %v3941 = vsel %vm881, %v3936, %v3940
        %v3942 = vshrl.u32 %v3887, 16
        %v3944 = vor.u32 %v3942, %v3940
        %v3946 = vshll.u32 %v3888, 16
        %v3948 = vrot.slane %v3946, 1
        %v3949 = vsel %vm881, %v3944, %v3948
        %v3950 = vshrl.u32 %v3888, 16
        %v3952 = vor.u32 %v3950, %v3948
        %v3954 = vshll.u32 %v3889, 16
        %v3956 = vrot.slane %v3954, 1
        %v3957 = vsel %vm881, %v3952, %v3956
        %v3966 = vunpack.c.l.b16 %v3839
        %v3967 = vunpack.c.l.b16 %v3840
        %v3968 = vunpack.c.l.b16 %v3841
        %v3969 = vunpack.c.l.b16 %v3842
        %v3970 = vunpack.c.l.b16 %v3843
        %v3971 = vunpack.c.l.b16 %v3844
        %v3972 = vunpack.c.l.b16 %v3845
        %v3973 = vunpack.c.l.b16 %v3846
        %v3974 = vpack.c.b16 %v3967, %v3966
        %v3975 = vpack.c.b16 %v3969, %v3968
        %v3976 = vpack.c.b16 %v3971, %v3970
        %v3977 = vpack.c.b16 %v3973, %v3972
        %v3983 = vsel %vm974, %v3901, 0
        %v3986 = vsel %vm974, %v3909, 0
        %v3989 = vsel %vm974, %v3917, 0
        %v3992 = vsel %vm974, %v3925, 0
        %v3995 = vsel %vm974, %v3933, 0
        %v3998 = vsel %vm974, %v3941, 0
        %v4001 = vsel %vm974, %v3949, 0
        %v4004 = vsel %vm974, %v3957, 0
        %4006 = vmatpush.bf16.msra.mxu0 0
        %4007 = vmatpush.bf16.msra.mxu0 0
        %4008 = vmatpush.bf16.msra.mxu0 0
        %4009 = vmatpush.bf16.msra.mxu0 0
        %4010 = vmatpush.bf16.msra.mxu0 %v3977
        %4011 = vmatpush.bf16.msra.mxu0 %v3976
        %4012 = vmatpush.bf16.msra.mxu0 %v3975
        %4013 = vmatpush.bf16.msra.mxu0 %v3974
        %4014 = vmatmul.bf16.gmra.mxu0 %v3983
        %v4015 = vpop.f32.mrf.mxu0
        %v4016 = vadd.f32 0.0, %v4015
        %v4017 = vpop.f32.mrf.mxu0
        %4018 = vmatmul.bf16.gmra.mxu0 %v3986
        %v4019 = vpop.f32.mrf.mxu0
        %v4020 = vadd.f32 0.0, %v4019
        %v4021 = vpop.f32.mrf.mxu0
        %4022 = vmatmul.bf16.gmra.mxu0 %v3989
        %v4023 = vpop.f32.mrf.mxu0
        %v4024 = vadd.f32 0.0, %v4023
        %v4025 = vpop.f32.mrf.mxu0
        %4026 = vmatmul.bf16.gmra.mxu0 %v3992
        %v4027 = vpop.f32.mrf.mxu0
        %v4028 = vadd.f32 0.0, %v4027
        %v4029 = vpop.f32.mrf.mxu0
        %4030 = vmatmul.bf16.gmra.mxu0 %v3995
        %v4031 = vpop.f32.mrf.mxu0
        %v4032 = vadd.f32 0.0, %v4031
        %v4033 = vpop.f32.mrf.mxu0
        %4034 = vmatmul.bf16.gmra.mxu0 %v3998
        %v4035 = vpop.f32.mrf.mxu0
        %v4036 = vadd.f32 0.0, %v4035
        %v4037 = vpop.f32.mrf.mxu0
        %4038 = vmatmul.bf16.gmra.mxu0 %v4001
        %v4039 = vpop.f32.mrf.mxu0
        %v4040 = vadd.f32 0.0, %v4039
        %v4041 = vpop.f32.mrf.mxu0
        %4042 = vmatmul.bf16.gmra.mxu0 %v4004
        %v4043 = vpop.f32.mrf.mxu0
        %v4044 = vadd.f32 0.0, %v4043
        %v4045 = vpop.f32.mrf.mxu0
        %4046 = vdwg.mxu0
        %v4047 = vadd.f32 %v3813, %v4016
        %v4048 = vadd.f32 %v3814, %v4020
        %v4049 = vadd.f32 %v3815, %v4024
        %v4050 = vadd.f32 %v3816, %v4028
        %v4051 = vadd.f32 %v3817, %v4032
        %v4052 = vadd.f32 %v3818, %v4036
        %v4053 = vadd.f32 %v3819, %v4040
        %v4054 = vadd.f32 %v3820, %v4044
        %v4055 = vld [vmem:[#allocation3 + $0x10] sm:$0xe]
        %s4056 = scalar_lea.vmem %s3, 256
        %v4057 = vld [vmem:[%s4056] sm:$0xf]
        %v4058 = vld [vmem:[%s4056 + $0x4] sm:$0xf]
        %v4059 = vld [vmem:[%s4056 + $0x8] sm:$0xf]
        %v4060 = vld [vmem:[%s4056 + $0xc] sm:$0xf]
        %v4061 = vld [vmem:[%s4056 + $0x10] sm:$0xf]
        %v4062 = vld [vmem:[%s4056 + $0x14] sm:$0xf]
        %v4063 = vld [vmem:[%s4056 + $0x18] sm:$0xf]
        %v4064 = vld [vmem:[%s4056 + $0x1c] sm:$0xf]
        %v4066 = vunpack.c.l.b16 %v4055
        %v4067 = vpack.c.b16 %v3865, %v4066
        %v4068 = vrot.slane %v4067, 1
        %v4069 = vrot.slane %v3882, 1
        %v4070 = vsel %vm1150, %v4068, %v4069
        %v4071 = vrot.slane %v3883, 1
        %v4072 = vsel %vm1150, %v4069, %v4071
        %v4073 = vrot.slane %v3884, 1
        %v4074 = vsel %vm1150, %v4071, %v4073
        %v4075 = vrot.slane %v3885, 1
        %v4076 = vsel %vm1150, %v4073, %v4075
        %v4077 = vrot.slane %v3886, 1
        %v4078 = vsel %vm1150, %v4075, %v4077
        %v4079 = vrot.slane %v3887, 1
        %v4080 = vsel %vm1150, %v4077, %v4079
        %v4081 = vrot.slane %v3888, 1
        %v4082 = vsel %vm1150, %v4079, %v4081
        %v4083 = vrot.slane %v3889, 1
        %v4084 = vsel %vm1150, %v4081, %v4083
        %v4093 = vunpack.c.l.b16 %v4057
        %v4094 = vunpack.c.l.b16 %v4058
        %v4095 = vunpack.c.l.b16 %v4059
        %v4096 = vunpack.c.l.b16 %v4060
        %v4097 = vunpack.c.l.b16 %v4061
        %v4098 = vunpack.c.l.b16 %v4062
        %v4099 = vunpack.c.l.b16 %v4063
        %v4100 = vunpack.c.l.b16 %v4064
        %v4101 = vpack.c.b16 %v4094, %v4093
        %v4102 = vpack.c.b16 %v4096, %v4095
        %v4103 = vpack.c.b16 %v4098, %v4097
        %v4104 = vpack.c.b16 %v4100, %v4099
        %v4110 = vsel %vm974, %v4070, 0
        %v4113 = vsel %vm974, %v4072, 0
        %v4116 = vsel %vm974, %v4074, 0
        %v4119 = vsel %vm974, %v4076, 0
        %v4122 = vsel %vm974, %v4078, 0
        %v4125 = vsel %vm974, %v4080, 0
        %v4128 = vsel %vm974, %v4082, 0
        %v4131 = vsel %vm974, %v4084, 0
        %4133 = vmatpush.bf16.msra.mxu0 0
        %4134 = vmatpush.bf16.msra.mxu0 0
        %4135 = vmatpush.bf16.msra.mxu0 0
        %4136 = vmatpush.bf16.msra.mxu0 0
        %4137 = vmatpush.bf16.msra.mxu0 %v4104
        %4138 = vmatpush.bf16.msra.mxu0 %v4103
        %4139 = vmatpush.bf16.msra.mxu0 %v4102
        %4140 = vmatpush.bf16.msra.mxu0 %v4101
        %4141 = vmatmul.bf16.gmra.mxu0 %v4110
        %v4142 = vpop.f32.mrf.mxu0
        %v4143 = vadd.f32 0.0, %v4142
        %v4144 = vpop.f32.mrf.mxu0
        %4145 = vmatmul.bf16.gmra.mxu0 %v4113
        %v4146 = vpop.f32.mrf.mxu0
        %v4147 = vadd.f32 0.0, %v4146
        %v4148 = vpop.f32.mrf.mxu0
        %4149 = vmatmul.bf16.gmra.mxu0 %v4116
        %v4150 = vpop.f32.mrf.mxu0
        %v4151 = vadd.f32 0.0, %v4150
        %v4152 = vpop.f32.mrf.mxu0
        %4153 = vmatmul.bf16.gmra.mxu0 %v4119
        %v4154 = vpop.f32.mrf.mxu0
        %v4155 = vadd.f32 0.0, %v4154
        %v4156 = vpop.f32.mrf.mxu0
        %4157 = vmatmul.bf16.gmra.mxu0 %v4122
        %v4158 = vpop.f32.mrf.mxu0
        %v4159 = vadd.f32 0.0, %v4158
        %v4160 = vpop.f32.mrf.mxu0
        %4161 = vmatmul.bf16.gmra.mxu0 %v4125
        %v4162 = vpop.f32.mrf.mxu0
        %v4163 = vadd.f32 0.0, %v4162
        %v4164 = vpop.f32.mrf.mxu0
        %4165 = vmatmul.bf16.gmra.mxu0 %v4128
        %v4166 = vpop.f32.mrf.mxu0
        %v4167 = vadd.f32 0.0, %v4166
        %v4168 = vpop.f32.mrf.mxu0
        %4169 = vmatmul.bf16.gmra.mxu0 %v4131
        %v4170 = vpop.f32.mrf.mxu0
        %v4171 = vadd.f32 0.0, %v4170
        %v4172 = vpop.f32.mrf.mxu0
        %4173 = vdwg.mxu0
        %v4174 = vadd.f32 %v4047, %v4143
        %v4175 = vadd.f32 %v4048, %v4147
        %v4176 = vadd.f32 %v4049, %v4151
        %v4177 = vadd.f32 %v4050, %v4155
        %v4178 = vadd.f32 %v4051, %v4159
        %v4179 = vadd.f32 %v4052, %v4163
        %v4180 = vadd.f32 %v4053, %v4167
        %v4181 = vadd.f32 %v4054, %v4171
        %v4182 = vld [vmem:[%s4 + $0x4] sm:$0x1]
        %v4183 = vld [vmem:[%s4 + $0x5] sm:$0x1]
        %v4184 = vperm.slane %v4182, 0
        %v4185 = vmul.f32 %v4174, %v4184
        %v4186 = vmul.f32 %v4175, %v4184
        %v4187 = vmul.f32 %v4176, %v4184
        %v4188 = vmul.f32 %v4177, %v4184
        %v4189 = vmul.f32 %v4178, %v4184
        %v4190 = vmul.f32 %v4179, %v4184
        %v4191 = vmul.f32 %v4180, %v4184
        %v4192 = vmul.f32 %v4181, %v4184
        %v4193 = vperm.slane %v4183, 0
        %v4194 = vadd.f32 %v4185, %v4193
        %v4195 = vadd.f32 %v4186, %v4193
        %v4196 = vadd.f32 %v4187, %v4193
        %v4197 = vadd.f32 %v4188, %v4193
        %v4198 = vadd.f32 %v4189, %v4193
        %v4199 = vadd.f32 %v4190, %v4193
        %v4200 = vadd.f32 %v4191, %v4193
        %v4201 = vadd.f32 %v4192, %v4193
        %v4202 = vmax.f32 %v4194, 0.0
        %v4203 = vmax.f32 %v4195, 0.0
        %v4204 = vmax.f32 %v4196, 0.0
        %v4205 = vmax.f32 %v4197, 0.0
        %v4206 = vmax.f32 %v4198, 0.0
        %v4207 = vmax.f32 %v4199, 0.0
        %v4208 = vmax.f32 %v4200, 0.0
        %v4209 = vmax.f32 %v4201, 0.0
        %4210 = vst.msk [vmem:[%s244] sm:$0xff] %vm974, %v4202
        %s4211 = scalar_lea.vmem %s244, 8 [#allocation4]
        %4212 = vst.msk [vmem:[%s4211] sm:$0xff] %vm974, %v4203
        %s4213 = scalar_lea.vmem %s244, 16 [#allocation4]
        %4214 = vst.msk [vmem:[%s4213] sm:$0xff] %vm974, %v4204
        %s4215 = scalar_lea.vmem %s244, 24 [#allocation4]
        %4216 = vst.msk [vmem:[%s4215] sm:$0xff] %vm974, %v4205
        %s4217 = scalar_lea.vmem %s244, 32 [#allocation4]
        %4218 = vst.msk [vmem:[%s4217] sm:$0xff] %vm974, %v4206
        %s4219 = scalar_lea.vmem %s244, 40 [#allocation4]
        %4220 = vst.msk [vmem:[%s4219] sm:$0xff] %vm974, %v4207
        %s4221 = scalar_lea.vmem %s244, 48 [#allocation4]
        %4222 = vst.msk [vmem:[%s4221] sm:$0xff] %vm974, %v4208
        %s4223 = scalar_lea.vmem %s244, 56 [#allocation4]
        %4224 = vst.msk [vmem:[%s4223] sm:$0xff] %vm974, %v4209
        %s4225 = sand.u32 %s159, 1
        %s4226 = scalar_lea.sflag [#allocation5], %s4225
        %s4227 = sand.u32 %s159, 1
        %s4228 = smul.addr %s4227, 64
        %s4229 = scalar_lea.vmem [#allocation4], %s4228
        // Predicated region
        $region45: #{first_conv_forward.1} parent=43 // pred_check
          %p4230 = pneg %p169
        $region46: #{first_conv_forward.1} parent=43 // pred_check_branch
          %4232 = sbr.rel (%p4230) target = $region48
        $region47: #{first_conv_forward.1} parent=43 // pred_region
          %4234 = vsyncadd %s4226, 0
          %s4235 = smul.addr %s20, 8
          %s4236 = smul.addr %s4235, 8
          %s4237 = scalar_lea.hbm %s6, %s4236
          %s4238 = sshll.u32 %s4229, 4
          %s4239 = int_to_ptr.vmem [resolvable:$true] %s4238
          %s4240 = sshll.u32 %s4237, 4
          %s4241 = int_to_ptr.hbm [resolvable:$true] %s4240
          %4246 = dma.vmem_to_hbm [thread:$0]  %s4239, 1024, %s4241, %s4226, 128, 128, 8
        $region48: #{first_conv_forward.1} parent=43 // pred_fallthru
          _
      $region44: #{first_conv_forward.1} parent=5 // pred_fallthru
        _
      %p4247 = scmp.le.s32.totalorder 2, %s15
      // Predicated region
      $region49: #{first_conv_forward.1} parent=5 // pred_check
        %p4248 = pneg %p4247
      $region50: #{first_conv_forward.1} parent=5 // pred_check_branch
        %4250 = sbr.rel (%p4248) target = $region52
      $region51: #{first_conv_forward.1} parent=5 // pred_region
        %s4251 = ssub.s32 %s15, 2
        // Predicated region
        $region53: #{first_conv_forward.1} parent=51 // pred_check
          %p4252 = pneg %p175
        $region54: #{first_conv_forward.1} parent=51 // pred_check_branch
          %4254 = sbr.rel (%p4252) target = $region56
        $region55: #{first_conv_forward.1} parent=51 // pred_region
          %s4255 = sand.u32 %s160, 1
          %s4256 = scalar_lea.sflag [#allocation5], %s4255
          %s4257 = sand.u32 %s160, 1
          %s4258 = smul.addr %s4257, 64
          %s4259 = scalar_lea.vmem [#allocation4], %s4258
          %4261 = dma.done %s4256, 1024
        $region56: #{first_conv_forward.1} parent=51 // pred_fallthru
          _
      $region52: #{first_conv_forward.1} parent=5 // pred_fallthru
        _
    $region6: #{first_conv_forward.1} parent=1 // loop_footer
      %s19 = sadd.s32 1, %s15
    $region7: #{first_conv_forward.1} parent=1 // loop_footer_branch
      %14 = sbr.rel target = $region3
    $region8: #{first_conv_forward.1} parent=1 // loop_exit
      _
    %4262 = vsyncpa [#allocation5], 1
    %s4263 = scalar_lea.sflag [#allocation5], 1
    %4264 = vsyncpa %s4263, 1

</llo_original>
